<compile_context>
chip_gen: v7x
topology: tpu7x:2x2x1
jax: 0.10.0
libtpu: 0.0.40
codegen_flags: <defaults>
</compile_context>

<pallas_src>
import jax
import jax.numpy as jnp
from jax.experimental import pallas as pl
from jax.experimental.pallas import tpu as pltpu


# ------------------------- Pallas kernel -------------------------

def _sort_attn_kernel(x_ref, wx_ref, ws_ref, w4_ref, out_ref):
    """Fused SortAttn forward for one batch tile.

    x_ref  : (TB, H)  f32 activations
    wx_ref : (H, 2H)  folded pre-ReLU weights applied to x
    ws_ref : (H, 2H)  folded pre-ReLU weights applied to sort(x)
    w4_ref : (2H, H)  final Linear weights (transposed)
    """
    x = x_ref[...]                                   # (TB, H) f32
    TB, H = x.shape

    # ---- torch.sort(x, dim=1, stable=True) fused in-kernel -------------------------
    # O(H^2) rank / compare network: rank[p] = #{q: x[q]<x[p]} + #{q<p: x[q]==x[p]}
    # (index tie-break makes ranks a permutation).  Produces VALUES identical to a
    # stable ascending sort; the discarded `indices` output is never materialized.
    # TODO(synk): for large H switch to a bitonic compare-exchange network (pltpu.roll)
    # to avoid the O(H^2) compare cost.
    xi = x[:, :, None]                               # value at position p
    xj = x[:, None, :]                               # value at position q
    p_idx = jax.lax.broadcasted_iota(jnp.int32, (TB, H, H), 1)
    q_idx = jax.lax.broadcasted_iota(jnp.int32, (TB, H, H), 2)
    before = (xj < xi) | ((xj == xi) & (q_idx < p_idx))          # q sorts before p?
    rank = jnp.sum(before.astype(jnp.int32), axis=2)             # (TB, H)
    r_idx = jax.lax.broadcasted_iota(jnp.int32, (TB, H, H), 1)   # output rank index
    gather = rank[:, None, :] == r_idx                           # (TB, r, p)
    sorted_x = jnp.sum(jnp.where(gather, x[:, None, :], 0.0), axis=2)   # (TB, H)

    # ---- attention MLP (fully folded pre-ReLU linear chain) + sigmoid gating -------
    # Matmul operands may be bf16 (v6e/v7x); accumulation + elementwise stay f32.
    mm = wx_ref.dtype
    pre = (jnp.dot(x.astype(mm), wx_ref[...], preferred_element_type=jnp.float32)
           + jnp.dot(sorted_x.astype(mm), ws_ref[...], preferred_element_type=jnp.float32))
    t = jnp.maximum(pre, 0.0)                                    # ReLU (f32)
    s = jax.nn.sigmoid(jnp.dot(t.astype(mm), w4_ref[...],
                               preferred_element_type=jnp.float32))
    out_ref[...] = x * s


# ------------------------- wrapper -------------------------

def _pick_batch_tile(B):
    for tb in (256, 128, 64, 32, 16, 8):
        if B % tb == 0:
            return tb
    return B   # tiny / ragged batch: one block covering the whole batch


def sort_attn(x, params, matmul_dtype=jnp.float32):
    """SortAttn forward: x:(B,H) -> (B,H)."""
    B, H = x.shape
    TB = _pick_batch_tile(B)
    grid = (B // TB,)

    wx = params["w_pre_x"].astype(matmul_dtype)
    ws = params["w_pre_s"].astype(matmul_dtype)
    w4 = params["w4_t"].astype(matmul_dtype)

    # TODO(synk): for production shapes pad H to a multiple of 128 lanes so the output
    # store is unmasked / lane-dense (here H=32 is kept exact to match the module).
    return pl.pallas_call(
        _sort_attn_kernel,
        out_shape=jax.ShapeDtypeStruct((B, H), jnp.float32),
        grid=grid,
        in_specs=[
            pl.BlockSpec((TB, H), lambda i: (i, 0)),        # activations: streamed tiles
            pl.BlockSpec((H, 2 * H), lambda i: (0, 0)),     # weights: constant index map
            pl.BlockSpec((H, 2 * H), lambda i: (0, 0)),     #   -> stay resident in VMEM
            pl.BlockSpec((2 * H, H), lambda i: (0, 0)),
        ],
        out_specs=pl.BlockSpec((TB, H), lambda i: (i, 0)),
        compiler_params=pltpu.CompilerParams(
            dimension_semantics=("parallel",)),             # batch tiles independent
    )(x, wx, ws, w4)


# ------------------------- parameter setup (deterministic, in-script) -------------------------

def init_params(key, hidden_size, group=4):
    H = hidden_size
    assert (2 * H) % group == 0
    GH = 2 * H // group
    ks = jax.random.split(key, 4)

    def u(k, shape, fan_in):
        bound = 1.0 / jnp.sqrt(jnp.float32(fan_in))
        return jax.random.uniform(k, shape, jnp.float32, -bound, bound)

    # PyTorch nn.Linear weight layout: (out_features, in_features), bias=False.
    w1 = u(ks[0], (H, H), H)
    w2 = u(ks[1], (GH, GH), GH)
    w3 = u(ks[2], (GH, GH), GH)
    w4 = u(ks[3], (H, 2 * H), 2 * H)

    def blockdiag(w_t, reps):   # w_t: (in, out) repeated along the diagonal
        n_in, n_out = w_t.shape
        out = jnp.zeros((n_in * reps, n_out * reps), jnp.float32)
        for i in range(reps):
            out = out.at[i * n_in:(i + 1) * n_in, i * n_out:(i + 1) * n_out].set(w_t)
        return out

    twoH = 2 * H
    m = jnp.arange(twoH)
    perm = (m % group) * GH + (m // group)           # Shuffle in flat (B, 2H) coordinates
    Pm = jnp.eye(twoH, dtype=jnp.float32)[perm].T    # flat @ Pm == flat[:, perm]

    bd1 = blockdiag(w1.T, 2)        # Linear(H,H) applied to each of the 2 stack slots
    bd2 = blockdiag(w2.T, group)    # Linear(GH,GH) applied per group
    bd3 = blockdiag(w3.T, group)

    # Constant-fold the whole bias-free pre-ReLU chain (exact; done at build time, not
    # in the kernel): removes both permutation matmuls and the zero-padded block
    # diagonals from the kernel entirely.
    w_pre = bd1 @ Pm @ bd2 @ Pm @ bd3                # (2H, 2H)

    return dict(
        w_pre_x=w_pre[:H, :],       # half applied to x
        w_pre_s=w_pre[H:, :],       # half applied to sort(x)  -> no (B,2H) concat needed
        w4_t=w4.T,                  # (2H, H)
        group=group,
        raw=dict(w1=w1, w2=w2, w3=w3, w4=w4),
    )


# ------------------------- pure-JAX reference (mirrors PyTorch op-for-op) -------------------------

def reference(x, params):
    raw = params["raw"]
    group = params["group"]
    B, H = x.shape
    GH = 2 * H // group

    sorted_x = jnp.sort(x, axis=1)                              # stable sort values
    se = jnp.stack([x, sorted_x], axis=1)                       # (B, 2, H)
    t = se @ raw["w1"].T                                        # Linear(H,H)
    t = t.reshape(B, 2 * H).reshape(B, group, GH)               # Flatten + Unflatten
    t = jnp.swapaxes(t, -1, -2).reshape(B, group, GH)           # Shuffle
    t = t @ raw["w2"].T                                         # Linear(GH,GH)
    t = jnp.swapaxes(t, -1, -2).reshape(B, group, GH)           # Shuffle
    t = t @ raw["w3"].T                                         # Linear(GH,GH)
    t = jax.nn.relu(t)
    t = t.reshape(B, 2 * H)                                     # Flatten
    s = jax.nn.sigmoid(t @ raw["w4"].T)                         # Linear(2H,H) + Sigmoid
    return x * s


if __name__ == "__main__":
    key = jax.random.PRNGKey(0)
    kx, kx2, kp = jax.random.split(key, 3)
    B, H = 2, 32

    x = jax.random.normal(kx, (B, H), jnp.float32)
    params = init_params(kp, H, group=4)

    # f32 path (all chips)
    out = jax.jit(lambda xx: sort_attn(xx, params))(x)
    out = jax.block_until_ready(out)
    ref = reference(x, params)
    assert out.shape == (B, H), out.shape
    assert bool(jnp.all(jnp.isfinite(out)))
    assert bool(jnp.allclose(out, ref, atol=1e-2, rtol=1e-2)), "kernel/reference mismatch (f32)"

    # multi-tile batch grid path (exercises the parallel grid + resident weights)
    B2 = 48
    x2 = jax.random.normal(kx2, (B2, H), jnp.float32)
    out2 = jax.block_until_ready(jax.jit(lambda xx: sort_attn(xx, params))(x2))
    ref2 = reference(x2, params)
    assert bool(jnp.allclose(out2, ref2, atol=1e-2, rtol=1e-2)), "kernel/reference mismatch (grid)"

    # bf16 MXU-operand path (v6e/v7x option; elementwise math stays f32)
    out_bf16 = jax.block_until_ready(
        jax.jit(lambda xx: sort_attn(xx, params, matmul_dtype=jnp.bfloat16))(x))
    assert bool(jnp.allclose(out_bf16, ref, atol=5e-2, rtol=5e-2)), "kernel/reference mismatch (bf16)"

    print("KERNEL_OK")
</pallas_src>

<mosaic_0001>
module attributes {stable_mosaic.version = 11 : i64} {
  func.func @_sort_attn_kernel(%arg0: i32, %arg1: memref<2x32xf32, #tpu.memory_space<vmem>>, %arg2: memref<32x64xf32, #tpu.memory_space<vmem>>, %arg3: memref<32x64xf32, #tpu.memory_space<vmem>>, %arg4: memref<64x32xf32, #tpu.memory_space<vmem>>, %arg5: memref<2x32xf32, #tpu.memory_space<vmem>>) attributes {dimension_semantics = [#tpu.dimension_semantics<parallel>], iteration_bounds = array<i64: 1>, scalar_prefetch = 0 : i64, scratch_operands = 0 : i64, tpu.core_type = #tpu.core_type<tc>, window_params = [{transform_indices = @transform_0, window_bounds = array<i64: 2, 32>}, {pipeline_mode = #tpu.pipeline_mode<synchronous>, transform_indices = @transform_1, window_bounds = array<i64: 32, 64>}, {pipeline_mode = #tpu.pipeline_mode<synchronous>, transform_indices = @transform_2, window_bounds = array<i64: 32, 64>}, {pipeline_mode = #tpu.pipeline_mode<synchronous>, transform_indices = @transform_3, window_bounds = array<i64: 64, 32>}, {transform_indices = @transform_4, window_bounds = array<i64: 2, 32>}]} {
    %c0 = arith.constant 0 : index
    %c0_0 = arith.constant 0 : index
    %0 = vector.load %arg1[%c0, %c0_0] : memref<2x32xf32, #tpu.memory_space<vmem>>, vector<2x32xf32>
    %1 = vector.shape_cast %0 : vector<2x32xf32> to vector<2x32x1xf32>
    %2 = vector.shape_cast %0 : vector<2x32xf32> to vector<2x1x32xf32>
    %3 = tpu.iota {dimensions = array<i32: 1>} : vector<2x32x32xi32>
    %4 = tpu.iota {dimensions = array<i32: 2>} : vector<2x32x32xi32>
    %5 = vector.broadcast %2 : vector<2x1x32xf32> to vector<2x32x32xf32>
    %6 = vector.broadcast %1 : vector<2x32x1xf32> to vector<2x32x32xf32>
    %7 = arith.cmpf olt, %5, %6 : vector<2x32x32xf32>
    %8 = vector.broadcast %2 : vector<2x1x32xf32> to vector<2x32x32xf32>
    %9 = vector.broadcast %1 : vector<2x32x1xf32> to vector<2x32x32xf32>
    %10 = arith.cmpf oeq, %8, %9 : vector<2x32x32xf32>
    %11 = arith.cmpi slt, %4, %3 : vector<2x32x32xi32>
    %12 = arith.andi %10, %11 : vector<2x32x32xi1>
    %13 = arith.ori %7, %12 : vector<2x32x32xi1>
    %14 = arith.extui %13 : vector<2x32x32xi1> to vector<2x32x32xi32>
    %cst = arith.constant dense<0> : vector<2x32xi32>
    %15 = vector.multi_reduction <add>, %14, %cst [2] : vector<2x32x32xi32> to vector<2x32xi32>
    %16 = tpu.iota {dimensions = array<i32: 1>} : vector<2x32x32xi32>
    %17 = vector.shape_cast %15 : vector<2x32xi32> to vector<2x1x32xi32>
    %18 = vector.broadcast %17 : vector<2x1x32xi32> to vector<2x32x32xi32>
    %19 = arith.cmpi eq, %18, %16 : vector<2x32x32xi32>
    %20 = vector.shape_cast %0 : vector<2x32xf32> to vector<2x1x32xf32>
    %cst_1 = arith.constant 0.000000e+00 : f32
    %21 = vector.shape_cast %20 : vector<2x1x32xf32> to vector<2x1x32xf32>
    %22 = vector.broadcast %21 : vector<2x1x32xf32> to vector<2x32x32xf32>
    %23 = vector.broadcast %cst_1 : f32 to vector<2x32x32xf32>
    %24 = arith.select %19, %22, %23 : vector<2x32x32xi1>, vector<2x32x32xf32>
    %cst_2 = arith.constant dense<0.000000e+00> : vector<2x32xf32>
    %25 = vector.multi_reduction <add>, %24, %cst_2 [2] : vector<2x32x32xf32> to vector<2x32xf32>
    %c0_3 = arith.constant 0 : index
    %c0_4 = arith.constant 0 : index
    %26 = vector.load %arg2[%c0_3, %c0_4] : memref<32x64xf32, #tpu.memory_space<vmem>>, vector<32x64xf32>
    %cst_5 = arith.constant dense<0.000000e+00> : vector<2x64xf32>
    %27 = tpu.matmul %0, %26, %cst_5 {dimension_numbers = #tpu.dot_dimension_numbers<[1], [0], [0], [1], [0, 0, 1, 1], [], []>} : vector<2x32xf32>, vector<32x64xf32>, vector<2x64xf32> -> vector<2x64xf32>
    %c0_6 = arith.constant 0 : index
    %c0_7 = arith.constant 0 : index
    %28 = vector.load %arg3[%c0_6, %c0_7] : memref<32x64xf32, #tpu.memory_space<vmem>>, vector<32x64xf32>
    %cst_8 = arith.constant dense<0.000000e+00> : vector<2x64xf32>
    %29 = tpu.matmul %25, %28, %cst_8 {dimension_numbers = #tpu.dot_dimension_numbers<[1], [0], [0], [1], [0, 0, 1, 1], [], []>} : vector<2x32xf32>, vector<32x64xf32>, vector<2x64xf32> -> vector<2x64xf32>
    %30 = arith.addf %27, %29 : vector<2x64xf32>
    %cst_9 = arith.constant 0.000000e+00 : f32
    %31 = vector.broadcast %cst_9 : f32 to vector<2x64xf32>
    %32 = arith.maximumf %30, %31 : vector<2x64xf32>
    %c0_10 = arith.constant 0 : index
    %c0_11 = arith.constant 0 : index
    %33 = vector.load %arg4[%c0_10, %c0_11] : memref<64x32xf32, #tpu.memory_space<vmem>>, vector<64x32xf32>
    %cst_12 = arith.constant dense<0.000000e+00> : vector<2x32xf32>
    %34 = tpu.matmul %32, %33, %cst_12 {dimension_numbers = #tpu.dot_dimension_numbers<[1], [0], [0], [1], [0, 0, 1, 1], [], []>} : vector<2x64xf32>, vector<64x32xf32>, vector<2x32xf32> -> vector<2x32xf32>
    %35 = arith.negf %34 : vector<2x32xf32>
    %36 = math.exp %35 : vector<2x32xf32>
    %cst_13 = arith.constant 1.000000e+00 : f32
    %37 = vector.broadcast %cst_13 : f32 to vector<2x32xf32>
    %38 = arith.addf %37, %36 : vector<2x32xf32>
    %39 = arith.divf %37, %38 : vector<2x32xf32>
    %40 = arith.mulf %0, %39 : vector<2x32xf32>
    %c0_14 = arith.constant 0 : index
    %c0_15 = arith.constant 0 : index
    %41 = vector.load %arg5[%c0_14, %c0_15] : memref<2x32xf32, #tpu.memory_space<vmem>>, vector<2x32xf32>
    tpu.vector_store %arg5[%c0_14, %c0_15], %40 {strides = array<i32>} : memref<2x32xf32, #tpu.memory_space<vmem>>, vector<2x32xf32>,
    return
  }
  func.func @transform_0(%arg0: i32) -> (i32, i32) {
    %c0_i32 = arith.constant 0 : i32
    %c0_i32_0 = arith.constant 0 : i32
    return %arg0, %c0_i32 : i32, i32
  }
  func.func @transform_1(%arg0: i32) -> (i32, i32) {
    %c0_i32 = arith.constant 0 : i32
    %c0_i32_0 = arith.constant 0 : i32
    %c0_i32_1 = arith.constant 0 : i32
    return %c0_i32, %c0_i32_0 : i32, i32
  }
  func.func @transform_2(%arg0: i32) -> (i32, i32) {
    %c0_i32 = arith.constant 0 : i32
    %c0_i32_0 = arith.constant 0 : i32
    %c0_i32_1 = arith.constant 0 : i32
    return %c0_i32, %c0_i32_0 : i32, i32
  }
  func.func @transform_3(%arg0: i32) -> (i32, i32) {
    %c0_i32 = arith.constant 0 : i32
    %c0_i32_0 = arith.constant 0 : i32
    %c0_i32_1 = arith.constant 0 : i32
    return %c0_i32, %c0_i32_0 : i32, i32
  }
  func.func @transform_4(%arg0: i32) -> (i32, i32) {
    %c0_i32 = arith.constant 0 : i32
    %c0_i32_0 = arith.constant 0 : i32
    return %arg0, %c0_i32 : i32, i32
  }
}

</mosaic_0001>

<llo_original>
// kernel: _lambda_.1
$region0: #{_lambda_.1}
  #allocation0 [shape = 'u32[]', space=smem, size = 0x4, offset = 0x4, fixed_abs, tag = 'smem constant byte address 0x4 - core index']
  #allocation1 [shape = 'u32[144,128]{1,0:T(1,128)}', space=vmem, size = 0x12000, scoped, tag = 'internal scratch']
  %s0 = inlined_call_operand.hbm [shape: f32[2,32], index: 0, kind: input, shape index: {}]
  %s1 = inlined_call_operand.hbm [shape: f32[32,64], index: 1, kind: input, shape index: {}]
  %s2 = inlined_call_operand.hbm [shape: f32[32,64], index: 2, kind: input, shape index: {}]
  %s3 = inlined_call_operand.hbm [shape: f32[64,32], index: 3, kind: input, shape index: {}]
  %s4 = inlined_call_operand.hbm [shape: f32[2,32], index: 4, kind: output, shape index: {}]
  %s5 = sld [smem:[#allocation0]]
  $region42: #{_lambda_.1} parent=0
    _
  %s7 = ssub.s32 1, %s5
  %s8 = scalar_select 0, %s7, %s5
  $region1: #{_lambda_.1} parent=0
    #allocation2 [shape = 'u8[1024]{0}', space=vmem, size = 0x400, scoped, tag = 'input window, operand 0, single buffered']
    #allocation3 [shape = 's32[1]{0}', space=sflag, size = 0x4, scoped, tag = 'scoped memory for _lambda_.1']
    #allocation4 [shape = 's32[1]{0}', space=sflag, size = 0x4, scoped, tag = 'scoped memory for _lambda_.1']
    #allocation5 [shape = 'u8[16384]{0}', space=vmem, size = 0x4000, scoped, tag = 'input window, operand 1, single buffered']
    #allocation6 [shape = 's32[1]{0}', space=sflag, size = 0x4, scoped, tag = 'scoped memory for _lambda_.1']
    #allocation7 [shape = 'u8[16384]{0}', space=vmem, size = 0x4000, scoped, tag = 'input window, operand 2, single buffered']
    #allocation8 [shape = 'u8[32768]{0}', space=vmem, size = 0x8000, scoped, tag = 'input window, operand 3, single buffered']
    #allocation9 [shape = 's32[1]{0}', space=sflag, size = 0x4, scoped, tag = 'scoped memory for _lambda_.1']
    #allocation10 [shape = 'u8[1024]{0}', space=vmem, size = 0x400, scoped, tag = 'output window, operand 0, single buffered']
    %9 = vsyncpa [#allocation3], 0
    %10 = vsyncpa [#allocation6], 0
    %11 = vsyncpa [#allocation9], 0
    %12 = vsyncpa [#allocation4], 0
    // Predicated region
    $region2: #{_lambda_.1} parent=1 // pred_check
      _
    $region3: #{_lambda_.1} parent=1 // pred_check_branch
      %14 = sbr.rel (0) target = $region5
    $region4: #{_lambda_.1} parent=1 // pred_region
      %s16 = ssub.s32 32, 32
      %17 = vsyncadd [#allocation3], %s16
      %s19 = sshll.u32 [#allocation2], 4
      %s20 = int_to_ptr.vmem [resolvable:$true] %s19
      %22 = dma.hbm_to_vmem [thread:$0]  %s0, 32, %s20, [#allocation3]
    $region5: #{_lambda_.1} parent=1 // pred_fallthru
      _
    // Predicated region
    $region6: #{_lambda_.1} parent=1 // pred_check
      _
    $region7: #{_lambda_.1} parent=1 // pred_check_branch
      %24 = sbr.rel (0) target = $region9
    $region8: #{_lambda_.1} parent=1 // pred_region
      %s26 = ssub.s32 512, 512
      %27 = vsyncadd [#allocation6], %s26
      %s28 = sshll.u32 [#allocation5], 4
      %s29 = int_to_ptr.vmem [resolvable:$true] %s28
      %34 = dma.hbm_to_vmem [thread:$0]  %s1, 512, %s29, [#allocation6], 128, 128, 8
    $region9: #{_lambda_.1} parent=1 // pred_fallthru
      _
    // Predicated region
    $region10: #{_lambda_.1} parent=1 // pred_check
      _
    $region11: #{_lambda_.1} parent=1 // pred_check_branch
      %36 = sbr.rel (0) target = $region13
    $region12: #{_lambda_.1} parent=1 // pred_region
      %s38 = ssub.s32 512, 512
      %39 = vsyncadd [#allocation6], %s38
      %s40 = sshll.u32 [#allocation7], 4
      %s41 = int_to_ptr.vmem [resolvable:$true] %s40
      %46 = dma.hbm_to_vmem [thread:$0]  %s2, 512, %s41, [#allocation6], 128, 128, 8
    $region13: #{_lambda_.1} parent=1 // pred_fallthru
      _
    // Predicated region
    $region14: #{_lambda_.1} parent=1 // pred_check
      _
    $region15: #{_lambda_.1} parent=1 // pred_check_branch
      %48 = sbr.rel (0) target = $region17
    $region16: #{_lambda_.1} parent=1 // pred_region
      %s50 = ssub.s32 1024, 1024
      %51 = vsyncadd [#allocation9], %s50
      %s52 = sshll.u32 [#allocation8], 4
      %s53 = int_to_ptr.vmem [resolvable:$true] %s52
      %58 = dma.hbm_to_vmem [thread:$0]  %s3, 1024, %s53, [#allocation9], 128, 128, 8
    $region17: #{_lambda_.1} parent=1 // pred_fallthru
      _
    // Predicated region
    $region18: #{_lambda_.1} parent=1 // pred_check
      _
    $region19: #{_lambda_.1} parent=1 // pred_check_branch
      %60 = sbr.rel (0) target = $region21
    $region20: #{_lambda_.1} parent=1 // pred_region
      %61 = dma.done [#allocation3], 32
    $region21: #{_lambda_.1} parent=1 // pred_fallthru
      _
    // Predicated region
    $region22: #{_lambda_.1} parent=1 // pred_check
      _
    $region23: #{_lambda_.1} parent=1 // pred_check_branch
      %63 = sbr.rel (0) target = $region25
    $region24: #{_lambda_.1} parent=1 // pred_region
      %64 = dma.done [#allocation6], 512
    $region25: #{_lambda_.1} parent=1 // pred_fallthru
      _
    // Predicated region
    $region26: #{_lambda_.1} parent=1 // pred_check
      _
    $region27: #{_lambda_.1} parent=1 // pred_check_branch
      %66 = sbr.rel (0) target = $region29
    $region28: #{_lambda_.1} parent=1 // pred_region
      %67 = dma.done [#allocation6], 512
    $region29: #{_lambda_.1} parent=1 // pred_fallthru
      _
    // Predicated region
    $region30: #{_lambda_.1} parent=1 // pred_check
      _
    $region31: #{_lambda_.1} parent=1 // pred_check_branch
      %69 = sbr.rel (0) target = $region33
    $region32: #{_lambda_.1} parent=1 // pred_region
      %70 = dma.done [#allocation9], 1024
    $region33: #{_lambda_.1} parent=1 // pred_fallthru
      _
    %v71 = vld [vmem:[#allocation2] sm:$0x3]
    %v72 = vlaneseq
    %v73 = vshrl.u32 %v72, 7
    %v74 = vsub.s32 0, %v73
    %v75 = vrot.slane %v71, %v74
    %77 = vbcast.lane.b32.xlu0 %v75, 256
    %v78 = vpop.permute.xlu0 %77
    %s80 = sor.u32 256, 8
    %81 = vbcast.lane.b32.xlu0 %v75, %s80
    %v82 = vpop.permute.xlu0 %81
    %s84 = sor.u32 256, 16
    %85 = vbcast.lane.b32.xlu0 %v75, %s84
    %v86 = vpop.permute.xlu0 %85
    %s88 = sor.u32 256, 24
    %89 = vbcast.lane.b32.xlu0 %v75, %s88
    %v90 = vpop.permute.xlu0 %89
    %v91 = vlaneseq
    %v92 = vshrl.u32 %v91, 7
    %v93 = vsub.s32 1, %v92
    %v94 = vrot.slane %v71, %v93
    %96 = vbcast.lane.b32.xlu0 %v94, 256
    %v97 = vpop.permute.xlu0 %96
    %s99 = sor.u32 256, 8
    %100 = vbcast.lane.b32.xlu0 %v94, %s99
    %v101 = vpop.permute.xlu0 %100
    %s103 = sor.u32 256, 16
    %104 = vbcast.lane.b32.xlu0 %v94, %s103
    %v105 = vpop.permute.xlu0 %104
    %s107 = sor.u32 256, 24
    %108 = vbcast.lane.b32.xlu0 %v94, %s107
    %v109 = vpop.permute.xlu0 %108
    %v112 = vunpack.c.l.s4 1966171168
    %v113 = vunpack.c.0.s8 %v112
    %v114 = vlaneseq
    %v115 = vshrl.u32 %v114, 7
    %v116 = vsub.s32 %v113, %v115
    %v117 = vrot.slane %v71, %v116
    %v118 = vcombine.high %v117, %v117
    %v120 = vunpack.c.l.s4 1966171168
    %v121 = vunpack.c.0.s8 %v120
    %v122 = vlaneseq
    %v123 = vshrl.u32 %v122, 7
    %v124 = vsub.s32 %v121, %v123
    %v125 = vrot.slane %v117, %v124
    %v127 = vunpack.c.l.s4 1966171168
    %v128 = vunpack.c.0.s8 %v127
    %v129 = vlaneseq
    %v130 = vshrl.u32 %v129, 7
    %v131 = vsub.s32 %v128, %v130
    %v132 = vrot.slane %v118, %v131
    %v133 = vlaneseq
    %v134 = vshrl.u32 %v133, 7
    %v135 = vadd.s32 %v134, 8
    %v136 = vadd.s32 %v134, 16
    %v137 = vadd.s32 %v134, 24
    %v138 = vlaneseq
    %v139 = vand.u32 %v138, 127
    %v140 = vlaneseq
    %v141 = vshrl.u32 %v140, 7
    %v142 = vsub.s32 0, %v141
    %v143 = vrot.slane %v125, %v142
    %v144 = vlaneseq
    %v145 = vshrl.u32 %v144, 7
    %v146 = vsub.s32 0, %v145
    %v147 = vrot.slane %v132, %v146
    %vm150 = vcmp.lt.f32.partialorder %v143, %v78
    %vm151 = vcmp.lt.f32.partialorder %v143, %v82
    %vm152 = vcmp.lt.f32.partialorder %v143, %v86
    %vm153 = vcmp.lt.f32.partialorder %v143, %v90
    %vm154 = vcmp.lt.f32.partialorder %v147, %v97
    %vm155 = vcmp.lt.f32.partialorder %v147, %v101
    %vm156 = vcmp.lt.f32.partialorder %v147, %v105
    %vm157 = vcmp.lt.f32.partialorder %v147, %v109
    %vm158 = vcmp.eq.f32.partialorder %v143, %v78
    %vm159 = vcmp.eq.f32.partialorder %v143, %v82
    %vm160 = vcmp.eq.f32.partialorder %v143, %v86
    %vm161 = vcmp.eq.f32.partialorder %v143, %v90
    %vm162 = vcmp.eq.f32.partialorder %v147, %v97
    %vm163 = vcmp.eq.f32.partialorder %v147, %v101
    %vm164 = vcmp.eq.f32.partialorder %v147, %v105
    %vm165 = vcmp.eq.f32.partialorder %v147, %v109
    %vm166 = vcmp.lt.s32.totalorder %v139, %v134
    %vm167 = vcmp.lt.s32.totalorder %v139, %v135
    %vm168 = vcmp.lt.s32.totalorder %v139, %v136
    %vm169 = vcmp.lt.s32.totalorder %v139, %v137
    %vm170 = vmand %vm158, %vm166
    %vm171 = vmand %vm159, %vm167
    %vm172 = vmand %vm160, %vm168
    %vm173 = vmand %vm161, %vm169
    %vm174 = vmand %vm162, %vm166
    %vm175 = vmand %vm163, %vm167
    %vm176 = vmand %vm164, %vm168
    %vm177 = vmand %vm165, %vm169
    %vm178 = vmor %vm150, %vm170
    %vm179 = vmor %vm151, %vm171
    %vm180 = vmor %vm152, %vm172
    %vm181 = vmor %vm153, %vm173
    %vm182 = vmor %vm154, %vm174
    %vm183 = vmor %vm155, %vm175
    %vm184 = vmor %vm156, %vm176
    %vm185 = vmor %vm157, %vm177
    %v186 = vsel %vm178, 1, 0
    %v187 = vsel %vm179, 1, 0
    %v188 = vsel %vm180, 1, 0
    %v189 = vsel %vm181, 1, 0
    %v190 = vsel %vm182, 1, 0
    %v191 = vsel %vm183, 1, 0
    %v192 = vsel %vm184, 1, 0
    %v193 = vsel %vm185, 1, 0
    %vm194 = vcmask 261120
    %v195 = vsel %vm194, %v186, 0
    %v196 = vand.u32 %v195, 65535
    %v197 = vshrl.u32 %v195, 16
    %v198 = vcvt.s32.f32 %v196
    %v199 = vcvt.s32.f32 %v197
    %200 = vadd.xlane.f32.xlu0 %v198
    %v201 = vpop.xlane.xlu0 %200
    %202 = vadd.xlane.f32.xlu0 %v199
    %v203 = vpop.xlane.xlu0 %202
    %v204 = vcvt.f32.s32 %v201
    %v205 = vcvt.f32.s32 %v203
    %v206 = vshll.u32 %v205, 16
    %v207 = vadd.s32 %v206, %v204
    %v208 = vsel %vm194, %v187, 0
    %v209 = vand.u32 %v208, 65535
    %v210 = vshrl.u32 %v208, 16
    %v211 = vcvt.s32.f32 %v209
    %v212 = vcvt.s32.f32 %v210
    %213 = vadd.xlane.f32.xlu0 %v211
    %v214 = vpop.xlane.xlu0 %213
    %215 = vadd.xlane.f32.xlu0 %v212
    %v216 = vpop.xlane.xlu0 %215
    %v217 = vcvt.f32.s32 %v214
    %v218 = vcvt.f32.s32 %v216
    %v219 = vshll.u32 %v218, 16
    %v220 = vadd.s32 %v219, %v217
    %v221 = vsel %vm194, %v188, 0
    %v222 = vand.u32 %v221, 65535
    %v223 = vshrl.u32 %v221, 16
    %v224 = vcvt.s32.f32 %v222
    %v225 = vcvt.s32.f32 %v223
    %226 = vadd.xlane.f32.xlu0 %v224
    %v227 = vpop.xlane.xlu0 %226
    %228 = vadd.xlane.f32.xlu0 %v225
    %v229 = vpop.xlane.xlu0 %228
    %v230 = vcvt.f32.s32 %v227
    %v231 = vcvt.f32.s32 %v229
    %v232 = vshll.u32 %v231, 16
    %v233 = vadd.s32 %v232, %v230
    %v234 = vsel %vm194, %v189, 0
    %v235 = vand.u32 %v234, 65535
    %v236 = vshrl.u32 %v234, 16
    %v237 = vcvt.s32.f32 %v235
    %v238 = vcvt.s32.f32 %v236
    %239 = vadd.xlane.f32.xlu0 %v237
    %v240 = vpop.xlane.xlu0 %239
    %241 = vadd.xlane.f32.xlu0 %v238
    %v242 = vpop.xlane.xlu0 %241
    %v243 = vcvt.f32.s32 %v240
    %v244 = vcvt.f32.s32 %v242
    %v245 = vshll.u32 %v244, 16
    %v246 = vadd.s32 %v245, %v243
    %v247 = vsel %vm194, %v190, 0
    %v248 = vand.u32 %v247, 65535
    %v249 = vshrl.u32 %v247, 16
    %v250 = vcvt.s32.f32 %v248
    %v251 = vcvt.s32.f32 %v249
    %252 = vadd.xlane.f32.xlu0 %v250
    %v253 = vpop.xlane.xlu0 %252
    %254 = vadd.xlane.f32.xlu0 %v251
    %v255 = vpop.xlane.xlu0 %254
    %v256 = vcvt.f32.s32 %v253
    %v257 = vcvt.f32.s32 %v255
    %v258 = vshll.u32 %v257, 16
    %v259 = vadd.s32 %v258, %v256
    %v260 = vsel %vm194, %v191, 0
    %v261 = vand.u32 %v260, 65535
    %v262 = vshrl.u32 %v260, 16
    %v263 = vcvt.s32.f32 %v261
    %v264 = vcvt.s32.f32 %v262
    %265 = vadd.xlane.f32.xlu0 %v263
    %v266 = vpop.xlane.xlu0 %265
    %267 = vadd.xlane.f32.xlu0 %v264
    %v268 = vpop.xlane.xlu0 %267
    %v269 = vcvt.f32.s32 %v266
    %v270 = vcvt.f32.s32 %v268
    %v271 = vshll.u32 %v270, 16
    %v272 = vadd.s32 %v271, %v269
    %v273 = vsel %vm194, %v192, 0
    %v274 = vand.u32 %v273, 65535
    %v275 = vshrl.u32 %v273, 16
    %v276 = vcvt.s32.f32 %v274
    %v277 = vcvt.s32.f32 %v275
    %278 = vadd.xlane.f32.xlu0 %v276
    %v279 = vpop.xlane.xlu0 %278
    %280 = vadd.xlane.f32.xlu0 %v277
    %v281 = vpop.xlane.xlu0 %280
    %v282 = vcvt.f32.s32 %v279
    %v283 = vcvt.f32.s32 %v281
    %v284 = vshll.u32 %v283, 16
    %v285 = vadd.s32 %v284, %v282
    %v286 = vsel %vm194, %v193, 0
    %v287 = vand.u32 %v286, 65535
    %v288 = vshrl.u32 %v286, 16
    %v289 = vcvt.s32.f32 %v287
    %v290 = vcvt.s32.f32 %v288
    %291 = vadd.xlane.f32.xlu0 %v289
    %v292 = vpop.xlane.xlu0 %291
    %293 = vadd.xlane.f32.xlu0 %v290
    %v294 = vpop.xlane.xlu0 %293
    %v295 = vcvt.f32.s32 %v292
    %v296 = vcvt.f32.s32 %v294
    %v297 = vshll.u32 %v296, 16
    %v298 = vadd.s32 %v297, %v295
    %v299 = vlaneseq
    %v300 = vshrl.u32 %v299, 7
    %v301 = vsub.s32 0, %v300
    %v302 = vrot.slane %v134, %v301
    %v303 = vlaneseq
    %v304 = vshrl.u32 %v303, 7
    %v305 = vsub.s32 1, %v304
    %v306 = vrot.slane %v134, %v305
    %v307 = vlaneseq
    %v308 = vshrl.u32 %v307, 7
    %v309 = vsub.s32 2, %v308
    %v310 = vrot.slane %v134, %v309
    %v311 = vlaneseq
    %v312 = vshrl.u32 %v311, 7
    %v313 = vsub.s32 3, %v312
    %v314 = vrot.slane %v134, %v313
    %v315 = vlaneseq
    %v316 = vshrl.u32 %v315, 7
    %v317 = vsub.s32 4, %v316
    %v318 = vrot.slane %v134, %v317
    %v319 = vlaneseq
    %v320 = vshrl.u32 %v319, 7
    %v321 = vsub.s32 5, %v320
    %v322 = vrot.slane %v134, %v321
    %v323 = vlaneseq
    %v324 = vshrl.u32 %v323, 7
    %v325 = vsub.s32 6, %v324
    %v326 = vrot.slane %v134, %v325
    %v327 = vlaneseq
    %v328 = vshrl.u32 %v327, 7
    %v329 = vsub.s32 7, %v328
    %v330 = vrot.slane %v134, %v329
    %v331 = vlaneseq
    %v332 = vshrl.u32 %v331, 7
    %v333 = vsub.s32 0, %v332
    %v334 = vrot.slane %v135, %v333
    %v335 = vlaneseq
    %v336 = vshrl.u32 %v335, 7
    %v337 = vsub.s32 1, %v336
    %v338 = vrot.slane %v135, %v337
    %v339 = vlaneseq
    %v340 = vshrl.u32 %v339, 7
    %v341 = vsub.s32 2, %v340
    %v342 = vrot.slane %v135, %v341
    %v343 = vlaneseq
    %v344 = vshrl.u32 %v343, 7
    %v345 = vsub.s32 3, %v344
    %v346 = vrot.slane %v135, %v345
    %v347 = vlaneseq
    %v348 = vshrl.u32 %v347, 7
    %v349 = vsub.s32 4, %v348
    %v350 = vrot.slane %v135, %v349
    %v351 = vlaneseq
    %v352 = vshrl.u32 %v351, 7
    %v353 = vsub.s32 5, %v352
    %v354 = vrot.slane %v135, %v353
    %v355 = vlaneseq
    %v356 = vshrl.u32 %v355, 7
    %v357 = vsub.s32 6, %v356
    %v358 = vrot.slane %v135, %v357
    %v359 = vlaneseq
    %v360 = vshrl.u32 %v359, 7
    %v361 = vsub.s32 7, %v360
    %v362 = vrot.slane %v135, %v361
    %v363 = vlaneseq
    %v364 = vshrl.u32 %v363, 7
    %v365 = vsub.s32 0, %v364
    %v366 = vrot.slane %v136, %v365
    %v367 = vlaneseq
    %v368 = vshrl.u32 %v367, 7
    %v369 = vsub.s32 1, %v368
    %v370 = vrot.slane %v136, %v369
    %v371 = vlaneseq
    %v372 = vshrl.u32 %v371, 7
    %v373 = vsub.s32 2, %v372
    %v374 = vrot.slane %v136, %v373
    %v375 = vlaneseq
    %v376 = vshrl.u32 %v375, 7
    %v377 = vsub.s32 3, %v376
    %v378 = vrot.slane %v136, %v377
    %v379 = vlaneseq
    %v380 = vshrl.u32 %v379, 7
    %v381 = vsub.s32 4, %v380
    %v382 = vrot.slane %v136, %v381
    %v383 = vlaneseq
    %v384 = vshrl.u32 %v383, 7
    %v385 = vsub.s32 5, %v384
    %v386 = vrot.slane %v136, %v385
    %v387 = vlaneseq
    %v388 = vshrl.u32 %v387, 7
    %v389 = vsub.s32 6, %v388
    %v390 = vrot.slane %v136, %v389
    %v391 = vlaneseq
    %v392 = vshrl.u32 %v391, 7
    %v393 = vsub.s32 7, %v392
    %v394 = vrot.slane %v136, %v393
    %v395 = vlaneseq
    %v396 = vshrl.u32 %v395, 7
    %v397 = vsub.s32 0, %v396
    %v398 = vrot.slane %v137, %v397
    %v399 = vlaneseq
    %v400 = vshrl.u32 %v399, 7
    %v401 = vsub.s32 1, %v400
    %v402 = vrot.slane %v137, %v401
    %v403 = vlaneseq
    %v404 = vshrl.u32 %v403, 7
    %v405 = vsub.s32 2, %v404
    %v406 = vrot.slane %v137, %v405
    %v407 = vlaneseq
    %v408 = vshrl.u32 %v407, 7
    %v409 = vsub.s32 3, %v408
    %v410 = vrot.slane %v137, %v409
    %v411 = vlaneseq
    %v412 = vshrl.u32 %v411, 7
    %v413 = vsub.s32 4, %v412
    %v414 = vrot.slane %v137, %v413
    %v415 = vlaneseq
    %v416 = vshrl.u32 %v415, 7
    %v417 = vsub.s32 5, %v416
    %v418 = vrot.slane %v137, %v417
    %v419 = vlaneseq
    %v420 = vshrl.u32 %v419, 7
    %v421 = vsub.s32 6, %v420
    %v422 = vrot.slane %v137, %v421
    %v423 = vlaneseq
    %v424 = vshrl.u32 %v423, 7
    %v425 = vsub.s32 7, %v424
    %v426 = vrot.slane %v137, %v425
    %vm427 = vcmp.eq.s32.totalorder %v207, %v302
    %vm428 = vcmp.eq.s32.totalorder %v220, %v302
    %vm429 = vcmp.eq.s32.totalorder %v233, %v302
    %vm430 = vcmp.eq.s32.totalorder %v246, %v302
    %vm431 = vcmp.eq.s32.totalorder %v207, %v306
    %vm432 = vcmp.eq.s32.totalorder %v220, %v306
    %vm433 = vcmp.eq.s32.totalorder %v233, %v306
    %vm434 = vcmp.eq.s32.totalorder %v246, %v306
    %vm435 = vcmp.eq.s32.totalorder %v207, %v310
    %vm436 = vcmp.eq.s32.totalorder %v220, %v310
    %vm437 = vcmp.eq.s32.totalorder %v233, %v310
    %vm438 = vcmp.eq.s32.totalorder %v246, %v310
    %vm439 = vcmp.eq.s32.totalorder %v207, %v314
    %vm440 = vcmp.eq.s32.totalorder %v220, %v314
    %vm441 = vcmp.eq.s32.totalorder %v233, %v314
    %vm442 = vcmp.eq.s32.totalorder %v246, %v314
    %vm443 = vcmp.eq.s32.totalorder %v207, %v318
    %vm444 = vcmp.eq.s32.totalorder %v220, %v318
    %vm445 = vcmp.eq.s32.totalorder %v233, %v318
    %vm446 = vcmp.eq.s32.totalorder %v246, %v318
    %vm447 = vcmp.eq.s32.totalorder %v207, %v322
    %vm448 = vcmp.eq.s32.totalorder %v220, %v322
    %vm449 = vcmp.eq.s32.totalorder %v233, %v322
    %vm450 = vcmp.eq.s32.totalorder %v246, %v322
    %vm451 = vcmp.eq.s32.totalorder %v207, %v326
    %vm452 = vcmp.eq.s32.totalorder %v220, %v326
    %vm453 = vcmp.eq.s32.totalorder %v233, %v326
    %vm454 = vcmp.eq.s32.totalorder %v246, %v326
    %vm455 = vcmp.eq.s32.totalorder %v207, %v330
    %vm456 = vcmp.eq.s32.totalorder %v220, %v330
    %vm457 = vcmp.eq.s32.totalorder %v233, %v330
    %vm458 = vcmp.eq.s32.totalorder %v246, %v330
    %vm459 = vcmp.eq.s32.totalorder %v207, %v334
    %vm460 = vcmp.eq.s32.totalorder %v220, %v334
    %vm461 = vcmp.eq.s32.totalorder %v233, %v334
    %vm462 = vcmp.eq.s32.totalorder %v246, %v334
    %vm463 = vcmp.eq.s32.totalorder %v207, %v338
    %vm464 = vcmp.eq.s32.totalorder %v220, %v338
    %vm465 = vcmp.eq.s32.totalorder %v233, %v338
    %vm466 = vcmp.eq.s32.totalorder %v246, %v338
    %vm467 = vcmp.eq.s32.totalorder %v207, %v342
    %vm468 = vcmp.eq.s32.totalorder %v220, %v342
    %vm469 = vcmp.eq.s32.totalorder %v233, %v342
    %vm470 = vcmp.eq.s32.totalorder %v246, %v342
    %vm471 = vcmp.eq.s32.totalorder %v207, %v346
    %vm472 = vcmp.eq.s32.totalorder %v220, %v346
    %vm473 = vcmp.eq.s32.totalorder %v233, %v346
    %vm474 = vcmp.eq.s32.totalorder %v246, %v346
    %vm475 = vcmp.eq.s32.totalorder %v207, %v350
    %vm476 = vcmp.eq.s32.totalorder %v220, %v350
    %vm477 = vcmp.eq.s32.totalorder %v233, %v350
    %vm478 = vcmp.eq.s32.totalorder %v246, %v350
    %vm479 = vcmp.eq.s32.totalorder %v207, %v354
    %vm480 = vcmp.eq.s32.totalorder %v220, %v354
    %vm481 = vcmp.eq.s32.totalorder %v233, %v354
    %vm482 = vcmp.eq.s32.totalorder %v246, %v354
    %vm483 = vcmp.eq.s32.totalorder %v207, %v358
    %vm484 = vcmp.eq.s32.totalorder %v220, %v358
    %vm485 = vcmp.eq.s32.totalorder %v233, %v358
    %vm486 = vcmp.eq.s32.totalorder %v246, %v358
    %vm487 = vcmp.eq.s32.totalorder %v207, %v362
    %vm488 = vcmp.eq.s32.totalorder %v220, %v362
    %vm489 = vcmp.eq.s32.totalorder %v233, %v362
    %vm490 = vcmp.eq.s32.totalorder %v246, %v362
    %vm491 = vcmp.eq.s32.totalorder %v207, %v366
    %vm492 = vcmp.eq.s32.totalorder %v220, %v366
    %vm493 = vcmp.eq.s32.totalorder %v233, %v366
    %vm494 = vcmp.eq.s32.totalorder %v246, %v366
    %vm495 = vcmp.eq.s32.totalorder %v207, %v370
    %vm496 = vcmp.eq.s32.totalorder %v220, %v370
    %vm497 = vcmp.eq.s32.totalorder %v233, %v370
    %vm498 = vcmp.eq.s32.totalorder %v246, %v370
    %vm499 = vcmp.eq.s32.totalorder %v207, %v374
    %vm500 = vcmp.eq.s32.totalorder %v220, %v374
    %vm501 = vcmp.eq.s32.totalorder %v233, %v374
    %vm502 = vcmp.eq.s32.totalorder %v246, %v374
    %vm503 = vcmp.eq.s32.totalorder %v207, %v378
    %vm504 = vcmp.eq.s32.totalorder %v220, %v378
    %vm505 = vcmp.eq.s32.totalorder %v233, %v378
    %vm506 = vcmp.eq.s32.totalorder %v246, %v378
    %vm507 = vcmp.eq.s32.totalorder %v207, %v382
    %vm508 = vcmp.eq.s32.totalorder %v220, %v382
    %vm509 = vcmp.eq.s32.totalorder %v233, %v382
    %vm510 = vcmp.eq.s32.totalorder %v246, %v382
    %vm511 = vcmp.eq.s32.totalorder %v207, %v386
    %vm512 = vcmp.eq.s32.totalorder %v220, %v386
    %vm513 = vcmp.eq.s32.totalorder %v233, %v386
    %vm514 = vcmp.eq.s32.totalorder %v246, %v386
    %vm515 = vcmp.eq.s32.totalorder %v207, %v390
    %vm516 = vcmp.eq.s32.totalorder %v220, %v390
    %vm517 = vcmp.eq.s32.totalorder %v233, %v390
    %vm518 = vcmp.eq.s32.totalorder %v246, %v390
    %vm519 = vcmp.eq.s32.totalorder %v207, %v394
    %vm520 = vcmp.eq.s32.totalorder %v220, %v394
    %vm521 = vcmp.eq.s32.totalorder %v233, %v394
    %vm522 = vcmp.eq.s32.totalorder %v246, %v394
    %vm523 = vcmp.eq.s32.totalorder %v207, %v398
    %vm524 = vcmp.eq.s32.totalorder %v220, %v398
    %vm525 = vcmp.eq.s32.totalorder %v233, %v398
    %vm526 = vcmp.eq.s32.totalorder %v246, %v398
    %vm527 = vcmp.eq.s32.totalorder %v207, %v402
    %vm528 = vcmp.eq.s32.totalorder %v220, %v402
    %vm529 = vcmp.eq.s32.totalorder %v233, %v402
    %vm530 = vcmp.eq.s32.totalorder %v246, %v402
    %vm531 = vcmp.eq.s32.totalorder %v207, %v406
    %vm532 = vcmp.eq.s32.totalorder %v220, %v406
    %vm533 = vcmp.eq.s32.totalorder %v233, %v406
    %vm534 = vcmp.eq.s32.totalorder %v246, %v406
    %vm535 = vcmp.eq.s32.totalorder %v207, %v410
    %vm536 = vcmp.eq.s32.totalorder %v220, %v410
    %vm537 = vcmp.eq.s32.totalorder %v233, %v410
    %vm538 = vcmp.eq.s32.totalorder %v246, %v410
    %vm539 = vcmp.eq.s32.totalorder %v207, %v414
    %vm540 = vcmp.eq.s32.totalorder %v220, %v414
    %vm541 = vcmp.eq.s32.totalorder %v233, %v414
    %vm542 = vcmp.eq.s32.totalorder %v246, %v414
    %vm543 = vcmp.eq.s32.totalorder %v207, %v418
    %vm544 = vcmp.eq.s32.totalorder %v220, %v418
    %vm545 = vcmp.eq.s32.totalorder %v233, %v418
    %vm546 = vcmp.eq.s32.totalorder %v246, %v418
    %vm547 = vcmp.eq.s32.totalorder %v207, %v422
    %vm548 = vcmp.eq.s32.totalorder %v220, %v422
    %vm549 = vcmp.eq.s32.totalorder %v233, %v422
    %vm550 = vcmp.eq.s32.totalorder %v246, %v422
    %vm551 = vcmp.eq.s32.totalorder %v207, %v426
    %vm552 = vcmp.eq.s32.totalorder %v220, %v426
    %vm553 = vcmp.eq.s32.totalorder %v233, %v426
    %vm554 = vcmp.eq.s32.totalorder %v246, %v426
    %vm555 = vcmp.eq.s32.totalorder %v259, %v302
    %vm556 = vcmp.eq.s32.totalorder %v272, %v302
    %vm557 = vcmp.eq.s32.totalorder %v285, %v302
    %vm558 = vcmp.eq.s32.totalorder %v298, %v302
    %vm559 = vcmp.eq.s32.totalorder %v259, %v306
    %vm560 = vcmp.eq.s32.totalorder %v272, %v306
    %vm561 = vcmp.eq.s32.totalorder %v285, %v306
    %vm562 = vcmp.eq.s32.totalorder %v298, %v306
    %vm563 = vcmp.eq.s32.totalorder %v259, %v310
    %vm564 = vcmp.eq.s32.totalorder %v272, %v310
    %vm565 = vcmp.eq.s32.totalorder %v285, %v310
    %vm566 = vcmp.eq.s32.totalorder %v298, %v310
    %vm567 = vcmp.eq.s32.totalorder %v259, %v314
    %vm568 = vcmp.eq.s32.totalorder %v272, %v314
    %vm569 = vcmp.eq.s32.totalorder %v285, %v314
    %vm570 = vcmp.eq.s32.totalorder %v298, %v314
    %vm571 = vcmp.eq.s32.totalorder %v259, %v318
    %vm572 = vcmp.eq.s32.totalorder %v272, %v318
    %vm573 = vcmp.eq.s32.totalorder %v285, %v318
    %vm574 = vcmp.eq.s32.totalorder %v298, %v318
    %vm575 = vcmp.eq.s32.totalorder %v259, %v322
    %vm576 = vcmp.eq.s32.totalorder %v272, %v322
    %vm577 = vcmp.eq.s32.totalorder %v285, %v322
    %vm578 = vcmp.eq.s32.totalorder %v298, %v322
    %vm579 = vcmp.eq.s32.totalorder %v259, %v326
    %vm580 = vcmp.eq.s32.totalorder %v272, %v326
    %vm581 = vcmp.eq.s32.totalorder %v285, %v326
    %vm582 = vcmp.eq.s32.totalorder %v298, %v326
    %vm583 = vcmp.eq.s32.totalorder %v259, %v330
    %vm584 = vcmp.eq.s32.totalorder %v272, %v330
    %vm585 = vcmp.eq.s32.totalorder %v285, %v330
    %vm586 = vcmp.eq.s32.totalorder %v298, %v330
    %vm587 = vcmp.eq.s32.totalorder %v259, %v334
    %vm588 = vcmp.eq.s32.totalorder %v272, %v334
    %vm589 = vcmp.eq.s32.totalorder %v285, %v334
    %vm590 = vcmp.eq.s32.totalorder %v298, %v334
    %vm591 = vcmp.eq.s32.totalorder %v259, %v338
    %vm592 = vcmp.eq.s32.totalorder %v272, %v338
    %vm593 = vcmp.eq.s32.totalorder %v285, %v338
    %vm594 = vcmp.eq.s32.totalorder %v298, %v338
    %vm595 = vcmp.eq.s32.totalorder %v259, %v342
    %vm596 = vcmp.eq.s32.totalorder %v272, %v342
    %vm597 = vcmp.eq.s32.totalorder %v285, %v342
    %vm598 = vcmp.eq.s32.totalorder %v298, %v342
    %vm599 = vcmp.eq.s32.totalorder %v259, %v346
    %vm600 = vcmp.eq.s32.totalorder %v272, %v346
    %vm601 = vcmp.eq.s32.totalorder %v285, %v346
    %vm602 = vcmp.eq.s32.totalorder %v298, %v346
    %vm603 = vcmp.eq.s32.totalorder %v259, %v350
    %vm604 = vcmp.eq.s32.totalorder %v272, %v350
    %vm605 = vcmp.eq.s32.totalorder %v285, %v350
    %vm606 = vcmp.eq.s32.totalorder %v298, %v350
    %vm607 = vcmp.eq.s32.totalorder %v259, %v354
    %vm608 = vcmp.eq.s32.totalorder %v272, %v354
    %vm609 = vcmp.eq.s32.totalorder %v285, %v354
    %vm610 = vcmp.eq.s32.totalorder %v298, %v354
    %vm611 = vcmp.eq.s32.totalorder %v259, %v358
    %vm612 = vcmp.eq.s32.totalorder %v272, %v358
    %vm613 = vcmp.eq.s32.totalorder %v285, %v358
    %vm614 = vcmp.eq.s32.totalorder %v298, %v358
    %vm615 = vcmp.eq.s32.totalorder %v259, %v362
    %vm616 = vcmp.eq.s32.totalorder %v272, %v362
    %vm617 = vcmp.eq.s32.totalorder %v285, %v362
    %vm618 = vcmp.eq.s32.totalorder %v298, %v362
    %vm619 = vcmp.eq.s32.totalorder %v259, %v366
    %vm620 = vcmp.eq.s32.totalorder %v272, %v366
    %vm621 = vcmp.eq.s32.totalorder %v285, %v366
    %vm622 = vcmp.eq.s32.totalorder %v298, %v366
    %vm623 = vcmp.eq.s32.totalorder %v259, %v370
    %vm624 = vcmp.eq.s32.totalorder %v272, %v370
    %vm625 = vcmp.eq.s32.totalorder %v285, %v370
    %vm626 = vcmp.eq.s32.totalorder %v298, %v370
    %vm627 = vcmp.eq.s32.totalorder %v259, %v374
    %vm628 = vcmp.eq.s32.totalorder %v272, %v374
    %vm629 = vcmp.eq.s32.totalorder %v285, %v374
    %vm630 = vcmp.eq.s32.totalorder %v298, %v374
    %vm631 = vcmp.eq.s32.totalorder %v259, %v378
    %vm632 = vcmp.eq.s32.totalorder %v272, %v378
    %vm633 = vcmp.eq.s32.totalorder %v285, %v378
    %vm634 = vcmp.eq.s32.totalorder %v298, %v378
    %vm635 = vcmp.eq.s32.totalorder %v259, %v382
    %vm636 = vcmp.eq.s32.totalorder %v272, %v382
    %vm637 = vcmp.eq.s32.totalorder %v285, %v382
    %vm638 = vcmp.eq.s32.totalorder %v298, %v382
    %vm639 = vcmp.eq.s32.totalorder %v259, %v386
    %vm640 = vcmp.eq.s32.totalorder %v272, %v386
    %vm641 = vcmp.eq.s32.totalorder %v285, %v386
    %vm642 = vcmp.eq.s32.totalorder %v298, %v386
    %vm643 = vcmp.eq.s32.totalorder %v259, %v390
    %vm644 = vcmp.eq.s32.totalorder %v272, %v390
    %vm645 = vcmp.eq.s32.totalorder %v285, %v390
    %vm646 = vcmp.eq.s32.totalorder %v298, %v390
    %vm647 = vcmp.eq.s32.totalorder %v259, %v394
    %vm648 = vcmp.eq.s32.totalorder %v272, %v394
    %vm649 = vcmp.eq.s32.totalorder %v285, %v394
    %vm650 = vcmp.eq.s32.totalorder %v298, %v394
    %vm651 = vcmp.eq.s32.totalorder %v259, %v398
    %vm652 = vcmp.eq.s32.totalorder %v272, %v398
    %vm653 = vcmp.eq.s32.totalorder %v285, %v398
    %vm654 = vcmp.eq.s32.totalorder %v298, %v398
    %vm655 = vcmp.eq.s32.totalorder %v259, %v402
    %vm656 = vcmp.eq.s32.totalorder %v272, %v402
    %vm657 = vcmp.eq.s32.totalorder %v285, %v402
    %vm658 = vcmp.eq.s32.totalorder %v298, %v402
    %vm659 = vcmp.eq.s32.totalorder %v259, %v406
    %vm660 = vcmp.eq.s32.totalorder %v272, %v406
    %vm661 = vcmp.eq.s32.totalorder %v285, %v406
    %vm662 = vcmp.eq.s32.totalorder %v298, %v406
    %vm663 = vcmp.eq.s32.totalorder %v259, %v410
    %vm664 = vcmp.eq.s32.totalorder %v272, %v410
    %vm665 = vcmp.eq.s32.totalorder %v285, %v410
    %vm666 = vcmp.eq.s32.totalorder %v298, %v410
    %vm667 = vcmp.eq.s32.totalorder %v259, %v414
    %vm668 = vcmp.eq.s32.totalorder %v272, %v414
    %vm669 = vcmp.eq.s32.totalorder %v285, %v414
    %vm670 = vcmp.eq.s32.totalorder %v298, %v414
    %vm671 = vcmp.eq.s32.totalorder %v259, %v418
    %vm672 = vcmp.eq.s32.totalorder %v272, %v418
    %vm673 = vcmp.eq.s32.totalorder %v285, %v418
    %vm674 = vcmp.eq.s32.totalorder %v298, %v418
    %vm675 = vcmp.eq.s32.totalorder %v259, %v422
    %vm676 = vcmp.eq.s32.totalorder %v272, %v422
    %vm677 = vcmp.eq.s32.totalorder %v285, %v422
    %vm678 = vcmp.eq.s32.totalorder %v298, %v422
    %vm679 = vcmp.eq.s32.totalorder %v259, %v426
    %vm680 = vcmp.eq.s32.totalorder %v272, %v426
    %vm681 = vcmp.eq.s32.totalorder %v285, %v426
    %vm682 = vcmp.eq.s32.totalorder %v298, %v426
    %684 = vbcast.lane.b32.xlu0 %v143, 256
    %v685 = vpop.permute.xlu0 %684
    %s687 = sor.u32 256, 8
    %688 = vbcast.lane.b32.xlu0 %v143, %s687
    %v689 = vpop.permute.xlu0 %688
    %s691 = sor.u32 256, 16
    %692 = vbcast.lane.b32.xlu0 %v143, %s691
    %v693 = vpop.permute.xlu0 %692
    %s695 = sor.u32 256, 24
    %696 = vbcast.lane.b32.xlu0 %v143, %s695
    %v697 = vpop.permute.xlu0 %696
    %699 = vbcast.lane.b32.xlu0 %v147, 256
    %v700 = vpop.permute.xlu0 %699
    %s702 = sor.u32 256, 8
    %703 = vbcast.lane.b32.xlu0 %v147, %s702
    %v704 = vpop.permute.xlu0 %703
    %s706 = sor.u32 256, 16
    %707 = vbcast.lane.b32.xlu0 %v147, %s706
    %v708 = vpop.permute.xlu0 %707
    %s710 = sor.u32 256, 24
    %711 = vbcast.lane.b32.xlu0 %v147, %s710
    %v712 = vpop.permute.xlu0 %711
    %v721 = vsel %vm427, %v685, 0.0
    %v722 = vsel %vm428, %v689, 0.0
    %v723 = vsel %vm429, %v693, 0.0
    %v724 = vsel %vm430, %v697, 0.0
    %v725 = vsel %vm431, %v685, 0.0
    %v726 = vsel %vm432, %v689, 0.0
    %v727 = vsel %vm433, %v693, 0.0
    %v728 = vsel %vm434, %v697, 0.0
    %v729 = vsel %vm435, %v685, 0.0
    %v730 = vsel %vm436, %v689, 0.0
    %v731 = vsel %vm437, %v693, 0.0
    %v732 = vsel %vm438, %v697, 0.0
    %v733 = vsel %vm439, %v685, 0.0
    %v734 = vsel %vm440, %v689, 0.0
    %v735 = vsel %vm441, %v693, 0.0
    %v736 = vsel %vm442, %v697, 0.0
    %v737 = vsel %vm443, %v685, 0.0
    %v738 = vsel %vm444, %v689, 0.0
    %v739 = vsel %vm445, %v693, 0.0
    %v740 = vsel %vm446, %v697, 0.0
    %v741 = vsel %vm447, %v685, 0.0
    %v742 = vsel %vm448, %v689, 0.0
    %v743 = vsel %vm449, %v693, 0.0
    %v744 = vsel %vm450, %v697, 0.0
    %v745 = vsel %vm451, %v685, 0.0
    %v746 = vsel %vm452, %v689, 0.0
    %v747 = vsel %vm453, %v693, 0.0
    %v748 = vsel %vm454, %v697, 0.0
    %v749 = vsel %vm455, %v685, 0.0
    %v750 = vsel %vm456, %v689, 0.0
    %v751 = vsel %vm457, %v693, 0.0
    %v752 = vsel %vm458, %v697, 0.0
    %v753 = vsel %vm459, %v685, 0.0
    %v754 = vsel %vm460, %v689, 0.0
    %v755 = vsel %vm461, %v693, 0.0
    %v756 = vsel %vm462, %v697, 0.0
    %v757 = vsel %vm463, %v685, 0.0
    %v758 = vsel %vm464, %v689, 0.0
    %v759 = vsel %vm465, %v693, 0.0
    %v760 = vsel %vm466, %v697, 0.0
    %v761 = vsel %vm467, %v685, 0.0
    %v762 = vsel %vm468, %v689, 0.0
    %v763 = vsel %vm469, %v693, 0.0
    %v764 = vsel %vm470, %v697, 0.0
    %v765 = vsel %vm471, %v685, 0.0
    %v766 = vsel %vm472, %v689, 0.0
    %v767 = vsel %vm473, %v693, 0.0
    %v768 = vsel %vm474, %v697, 0.0
    %v769 = vsel %vm475, %v685, 0.0
    %v770 = vsel %vm476, %v689, 0.0
    %v771 = vsel %vm477, %v693, 0.0
    %v772 = vsel %vm478, %v697, 0.0
    %v773 = vsel %vm479, %v685, 0.0
    %v774 = vsel %vm480, %v689, 0.0
    %v775 = vsel %vm481, %v693, 0.0
    %v776 = vsel %vm482, %v697, 0.0
    %v777 = vsel %vm483, %v685, 0.0
    %v778 = vsel %vm484, %v689, 0.0
    %v779 = vsel %vm485, %v693, 0.0
    %v780 = vsel %vm486, %v697, 0.0
    %v781 = vsel %vm487, %v685, 0.0
    %v782 = vsel %vm488, %v689, 0.0
    %v783 = vsel %vm489, %v693, 0.0
    %v784 = vsel %vm490, %v697, 0.0
    %v785 = vsel %vm491, %v685, 0.0
    %v786 = vsel %vm492, %v689, 0.0
    %v787 = vsel %vm493, %v693, 0.0
    %v788 = vsel %vm494, %v697, 0.0
    %v789 = vsel %vm495, %v685, 0.0
    %v790 = vsel %vm496, %v689, 0.0
    %v791 = vsel %vm497, %v693, 0.0
    %v792 = vsel %vm498, %v697, 0.0
    %v793 = vsel %vm499, %v685, 0.0
    %v794 = vsel %vm500, %v689, 0.0
    %v795 = vsel %vm501, %v693, 0.0
    %v796 = vsel %vm502, %v697, 0.0
    %v797 = vsel %vm503, %v685, 0.0
    %v798 = vsel %vm504, %v689, 0.0
    %v799 = vsel %vm505, %v693, 0.0
    %v800 = vsel %vm506, %v697, 0.0
    %v801 = vsel %vm507, %v685, 0.0
    %v802 = vsel %vm508, %v689, 0.0
    %v803 = vsel %vm509, %v693, 0.0
    %v804 = vsel %vm510, %v697, 0.0
    %v805 = vsel %vm511, %v685, 0.0
    %v806 = vsel %vm512, %v689, 0.0
    %v807 = vsel %vm513, %v693, 0.0
    %v808 = vsel %vm514, %v697, 0.0
    %v809 = vsel %vm515, %v685, 0.0
    %v810 = vsel %vm516, %v689, 0.0
    %v811 = vsel %vm517, %v693, 0.0
    %v812 = vsel %vm518, %v697, 0.0
    %v813 = vsel %vm519, %v685, 0.0
    %v814 = vsel %vm520, %v689, 0.0
    %v815 = vsel %vm521, %v693, 0.0
    %v816 = vsel %vm522, %v697, 0.0
    %v817 = vsel %vm523, %v685, 0.0
    %v818 = vsel %vm524, %v689, 0.0
    %v819 = vsel %vm525, %v693, 0.0
    %v820 = vsel %vm526, %v697, 0.0
    %v821 = vsel %vm527, %v685, 0.0
    %v822 = vsel %vm528, %v689, 0.0
    %v823 = vsel %vm529, %v693, 0.0
    %v824 = vsel %vm530, %v697, 0.0
    %v825 = vsel %vm531, %v685, 0.0
    %v826 = vsel %vm532, %v689, 0.0
    %v827 = vsel %vm533, %v693, 0.0
    %v828 = vsel %vm534, %v697, 0.0
    %v829 = vsel %vm535, %v685, 0.0
    %v830 = vsel %vm536, %v689, 0.0
    %v831 = vsel %vm537, %v693, 0.0
    %v832 = vsel %vm538, %v697, 0.0
    %v833 = vsel %vm539, %v685, 0.0
    %v834 = vsel %vm540, %v689, 0.0
    %v835 = vsel %vm541, %v693, 0.0
    %v836 = vsel %vm542, %v697, 0.0
    %v837 = vsel %vm543, %v685, 0.0
    %v838 = vsel %vm544, %v689, 0.0
    %v839 = vsel %vm545, %v693, 0.0
    %v840 = vsel %vm546, %v697, 0.0
    %v841 = vsel %vm547, %v685, 0.0
    %v842 = vsel %vm548, %v689, 0.0
    %v843 = vsel %vm549, %v693, 0.0
    %v844 = vsel %vm550, %v697, 0.0
    %v845 = vsel %vm551, %v685, 0.0
    %v846 = vsel %vm552, %v689, 0.0
    %v847 = vsel %vm553, %v693, 0.0
    %v848 = vsel %vm554, %v697, 0.0
    %v849 = vsel %vm555, %v700, 0.0
    %v850 = vsel %vm556, %v704, 0.0
    %v851 = vsel %vm557, %v708, 0.0
    %v852 = vsel %vm558, %v712, 0.0
    %v853 = vsel %vm559, %v700, 0.0
    %v854 = vsel %vm560, %v704, 0.0
    %v855 = vsel %vm561, %v708, 0.0
    %v856 = vsel %vm562, %v712, 0.0
    %v857 = vsel %vm563, %v700, 0.0
    %v858 = vsel %vm564, %v704, 0.0
    %v859 = vsel %vm565, %v708, 0.0
    %v860 = vsel %vm566, %v712, 0.0
    %v861 = vsel %vm567, %v700, 0.0
    %v862 = vsel %vm568, %v704, 0.0
    %v863 = vsel %vm569, %v708, 0.0
    %v864 = vsel %vm570, %v712, 0.0
    %v865 = vsel %vm571, %v700, 0.0
    %v866 = vsel %vm572, %v704, 0.0
    %v867 = vsel %vm573, %v708, 0.0
    %v868 = vsel %vm574, %v712, 0.0
    %v869 = vsel %vm575, %v700, 0.0
    %v870 = vsel %vm576, %v704, 0.0
    %v871 = vsel %vm577, %v708, 0.0
    %v872 = vsel %vm578, %v712, 0.0
    %v873 = vsel %vm579, %v700, 0.0
    %v874 = vsel %vm580, %v704, 0.0
    %v875 = vsel %vm581, %v708, 0.0
    %v876 = vsel %vm582, %v712, 0.0
    %v877 = vsel %vm583, %v700, 0.0
    %v878 = vsel %vm584, %v704, 0.0
    %v879 = vsel %vm585, %v708, 0.0
    %v880 = vsel %vm586, %v712, 0.0
    %v881 = vsel %vm587, %v700, 0.0
    %v882 = vsel %vm588, %v704, 0.0
    %v883 = vsel %vm589, %v708, 0.0
    %v884 = vsel %vm590, %v712, 0.0
    %v885 = vsel %vm591, %v700, 0.0
    %v886 = vsel %vm592, %v704, 0.0
    %v887 = vsel %vm593, %v708, 0.0
    %v888 = vsel %vm594, %v712, 0.0
    %v889 = vsel %vm595, %v700, 0.0
    %v890 = vsel %vm596, %v704, 0.0
    %v891 = vsel %vm597, %v708, 0.0
    %v892 = vsel %vm598, %v712, 0.0
    %v893 = vsel %vm599, %v700, 0.0
    %v894 = vsel %vm600, %v704, 0.0
    %v895 = vsel %vm601, %v708, 0.0
    %v896 = vsel %vm602, %v712, 0.0
    %v897 = vsel %vm603, %v700, 0.0
    %v898 = vsel %vm604, %v704, 0.0
    %v899 = vsel %vm605, %v708, 0.0
    %v900 = vsel %vm606, %v712, 0.0
    %v901 = vsel %vm607, %v700, 0.0
    %v902 = vsel %vm608, %v704, 0.0
    %v903 = vsel %vm609, %v708, 0.0
    %v904 = vsel %vm610, %v712, 0.0
    %v905 = vsel %vm611, %v700, 0.0
    %v906 = vsel %vm612, %v704, 0.0
    %v907 = vsel %vm613, %v708, 0.0
    %v908 = vsel %vm614, %v712, 0.0
    %v909 = vsel %vm615, %v700, 0.0
    %v910 = vsel %vm616, %v704, 0.0
    %v911 = vsel %vm617, %v708, 0.0
    %v912 = vsel %vm618, %v712, 0.0
    %v913 = vsel %vm619, %v700, 0.0
    %v914 = vsel %vm620, %v704, 0.0
    %v915 = vsel %vm621, %v708, 0.0
    %v916 = vsel %vm622, %v712, 0.0
    %v917 = vsel %vm623, %v700, 0.0
    %v918 = vsel %vm624, %v704, 0.0
    %v919 = vsel %vm625, %v708, 0.0
    %v920 = vsel %vm626, %v712, 0.0
    %v921 = vsel %vm627, %v700, 0.0
    %v922 = vsel %vm628, %v704, 0.0
    %v923 = vsel %vm629, %v708, 0.0
    %v924 = vsel %vm630, %v712, 0.0
    %v925 = vsel %vm631, %v700, 0.0
    %v926 = vsel %vm632, %v704, 0.0
    %v927 = vsel %vm633, %v708, 0.0
    %v928 = vsel %vm634, %v712, 0.0
    %v929 = vsel %vm635, %v700, 0.0
    %v930 = vsel %vm636, %v704, 0.0
    %v931 = vsel %vm637, %v708, 0.0
    %v932 = vsel %vm638, %v712, 0.0
    %v933 = vsel %vm639, %v700, 0.0
    %v934 = vsel %vm640, %v704, 0.0
    %v935 = vsel %vm641, %v708, 0.0
    %v936 = vsel %vm642, %v712, 0.0
    %v937 = vsel %vm643, %v700, 0.0
    %v938 = vsel %vm644, %v704, 0.0
    %v939 = vsel %vm645, %v708, 0.0
    %v940 = vsel %vm646, %v712, 0.0
    %v941 = vsel %vm647, %v700, 0.0
    %v942 = vsel %vm648, %v704, 0.0
    %v943 = vsel %vm649, %v708, 0.0
    %v944 = vsel %vm650, %v712, 0.0
    %v945 = vsel %vm651, %v700, 0.0
    %v946 = vsel %vm652, %v704, 0.0
    %v947 = vsel %vm653, %v708, 0.0
    %v948 = vsel %vm654, %v712, 0.0
    %v949 = vsel %vm655, %v700, 0.0
    %v950 = vsel %vm656, %v704, 0.0
    %v951 = vsel %vm657, %v708, 0.0
    %v952 = vsel %vm658, %v712, 0.0
    %v953 = vsel %vm659, %v700, 0.0
    %v954 = vsel %vm660, %v704, 0.0
    %v955 = vsel %vm661, %v708, 0.0
    %v956 = vsel %vm662, %v712, 0.0
    %v957 = vsel %vm663, %v700, 0.0
    %v958 = vsel %vm664, %v704, 0.0
    %v959 = vsel %vm665, %v708, 0.0
    %v960 = vsel %vm666, %v712, 0.0
    %v961 = vsel %vm667, %v700, 0.0
    %v962 = vsel %vm668, %v704, 0.0
    %v963 = vsel %vm669, %v708, 0.0
    %v964 = vsel %vm670, %v712, 0.0
    %v965 = vsel %vm671, %v700, 0.0
    %v966 = vsel %vm672, %v704, 0.0
    %v967 = vsel %vm673, %v708, 0.0
    %v968 = vsel %vm674, %v712, 0.0
    %v969 = vsel %vm675, %v700, 0.0
    %v970 = vsel %vm676, %v704, 0.0
    %v971 = vsel %vm677, %v708, 0.0
    %v972 = vsel %vm678, %v712, 0.0
    %v973 = vsel %vm679, %v700, 0.0
    %v974 = vsel %vm680, %v704, 0.0
    %v975 = vsel %vm681, %v708, 0.0
    %v976 = vsel %vm682, %v712, 0.0
    %1233 = vset.pattern.permute.xlu0 0
    %1234 = vperm.xlu0 %1233, %v721
    %v1235 = vpop.permute.xlu0 %1234
    %1236 = vset.pattern.permute.xlu0 0
    %1237 = vperm.xlu0 %1236, %v722
    %v1238 = vpop.permute.xlu0 %1237
    %1239 = vset.pattern.permute.xlu0 0
    %1240 = vperm.xlu0 %1239, %v723
    %v1241 = vpop.permute.xlu0 %1240
    %1242 = vset.pattern.permute.xlu0 0
    %1243 = vperm.xlu0 %1242, %v724
    %v1244 = vpop.permute.xlu0 %1243
    %1245 = vset.pattern.permute.xlu0 0
    %1246 = vperm.xlu0 %1245, %v725
    %v1247 = vpop.permute.xlu0 %1246
    %1248 = vset.pattern.permute.xlu0 0
    %1249 = vperm.xlu0 %1248, %v726
    %v1250 = vpop.permute.xlu0 %1249
    %1251 = vset.pattern.permute.xlu0 0
    %1252 = vperm.xlu0 %1251, %v727
    %v1253 = vpop.permute.xlu0 %1252
    %1254 = vset.pattern.permute.xlu0 0
    %1255 = vperm.xlu0 %1254, %v728
    %v1256 = vpop.permute.xlu0 %1255
    %1257 = vset.pattern.permute.xlu0 0
    %1258 = vperm.xlu0 %1257, %v729
    %v1259 = vpop.permute.xlu0 %1258
    %1260 = vset.pattern.permute.xlu0 0
    %1261 = vperm.xlu0 %1260, %v730
    %v1262 = vpop.permute.xlu0 %1261
    %1263 = vset.pattern.permute.xlu0 0
    %1264 = vperm.xlu0 %1263, %v731
    %v1265 = vpop.permute.xlu0 %1264
    %1266 = vset.pattern.permute.xlu0 0
    %1267 = vperm.xlu0 %1266, %v732
    %v1268 = vpop.permute.xlu0 %1267
    %1269 = vset.pattern.permute.xlu0 0
    %1270 = vperm.xlu0 %1269, %v733
    %v1271 = vpop.permute.xlu0 %1270
    %1272 = vset.pattern.permute.xlu0 0
    %1273 = vperm.xlu0 %1272, %v734
    %v1274 = vpop.permute.xlu0 %1273
    %1275 = vset.pattern.permute.xlu0 0
    %1276 = vperm.xlu0 %1275, %v735
    %v1277 = vpop.permute.xlu0 %1276
    %1278 = vset.pattern.permute.xlu0 0
    %1279 = vperm.xlu0 %1278, %v736
    %v1280 = vpop.permute.xlu0 %1279
    %1281 = vset.pattern.permute.xlu0 0
    %1282 = vperm.xlu0 %1281, %v737
    %v1283 = vpop.permute.xlu0 %1282
    %1284 = vset.pattern.permute.xlu0 0
    %1285 = vperm.xlu0 %1284, %v738
    %v1286 = vpop.permute.xlu0 %1285
    %1287 = vset.pattern.permute.xlu0 0
    %1288 = vperm.xlu0 %1287, %v739
    %v1289 = vpop.permute.xlu0 %1288
    %1290 = vset.pattern.permute.xlu0 0
    %1291 = vperm.xlu0 %1290, %v740
    %v1292 = vpop.permute.xlu0 %1291
    %1293 = vset.pattern.permute.xlu0 0
    %1294 = vperm.xlu0 %1293, %v741
    %v1295 = vpop.permute.xlu0 %1294
    %1296 = vset.pattern.permute.xlu0 0
    %1297 = vperm.xlu0 %1296, %v742
    %v1298 = vpop.permute.xlu0 %1297
    %1299 = vset.pattern.permute.xlu0 0
    %1300 = vperm.xlu0 %1299, %v743
    %v1301 = vpop.permute.xlu0 %1300
    %1302 = vset.pattern.permute.xlu0 0
    %1303 = vperm.xlu0 %1302, %v744
    %v1304 = vpop.permute.xlu0 %1303
    %1305 = vset.pattern.permute.xlu0 0
    %1306 = vperm.xlu0 %1305, %v745
    %v1307 = vpop.permute.xlu0 %1306
    %1308 = vset.pattern.permute.xlu0 0
    %1309 = vperm.xlu0 %1308, %v746
    %v1310 = vpop.permute.xlu0 %1309
    %1311 = vset.pattern.permute.xlu0 0
    %1312 = vperm.xlu0 %1311, %v747
    %v1313 = vpop.permute.xlu0 %1312
    %1314 = vset.pattern.permute.xlu0 0
    %1315 = vperm.xlu0 %1314, %v748
    %v1316 = vpop.permute.xlu0 %1315
    %1317 = vset.pattern.permute.xlu0 0
    %1318 = vperm.xlu0 %1317, %v749
    %v1319 = vpop.permute.xlu0 %1318
    %1320 = vset.pattern.permute.xlu0 0
    %1321 = vperm.xlu0 %1320, %v750
    %v1322 = vpop.permute.xlu0 %1321
    %1323 = vset.pattern.permute.xlu0 0
    %1324 = vperm.xlu0 %1323, %v751
    %v1325 = vpop.permute.xlu0 %1324
    %1326 = vset.pattern.permute.xlu0 0
    %1327 = vperm.xlu0 %1326, %v752
    %v1328 = vpop.permute.xlu0 %1327
    %1329 = vset.pattern.permute.xlu0 0
    %1330 = vperm.xlu0 %1329, %v753
    %v1331 = vpop.permute.xlu0 %1330
    %1332 = vset.pattern.permute.xlu0 0
    %1333 = vperm.xlu0 %1332, %v754
    %v1334 = vpop.permute.xlu0 %1333
    %1335 = vset.pattern.permute.xlu0 0
    %1336 = vperm.xlu0 %1335, %v755
    %v1337 = vpop.permute.xlu0 %1336
    %1338 = vset.pattern.permute.xlu0 0
    %1339 = vperm.xlu0 %1338, %v756
    %v1340 = vpop.permute.xlu0 %1339
    %1341 = vset.pattern.permute.xlu0 0
    %1342 = vperm.xlu0 %1341, %v757
    %v1343 = vpop.permute.xlu0 %1342
    %1344 = vset.pattern.permute.xlu0 0
    %1345 = vperm.xlu0 %1344, %v758
    %v1346 = vpop.permute.xlu0 %1345
    %1347 = vset.pattern.permute.xlu0 0
    %1348 = vperm.xlu0 %1347, %v759
    %v1349 = vpop.permute.xlu0 %1348
    %1350 = vset.pattern.permute.xlu0 0
    %1351 = vperm.xlu0 %1350, %v760
    %v1352 = vpop.permute.xlu0 %1351
    %1353 = vset.pattern.permute.xlu0 0
    %1354 = vperm.xlu0 %1353, %v761
    %v1355 = vpop.permute.xlu0 %1354
    %1356 = vset.pattern.permute.xlu0 0
    %1357 = vperm.xlu0 %1356, %v762
    %v1358 = vpop.permute.xlu0 %1357
    %1359 = vset.pattern.permute.xlu0 0
    %1360 = vperm.xlu0 %1359, %v763
    %v1361 = vpop.permute.xlu0 %1360
    %1362 = vset.pattern.permute.xlu0 0
    %1363 = vperm.xlu0 %1362, %v764
    %v1364 = vpop.permute.xlu0 %1363
    %1365 = vset.pattern.permute.xlu0 0
    %1366 = vperm.xlu0 %1365, %v765
    %v1367 = vpop.permute.xlu0 %1366
    %1368 = vset.pattern.permute.xlu0 0
    %1369 = vperm.xlu0 %1368, %v766
    %v1370 = vpop.permute.xlu0 %1369
    %1371 = vset.pattern.permute.xlu0 0
    %1372 = vperm.xlu0 %1371, %v767
    %v1373 = vpop.permute.xlu0 %1372
    %1374 = vset.pattern.permute.xlu0 0
    %1375 = vperm.xlu0 %1374, %v768
    %v1376 = vpop.permute.xlu0 %1375
    %1377 = vset.pattern.permute.xlu0 0
    %1378 = vperm.xlu0 %1377, %v769
    %v1379 = vpop.permute.xlu0 %1378
    %1380 = vset.pattern.permute.xlu0 0
    %1381 = vperm.xlu0 %1380, %v770
    %v1382 = vpop.permute.xlu0 %1381
    %1383 = vset.pattern.permute.xlu0 0
    %1384 = vperm.xlu0 %1383, %v771
    %v1385 = vpop.permute.xlu0 %1384
    %1386 = vset.pattern.permute.xlu0 0
    %1387 = vperm.xlu0 %1386, %v772
    %v1388 = vpop.permute.xlu0 %1387
    %1389 = vset.pattern.permute.xlu0 0
    %1390 = vperm.xlu0 %1389, %v773
    %v1391 = vpop.permute.xlu0 %1390
    %1392 = vset.pattern.permute.xlu0 0
    %1393 = vperm.xlu0 %1392, %v774
    %v1394 = vpop.permute.xlu0 %1393
    %1395 = vset.pattern.permute.xlu0 0
    %1396 = vperm.xlu0 %1395, %v775
    %v1397 = vpop.permute.xlu0 %1396
    %1398 = vset.pattern.permute.xlu0 0
    %1399 = vperm.xlu0 %1398, %v776
    %v1400 = vpop.permute.xlu0 %1399
    %1401 = vset.pattern.permute.xlu0 0
    %1402 = vperm.xlu0 %1401, %v777
    %v1403 = vpop.permute.xlu0 %1402
    %1404 = vset.pattern.permute.xlu0 0
    %1405 = vperm.xlu0 %1404, %v778
    %v1406 = vpop.permute.xlu0 %1405
    %1407 = vset.pattern.permute.xlu0 0
    %1408 = vperm.xlu0 %1407, %v779
    %v1409 = vpop.permute.xlu0 %1408
    %1410 = vset.pattern.permute.xlu0 0
    %1411 = vperm.xlu0 %1410, %v780
    %v1412 = vpop.permute.xlu0 %1411
    %1413 = vset.pattern.permute.xlu0 0
    %1414 = vperm.xlu0 %1413, %v781
    %v1415 = vpop.permute.xlu0 %1414
    %1416 = vset.pattern.permute.xlu0 0
    %1417 = vperm.xlu0 %1416, %v782
    %v1418 = vpop.permute.xlu0 %1417
    %1419 = vset.pattern.permute.xlu0 0
    %1420 = vperm.xlu0 %1419, %v783
    %v1421 = vpop.permute.xlu0 %1420
    %1422 = vset.pattern.permute.xlu0 0
    %1423 = vperm.xlu0 %1422, %v784
    %v1424 = vpop.permute.xlu0 %1423
    %1425 = vset.pattern.permute.xlu0 0
    %1426 = vperm.xlu0 %1425, %v785
    %v1427 = vpop.permute.xlu0 %1426
    %1428 = vset.pattern.permute.xlu0 0
    %1429 = vperm.xlu0 %1428, %v786
    %v1430 = vpop.permute.xlu0 %1429
    %1431 = vset.pattern.permute.xlu0 0
    %1432 = vperm.xlu0 %1431, %v787
    %v1433 = vpop.permute.xlu0 %1432
    %1434 = vset.pattern.permute.xlu0 0
    %1435 = vperm.xlu0 %1434, %v788
    %v1436 = vpop.permute.xlu0 %1435
    %1437 = vset.pattern.permute.xlu0 0
    %1438 = vperm.xlu0 %1437, %v789
    %v1439 = vpop.permute.xlu0 %1438
    %1440 = vset.pattern.permute.xlu0 0
    %1441 = vperm.xlu0 %1440, %v790
    %v1442 = vpop.permute.xlu0 %1441
    %1443 = vset.pattern.permute.xlu0 0
    %1444 = vperm.xlu0 %1443, %v791
    %v1445 = vpop.permute.xlu0 %1444
    %1446 = vset.pattern.permute.xlu0 0
    %1447 = vperm.xlu0 %1446, %v792
    %v1448 = vpop.permute.xlu0 %1447
    %1449 = vset.pattern.permute.xlu0 0
    %1450 = vperm.xlu0 %1449, %v793
    %v1451 = vpop.permute.xlu0 %1450
    %1452 = vset.pattern.permute.xlu0 0
    %1453 = vperm.xlu0 %1452, %v794
    %v1454 = vpop.permute.xlu0 %1453
    %1455 = vset.pattern.permute.xlu0 0
    %1456 = vperm.xlu0 %1455, %v795
    %v1457 = vpop.permute.xlu0 %1456
    %1458 = vset.pattern.permute.xlu0 0
    %1459 = vperm.xlu0 %1458, %v796
    %v1460 = vpop.permute.xlu0 %1459
    %1461 = vset.pattern.permute.xlu0 0
    %1462 = vperm.xlu0 %1461, %v797
    %v1463 = vpop.permute.xlu0 %1462
    %1464 = vset.pattern.permute.xlu0 0
    %1465 = vperm.xlu0 %1464, %v798
    %v1466 = vpop.permute.xlu0 %1465
    %1467 = vset.pattern.permute.xlu0 0
    %1468 = vperm.xlu0 %1467, %v799
    %v1469 = vpop.permute.xlu0 %1468
    %1470 = vset.pattern.permute.xlu0 0
    %1471 = vperm.xlu0 %1470, %v800
    %v1472 = vpop.permute.xlu0 %1471
    %1473 = vset.pattern.permute.xlu0 0
    %1474 = vperm.xlu0 %1473, %v801
    %v1475 = vpop.permute.xlu0 %1474
    %1476 = vset.pattern.permute.xlu0 0
    %1477 = vperm.xlu0 %1476, %v802
    %v1478 = vpop.permute.xlu0 %1477
    %1479 = vset.pattern.permute.xlu0 0
    %1480 = vperm.xlu0 %1479, %v803
    %v1481 = vpop.permute.xlu0 %1480
    %1482 = vset.pattern.permute.xlu0 0
    %1483 = vperm.xlu0 %1482, %v804
    %v1484 = vpop.permute.xlu0 %1483
    %1485 = vset.pattern.permute.xlu0 0
    %1486 = vperm.xlu0 %1485, %v805
    %v1487 = vpop.permute.xlu0 %1486
    %1488 = vset.pattern.permute.xlu0 0
    %1489 = vperm.xlu0 %1488, %v806
    %v1490 = vpop.permute.xlu0 %1489
    %1491 = vset.pattern.permute.xlu0 0
    %1492 = vperm.xlu0 %1491, %v807
    %v1493 = vpop.permute.xlu0 %1492
    %1494 = vset.pattern.permute.xlu0 0
    %1495 = vperm.xlu0 %1494, %v808
    %v1496 = vpop.permute.xlu0 %1495
    %1497 = vset.pattern.permute.xlu0 0
    %1498 = vperm.xlu0 %1497, %v809
    %v1499 = vpop.permute.xlu0 %1498
    %1500 = vset.pattern.permute.xlu0 0
    %1501 = vperm.xlu0 %1500, %v810
    %v1502 = vpop.permute.xlu0 %1501
    %1503 = vset.pattern.permute.xlu0 0
    %1504 = vperm.xlu0 %1503, %v811
    %v1505 = vpop.permute.xlu0 %1504
    %1506 = vset.pattern.permute.xlu0 0
    %1507 = vperm.xlu0 %1506, %v812
    %v1508 = vpop.permute.xlu0 %1507
    %1509 = vset.pattern.permute.xlu0 0
    %1510 = vperm.xlu0 %1509, %v813
    %v1511 = vpop.permute.xlu0 %1510
    %1512 = vset.pattern.permute.xlu0 0
    %1513 = vperm.xlu0 %1512, %v814
    %v1514 = vpop.permute.xlu0 %1513
    %1515 = vset.pattern.permute.xlu0 0
    %1516 = vperm.xlu0 %1515, %v815
    %v1517 = vpop.permute.xlu0 %1516
    %1518 = vset.pattern.permute.xlu0 0
    %1519 = vperm.xlu0 %1518, %v816
    %v1520 = vpop.permute.xlu0 %1519
    %1521 = vset.pattern.permute.xlu0 0
    %1522 = vperm.xlu0 %1521, %v817
    %v1523 = vpop.permute.xlu0 %1522
    %1524 = vset.pattern.permute.xlu0 0
    %1525 = vperm.xlu0 %1524, %v818
    %v1526 = vpop.permute.xlu0 %1525
    %1527 = vset.pattern.permute.xlu0 0
    %1528 = vperm.xlu0 %1527, %v819
    %v1529 = vpop.permute.xlu0 %1528
    %1530 = vset.pattern.permute.xlu0 0
    %1531 = vperm.xlu0 %1530, %v820
    %v1532 = vpop.permute.xlu0 %1531
    %1533 = vset.pattern.permute.xlu0 0
    %1534 = vperm.xlu0 %1533, %v821
    %v1535 = vpop.permute.xlu0 %1534
    %1536 = vset.pattern.permute.xlu0 0
    %1537 = vperm.xlu0 %1536, %v822
    %v1538 = vpop.permute.xlu0 %1537
    %1539 = vset.pattern.permute.xlu0 0
    %1540 = vperm.xlu0 %1539, %v823
    %v1541 = vpop.permute.xlu0 %1540
    %1542 = vset.pattern.permute.xlu0 0
    %1543 = vperm.xlu0 %1542, %v824
    %v1544 = vpop.permute.xlu0 %1543
    %1545 = vset.pattern.permute.xlu0 0
    %1546 = vperm.xlu0 %1545, %v825
    %v1547 = vpop.permute.xlu0 %1546
    %1548 = vset.pattern.permute.xlu0 0
    %1549 = vperm.xlu0 %1548, %v826
    %v1550 = vpop.permute.xlu0 %1549
    %1551 = vset.pattern.permute.xlu0 0
    %1552 = vperm.xlu0 %1551, %v827
    %v1553 = vpop.permute.xlu0 %1552
    %1554 = vset.pattern.permute.xlu0 0
    %1555 = vperm.xlu0 %1554, %v828
    %v1556 = vpop.permute.xlu0 %1555
    %1557 = vset.pattern.permute.xlu0 0
    %1558 = vperm.xlu0 %1557, %v829
    %v1559 = vpop.permute.xlu0 %1558
    %1560 = vset.pattern.permute.xlu0 0
    %1561 = vperm.xlu0 %1560, %v830
    %v1562 = vpop.permute.xlu0 %1561
    %1563 = vset.pattern.permute.xlu0 0
    %1564 = vperm.xlu0 %1563, %v831
    %v1565 = vpop.permute.xlu0 %1564
    %1566 = vset.pattern.permute.xlu0 0
    %1567 = vperm.xlu0 %1566, %v832
    %v1568 = vpop.permute.xlu0 %1567
    %1569 = vset.pattern.permute.xlu0 0
    %1570 = vperm.xlu0 %1569, %v833
    %v1571 = vpop.permute.xlu0 %1570
    %1572 = vset.pattern.permute.xlu0 0
    %1573 = vperm.xlu0 %1572, %v834
    %v1574 = vpop.permute.xlu0 %1573
    %1575 = vset.pattern.permute.xlu0 0
    %1576 = vperm.xlu0 %1575, %v835
    %v1577 = vpop.permute.xlu0 %1576
    %1578 = vset.pattern.permute.xlu0 0
    %1579 = vperm.xlu0 %1578, %v836
    %v1580 = vpop.permute.xlu0 %1579
    %1581 = vset.pattern.permute.xlu0 0
    %1582 = vperm.xlu0 %1581, %v837
    %v1583 = vpop.permute.xlu0 %1582
    %1584 = vset.pattern.permute.xlu0 0
    %1585 = vperm.xlu0 %1584, %v838
    %v1586 = vpop.permute.xlu0 %1585
    %1587 = vset.pattern.permute.xlu0 0
    %1588 = vperm.xlu0 %1587, %v839
    %v1589 = vpop.permute.xlu0 %1588
    %1590 = vset.pattern.permute.xlu0 0
    %1591 = vperm.xlu0 %1590, %v840
    %v1592 = vpop.permute.xlu0 %1591
    %1593 = vset.pattern.permute.xlu0 0
    %1594 = vperm.xlu0 %1593, %v841
    %v1595 = vpop.permute.xlu0 %1594
    %1596 = vset.pattern.permute.xlu0 0
    %1597 = vperm.xlu0 %1596, %v842
    %v1598 = vpop.permute.xlu0 %1597
    %1599 = vset.pattern.permute.xlu0 0
    %1600 = vperm.xlu0 %1599, %v843
    %v1601 = vpop.permute.xlu0 %1600
    %1602 = vset.pattern.permute.xlu0 0
    %1603 = vperm.xlu0 %1602, %v844
    %v1604 = vpop.permute.xlu0 %1603
    %1605 = vset.pattern.permute.xlu0 0
    %1606 = vperm.xlu0 %1605, %v845
    %v1607 = vpop.permute.xlu0 %1606
    %1608 = vset.pattern.permute.xlu0 0
    %1609 = vperm.xlu0 %1608, %v846
    %v1610 = vpop.permute.xlu0 %1609
    %1611 = vset.pattern.permute.xlu0 0
    %1612 = vperm.xlu0 %1611, %v847
    %v1613 = vpop.permute.xlu0 %1612
    %1614 = vset.pattern.permute.xlu0 0
    %1615 = vperm.xlu0 %1614, %v848
    %v1616 = vpop.permute.xlu0 %1615
    %1617 = vset.pattern.permute.xlu0 0
    %1618 = vperm.xlu0 %1617, %v849
    %v1619 = vpop.permute.xlu0 %1618
    %1620 = vset.pattern.permute.xlu0 0
    %1621 = vperm.xlu0 %1620, %v850
    %v1622 = vpop.permute.xlu0 %1621
    %1623 = vset.pattern.permute.xlu0 0
    %1624 = vperm.xlu0 %1623, %v851
    %v1625 = vpop.permute.xlu0 %1624
    %1626 = vset.pattern.permute.xlu0 0
    %1627 = vperm.xlu0 %1626, %v852
    %v1628 = vpop.permute.xlu0 %1627
    %1629 = vset.pattern.permute.xlu0 0
    %1630 = vperm.xlu0 %1629, %v853
    %v1631 = vpop.permute.xlu0 %1630
    %1632 = vset.pattern.permute.xlu0 0
    %1633 = vperm.xlu0 %1632, %v854
    %v1634 = vpop.permute.xlu0 %1633
    %1635 = vset.pattern.permute.xlu0 0
    %1636 = vperm.xlu0 %1635, %v855
    %v1637 = vpop.permute.xlu0 %1636
    %1638 = vset.pattern.permute.xlu0 0
    %1639 = vperm.xlu0 %1638, %v856
    %v1640 = vpop.permute.xlu0 %1639
    %1641 = vset.pattern.permute.xlu0 0
    %1642 = vperm.xlu0 %1641, %v857
    %v1643 = vpop.permute.xlu0 %1642
    %1644 = vset.pattern.permute.xlu0 0
    %1645 = vperm.xlu0 %1644, %v858
    %v1646 = vpop.permute.xlu0 %1645
    %1647 = vset.pattern.permute.xlu0 0
    %1648 = vperm.xlu0 %1647, %v859
    %v1649 = vpop.permute.xlu0 %1648
    %1650 = vset.pattern.permute.xlu0 0
    %1651 = vperm.xlu0 %1650, %v860
    %v1652 = vpop.permute.xlu0 %1651
    %1653 = vset.pattern.permute.xlu0 0
    %1654 = vperm.xlu0 %1653, %v861
    %v1655 = vpop.permute.xlu0 %1654
    %1656 = vset.pattern.permute.xlu0 0
    %1657 = vperm.xlu0 %1656, %v862
    %v1658 = vpop.permute.xlu0 %1657
    %1659 = vset.pattern.permute.xlu0 0
    %1660 = vperm.xlu0 %1659, %v863
    %v1661 = vpop.permute.xlu0 %1660
    %1662 = vset.pattern.permute.xlu0 0
    %1663 = vperm.xlu0 %1662, %v864
    %v1664 = vpop.permute.xlu0 %1663
    %1665 = vset.pattern.permute.xlu0 0
    %1666 = vperm.xlu0 %1665, %v865
    %v1667 = vpop.permute.xlu0 %1666
    %1668 = vset.pattern.permute.xlu0 0
    %1669 = vperm.xlu0 %1668, %v866
    %v1670 = vpop.permute.xlu0 %1669
    %1671 = vset.pattern.permute.xlu0 0
    %1672 = vperm.xlu0 %1671, %v867
    %v1673 = vpop.permute.xlu0 %1672
    %1674 = vset.pattern.permute.xlu0 0
    %1675 = vperm.xlu0 %1674, %v868
    %v1676 = vpop.permute.xlu0 %1675
    %1677 = vset.pattern.permute.xlu0 0
    %1678 = vperm.xlu0 %1677, %v869
    %v1679 = vpop.permute.xlu0 %1678
    %1680 = vset.pattern.permute.xlu0 0
    %1681 = vperm.xlu0 %1680, %v870
    %v1682 = vpop.permute.xlu0 %1681
    %1683 = vset.pattern.permute.xlu0 0
    %1684 = vperm.xlu0 %1683, %v871
    %v1685 = vpop.permute.xlu0 %1684
    %1686 = vset.pattern.permute.xlu0 0
    %1687 = vperm.xlu0 %1686, %v872
    %v1688 = vpop.permute.xlu0 %1687
    %1689 = vset.pattern.permute.xlu0 0
    %1690 = vperm.xlu0 %1689, %v873
    %v1691 = vpop.permute.xlu0 %1690
    %1692 = vset.pattern.permute.xlu0 0
    %1693 = vperm.xlu0 %1692, %v874
    %v1694 = vpop.permute.xlu0 %1693
    %1695 = vset.pattern.permute.xlu0 0
    %1696 = vperm.xlu0 %1695, %v875
    %v1697 = vpop.permute.xlu0 %1696
    %1698 = vset.pattern.permute.xlu0 0
    %1699 = vperm.xlu0 %1698, %v876
    %v1700 = vpop.permute.xlu0 %1699
    %1701 = vset.pattern.permute.xlu0 0
    %1702 = vperm.xlu0 %1701, %v877
    %v1703 = vpop.permute.xlu0 %1702
    %1704 = vset.pattern.permute.xlu0 0
    %1705 = vperm.xlu0 %1704, %v878
    %v1706 = vpop.permute.xlu0 %1705
    %1707 = vset.pattern.permute.xlu0 0
    %1708 = vperm.xlu0 %1707, %v879
    %v1709 = vpop.permute.xlu0 %1708
    %1710 = vset.pattern.permute.xlu0 0
    %1711 = vperm.xlu0 %1710, %v880
    %v1712 = vpop.permute.xlu0 %1711
    %1713 = vset.pattern.permute.xlu0 0
    %1714 = vperm.xlu0 %1713, %v881
    %v1715 = vpop.permute.xlu0 %1714
    %1716 = vset.pattern.permute.xlu0 0
    %1717 = vperm.xlu0 %1716, %v882
    %v1718 = vpop.permute.xlu0 %1717
    %1719 = vset.pattern.permute.xlu0 0
    %1720 = vperm.xlu0 %1719, %v883
    %v1721 = vpop.permute.xlu0 %1720
    %1722 = vset.pattern.permute.xlu0 0
    %1723 = vperm.xlu0 %1722, %v884
    %v1724 = vpop.permute.xlu0 %1723
    %1725 = vset.pattern.permute.xlu0 0
    %1726 = vperm.xlu0 %1725, %v885
    %v1727 = vpop.permute.xlu0 %1726
    %1728 = vset.pattern.permute.xlu0 0
    %1729 = vperm.xlu0 %1728, %v886
    %v1730 = vpop.permute.xlu0 %1729
    %1731 = vset.pattern.permute.xlu0 0
    %1732 = vperm.xlu0 %1731, %v887
    %v1733 = vpop.permute.xlu0 %1732
    %1734 = vset.pattern.permute.xlu0 0
    %1735 = vperm.xlu0 %1734, %v888
    %v1736 = vpop.permute.xlu0 %1735
    %1737 = vset.pattern.permute.xlu0 0
    %1738 = vperm.xlu0 %1737, %v889
    %v1739 = vpop.permute.xlu0 %1738
    %1740 = vset.pattern.permute.xlu0 0
    %1741 = vperm.xlu0 %1740, %v890
    %v1742 = vpop.permute.xlu0 %1741
    %1743 = vset.pattern.permute.xlu0 0
    %1744 = vperm.xlu0 %1743, %v891
    %v1745 = vpop.permute.xlu0 %1744
    %1746 = vset.pattern.permute.xlu0 0
    %1747 = vperm.xlu0 %1746, %v892
    %v1748 = vpop.permute.xlu0 %1747
    %1749 = vset.pattern.permute.xlu0 0
    %1750 = vperm.xlu0 %1749, %v893
    %v1751 = vpop.permute.xlu0 %1750
    %1752 = vset.pattern.permute.xlu0 0
    %1753 = vperm.xlu0 %1752, %v894
    %v1754 = vpop.permute.xlu0 %1753
    %1755 = vset.pattern.permute.xlu0 0
    %1756 = vperm.xlu0 %1755, %v895
    %v1757 = vpop.permute.xlu0 %1756
    %1758 = vset.pattern.permute.xlu0 0
    %1759 = vperm.xlu0 %1758, %v896
    %v1760 = vpop.permute.xlu0 %1759
    %1761 = vset.pattern.permute.xlu0 0
    %1762 = vperm.xlu0 %1761, %v897
    %v1763 = vpop.permute.xlu0 %1762
    %1764 = vset.pattern.permute.xlu0 0
    %1765 = vperm.xlu0 %1764, %v898
    %v1766 = vpop.permute.xlu0 %1765
    %1767 = vset.pattern.permute.xlu0 0
    %1768 = vperm.xlu0 %1767, %v899
    %v1769 = vpop.permute.xlu0 %1768
    %1770 = vset.pattern.permute.xlu0 0
    %1771 = vperm.xlu0 %1770, %v900
    %v1772 = vpop.permute.xlu0 %1771
    %1773 = vset.pattern.permute.xlu0 0
    %1774 = vperm.xlu0 %1773, %v901
    %v1775 = vpop.permute.xlu0 %1774
    %1776 = vset.pattern.permute.xlu0 0
    %1777 = vperm.xlu0 %1776, %v902
    %v1778 = vpop.permute.xlu0 %1777
    %1779 = vset.pattern.permute.xlu0 0
    %1780 = vperm.xlu0 %1779, %v903
    %v1781 = vpop.permute.xlu0 %1780
    %1782 = vset.pattern.permute.xlu0 0
    %1783 = vperm.xlu0 %1782, %v904
    %v1784 = vpop.permute.xlu0 %1783
    %1785 = vset.pattern.permute.xlu0 0
    %1786 = vperm.xlu0 %1785, %v905
    %v1787 = vpop.permute.xlu0 %1786
    %1788 = vset.pattern.permute.xlu0 0
    %1789 = vperm.xlu0 %1788, %v906
    %v1790 = vpop.permute.xlu0 %1789
    %1791 = vset.pattern.permute.xlu0 0
    %1792 = vperm.xlu0 %1791, %v907
    %v1793 = vpop.permute.xlu0 %1792
    %1794 = vset.pattern.permute.xlu0 0
    %1795 = vperm.xlu0 %1794, %v908
    %v1796 = vpop.permute.xlu0 %1795
    %1797 = vset.pattern.permute.xlu0 0
    %1798 = vperm.xlu0 %1797, %v909
    %v1799 = vpop.permute.xlu0 %1798
    %1800 = vset.pattern.permute.xlu0 0
    %1801 = vperm.xlu0 %1800, %v910
    %v1802 = vpop.permute.xlu0 %1801
    %1803 = vset.pattern.permute.xlu0 0
    %1804 = vperm.xlu0 %1803, %v911
    %v1805 = vpop.permute.xlu0 %1804
    %1806 = vset.pattern.permute.xlu0 0
    %1807 = vperm.xlu0 %1806, %v912
    %v1808 = vpop.permute.xlu0 %1807
    %1809 = vset.pattern.permute.xlu0 0
    %1810 = vperm.xlu0 %1809, %v913
    %v1811 = vpop.permute.xlu0 %1810
    %1812 = vset.pattern.permute.xlu0 0
    %1813 = vperm.xlu0 %1812, %v914
    %v1814 = vpop.permute.xlu0 %1813
    %1815 = vset.pattern.permute.xlu0 0
    %1816 = vperm.xlu0 %1815, %v915
    %v1817 = vpop.permute.xlu0 %1816
    %1818 = vset.pattern.permute.xlu0 0
    %1819 = vperm.xlu0 %1818, %v916
    %v1820 = vpop.permute.xlu0 %1819
    %1821 = vset.pattern.permute.xlu0 0
    %1822 = vperm.xlu0 %1821, %v917
    %v1823 = vpop.permute.xlu0 %1822
    %1824 = vset.pattern.permute.xlu0 0
    %1825 = vperm.xlu0 %1824, %v918
    %v1826 = vpop.permute.xlu0 %1825
    %1827 = vset.pattern.permute.xlu0 0
    %1828 = vperm.xlu0 %1827, %v919
    %v1829 = vpop.permute.xlu0 %1828
    %1830 = vset.pattern.permute.xlu0 0
    %1831 = vperm.xlu0 %1830, %v920
    %v1832 = vpop.permute.xlu0 %1831
    %1833 = vset.pattern.permute.xlu0 0
    %1834 = vperm.xlu0 %1833, %v921
    %v1835 = vpop.permute.xlu0 %1834
    %1836 = vset.pattern.permute.xlu0 0
    %1837 = vperm.xlu0 %1836, %v922
    %v1838 = vpop.permute.xlu0 %1837
    %1839 = vset.pattern.permute.xlu0 0
    %1840 = vperm.xlu0 %1839, %v923
    %v1841 = vpop.permute.xlu0 %1840
    %1842 = vset.pattern.permute.xlu0 0
    %1843 = vperm.xlu0 %1842, %v924
    %v1844 = vpop.permute.xlu0 %1843
    %1845 = vset.pattern.permute.xlu0 0
    %1846 = vperm.xlu0 %1845, %v925
    %v1847 = vpop.permute.xlu0 %1846
    %1848 = vset.pattern.permute.xlu0 0
    %1849 = vperm.xlu0 %1848, %v926
    %v1850 = vpop.permute.xlu0 %1849
    %1851 = vset.pattern.permute.xlu0 0
    %1852 = vperm.xlu0 %1851, %v927
    %v1853 = vpop.permute.xlu0 %1852
    %1854 = vset.pattern.permute.xlu0 0
    %1855 = vperm.xlu0 %1854, %v928
    %v1856 = vpop.permute.xlu0 %1855
    %1857 = vset.pattern.permute.xlu0 0
    %1858 = vperm.xlu0 %1857, %v929
    %v1859 = vpop.permute.xlu0 %1858
    %1860 = vset.pattern.permute.xlu0 0
    %1861 = vperm.xlu0 %1860, %v930
    %v1862 = vpop.permute.xlu0 %1861
    %1863 = vset.pattern.permute.xlu0 0
    %1864 = vperm.xlu0 %1863, %v931
    %v1865 = vpop.permute.xlu0 %1864
    %1866 = vset.pattern.permute.xlu0 0
    %1867 = vperm.xlu0 %1866, %v932
    %v1868 = vpop.permute.xlu0 %1867
    %1869 = vset.pattern.permute.xlu0 0
    %1870 = vperm.xlu0 %1869, %v933
    %v1871 = vpop.permute.xlu0 %1870
    %1872 = vset.pattern.permute.xlu0 0
    %1873 = vperm.xlu0 %1872, %v934
    %v1874 = vpop.permute.xlu0 %1873
    %1875 = vset.pattern.permute.xlu0 0
    %1876 = vperm.xlu0 %1875, %v935
    %v1877 = vpop.permute.xlu0 %1876
    %1878 = vset.pattern.permute.xlu0 0
    %1879 = vperm.xlu0 %1878, %v936
    %v1880 = vpop.permute.xlu0 %1879
    %1881 = vset.pattern.permute.xlu0 0
    %1882 = vperm.xlu0 %1881, %v937
    %v1883 = vpop.permute.xlu0 %1882
    %1884 = vset.pattern.permute.xlu0 0
    %1885 = vperm.xlu0 %1884, %v938
    %v1886 = vpop.permute.xlu0 %1885
    %1887 = vset.pattern.permute.xlu0 0
    %1888 = vperm.xlu0 %1887, %v939
    %v1889 = vpop.permute.xlu0 %1888
    %1890 = vset.pattern.permute.xlu0 0
    %1891 = vperm.xlu0 %1890, %v940
    %v1892 = vpop.permute.xlu0 %1891
    %1893 = vset.pattern.permute.xlu0 0
    %1894 = vperm.xlu0 %1893, %v941
    %v1895 = vpop.permute.xlu0 %1894
    %1896 = vset.pattern.permute.xlu0 0
    %1897 = vperm.xlu0 %1896, %v942
    %v1898 = vpop.permute.xlu0 %1897
    %1899 = vset.pattern.permute.xlu0 0
    %1900 = vperm.xlu0 %1899, %v943
    %v1901 = vpop.permute.xlu0 %1900
    %1902 = vset.pattern.permute.xlu0 0
    %1903 = vperm.xlu0 %1902, %v944
    %v1904 = vpop.permute.xlu0 %1903
    %1905 = vset.pattern.permute.xlu0 0
    %1906 = vperm.xlu0 %1905, %v945
    %v1907 = vpop.permute.xlu0 %1906
    %1908 = vset.pattern.permute.xlu0 0
    %1909 = vperm.xlu0 %1908, %v946
    %v1910 = vpop.permute.xlu0 %1909
    %1911 = vset.pattern.permute.xlu0 0
    %1912 = vperm.xlu0 %1911, %v947
    %v1913 = vpop.permute.xlu0 %1912
    %1914 = vset.pattern.permute.xlu0 0
    %1915 = vperm.xlu0 %1914, %v948
    %v1916 = vpop.permute.xlu0 %1915
    %1917 = vset.pattern.permute.xlu0 0
    %1918 = vperm.xlu0 %1917, %v949
    %v1919 = vpop.permute.xlu0 %1918
    %1920 = vset.pattern.permute.xlu0 0
    %1921 = vperm.xlu0 %1920, %v950
    %v1922 = vpop.permute.xlu0 %1921
    %1923 = vset.pattern.permute.xlu0 0
    %1924 = vperm.xlu0 %1923, %v951
    %v1925 = vpop.permute.xlu0 %1924
    %1926 = vset.pattern.permute.xlu0 0
    %1927 = vperm.xlu0 %1926, %v952
    %v1928 = vpop.permute.xlu0 %1927
    %1929 = vset.pattern.permute.xlu0 0
    %1930 = vperm.xlu0 %1929, %v953
    %v1931 = vpop.permute.xlu0 %1930
    %1932 = vset.pattern.permute.xlu0 0
    %1933 = vperm.xlu0 %1932, %v954
    %v1934 = vpop.permute.xlu0 %1933
    %1935 = vset.pattern.permute.xlu0 0
    %1936 = vperm.xlu0 %1935, %v955
    %v1937 = vpop.permute.xlu0 %1936
    %1938 = vset.pattern.permute.xlu0 0
    %1939 = vperm.xlu0 %1938, %v956
    %v1940 = vpop.permute.xlu0 %1939
    %1941 = vset.pattern.permute.xlu0 0
    %1942 = vperm.xlu0 %1941, %v957
    %v1943 = vpop.permute.xlu0 %1942
    %1944 = vset.pattern.permute.xlu0 0
    %1945 = vperm.xlu0 %1944, %v958
    %v1946 = vpop.permute.xlu0 %1945
    %1947 = vset.pattern.permute.xlu0 0
    %1948 = vperm.xlu0 %1947, %v959
    %v1949 = vpop.permute.xlu0 %1948
    %1950 = vset.pattern.permute.xlu0 0
    %1951 = vperm.xlu0 %1950, %v960
    %v1952 = vpop.permute.xlu0 %1951
    %1953 = vset.pattern.permute.xlu0 0
    %1954 = vperm.xlu0 %1953, %v961
    %v1955 = vpop.permute.xlu0 %1954
    %1956 = vset.pattern.permute.xlu0 0
    %1957 = vperm.xlu0 %1956, %v962
    %v1958 = vpop.permute.xlu0 %1957
    %1959 = vset.pattern.permute.xlu0 0
    %1960 = vperm.xlu0 %1959, %v963
    %v1961 = vpop.permute.xlu0 %1960
    %1962 = vset.pattern.permute.xlu0 0
    %1963 = vperm.xlu0 %1962, %v964
    %v1964 = vpop.permute.xlu0 %1963
    %1965 = vset.pattern.permute.xlu0 0
    %1966 = vperm.xlu0 %1965, %v965
    %v1967 = vpop.permute.xlu0 %1966
    %1968 = vset.pattern.permute.xlu0 0
    %1969 = vperm.xlu0 %1968, %v966
    %v1970 = vpop.permute.xlu0 %1969
    %1971 = vset.pattern.permute.xlu0 0
    %1972 = vperm.xlu0 %1971, %v967
    %v1973 = vpop.permute.xlu0 %1972
    %1974 = vset.pattern.permute.xlu0 0
    %1975 = vperm.xlu0 %1974, %v968
    %v1976 = vpop.permute.xlu0 %1975
    %1977 = vset.pattern.permute.xlu0 0
    %1978 = vperm.xlu0 %1977, %v969
    %v1979 = vpop.permute.xlu0 %1978
    %1980 = vset.pattern.permute.xlu0 0
    %1981 = vperm.xlu0 %1980, %v970
    %v1982 = vpop.permute.xlu0 %1981
    %1983 = vset.pattern.permute.xlu0 0
    %1984 = vperm.xlu0 %1983, %v971
    %v1985 = vpop.permute.xlu0 %1984
    %1986 = vset.pattern.permute.xlu0 0
    %1987 = vperm.xlu0 %1986, %v972
    %v1988 = vpop.permute.xlu0 %1987
    %1989 = vset.pattern.permute.xlu0 0
    %1990 = vperm.xlu0 %1989, %v973
    %v1991 = vpop.permute.xlu0 %1990
    %1992 = vset.pattern.permute.xlu0 0
    %1993 = vperm.xlu0 %1992, %v974
    %v1994 = vpop.permute.xlu0 %1993
    %1995 = vset.pattern.permute.xlu0 0
    %1996 = vperm.xlu0 %1995, %v975
    %v1997 = vpop.permute.xlu0 %1996
    %1998 = vset.pattern.permute.xlu0 0
    %1999 = vperm.xlu0 %1998, %v976
    %v2000 = vpop.permute.xlu0 %1999
    %v2001 = vlaneseq
    %v2002 = vshrl.u32 %v2001, 7
    %v2003 = vsub.s32 %v139, %v2002
    %v2004 = vrot.slane %v1235, %v2003
    %v2005 = vadd.s32 %v139, 4294967288
    %v2006 = vlaneseq
    %v2007 = vshrl.u32 %v2006, 7
    %v2008 = vsub.s32 %v2005, %v2007
    %v2009 = vrot.slane %v1238, %v2008
    %vm2010 = vcmask 130112
    %v2011 = vsel %vm2010, %v2009, %v2004
    %v2012 = vadd.s32 %v139, 4294967280
    %v2013 = vlaneseq
    %v2014 = vshrl.u32 %v2013, 7
    %v2015 = vsub.s32 %v2012, %v2014
    %v2016 = vrot.slane %v1241, %v2015
    %vm2017 = vcmask 195712
    %v2018 = vsel %vm2017, %v2016, %v2011
    %v2019 = vadd.s32 %v139, 4294967272
    %v2020 = vlaneseq
    %v2021 = vshrl.u32 %v2020, 7
    %v2022 = vsub.s32 %v2019, %v2021
    %v2023 = vrot.slane %v1244, %v2022
    %vm2024 = vcmask 261312
    %v2025 = vsel %vm2024, %v2023, %v2018
    %v2026 = vlaneseq
    %v2027 = vshrl.u32 %v2026, 7
    %v2028 = vsub.s32 %v139, %v2027
    %v2029 = vrot.slane %v1247, %v2028
    %v2030 = vlaneseq
    %v2031 = vshrl.u32 %v2030, 7
    %v2032 = vsub.s32 %v2005, %v2031
    %v2033 = vrot.slane %v1250, %v2032
    %v2034 = vsel %vm2010, %v2033, %v2029
    %v2035 = vlaneseq
    %v2036 = vshrl.u32 %v2035, 7
    %v2037 = vsub.s32 %v2012, %v2036
    %v2038 = vrot.slane %v1253, %v2037
    %v2039 = vsel %vm2017, %v2038, %v2034
    %v2040 = vlaneseq
    %v2041 = vshrl.u32 %v2040, 7
    %v2042 = vsub.s32 %v2019, %v2041
    %v2043 = vrot.slane %v1256, %v2042
    %v2044 = vsel %vm2024, %v2043, %v2039
    %v2045 = vlaneseq
    %v2046 = vshrl.u32 %v2045, 7
    %v2047 = vsub.s32 %v139, %v2046
    %v2048 = vrot.slane %v1259, %v2047
    %v2049 = vlaneseq
    %v2050 = vshrl.u32 %v2049, 7
    %v2051 = vsub.s32 %v2005, %v2050
    %v2052 = vrot.slane %v1262, %v2051
    %v2053 = vsel %vm2010, %v2052, %v2048
    %v2054 = vlaneseq
    %v2055 = vshrl.u32 %v2054, 7
    %v2056 = vsub.s32 %v2012, %v2055
    %v2057 = vrot.slane %v1265, %v2056
    %v2058 = vsel %vm2017, %v2057, %v2053
    %v2059 = vlaneseq
    %v2060 = vshrl.u32 %v2059, 7
    %v2061 = vsub.s32 %v2019, %v2060
    %v2062 = vrot.slane %v1268, %v2061
    %v2063 = vsel %vm2024, %v2062, %v2058
    %v2064 = vlaneseq
    %v2065 = vshrl.u32 %v2064, 7
    %v2066 = vsub.s32 %v139, %v2065
    %v2067 = vrot.slane %v1271, %v2066
    %v2068 = vlaneseq
    %v2069 = vshrl.u32 %v2068, 7
    %v2070 = vsub.s32 %v2005, %v2069
    %v2071 = vrot.slane %v1274, %v2070
    %v2072 = vsel %vm2010, %v2071, %v2067
    %v2073 = vlaneseq
    %v2074 = vshrl.u32 %v2073, 7
    %v2075 = vsub.s32 %v2012, %v2074
    %v2076 = vrot.slane %v1277, %v2075
    %v2077 = vsel %vm2017, %v2076, %v2072
    %v2078 = vlaneseq
    %v2079 = vshrl.u32 %v2078, 7
    %v2080 = vsub.s32 %v2019, %v2079
    %v2081 = vrot.slane %v1280, %v2080
    %v2082 = vsel %vm2024, %v2081, %v2077
    %v2083 = vlaneseq
    %v2084 = vshrl.u32 %v2083, 7
    %v2085 = vsub.s32 %v139, %v2084
    %v2086 = vrot.slane %v1283, %v2085
    %v2087 = vlaneseq
    %v2088 = vshrl.u32 %v2087, 7
    %v2089 = vsub.s32 %v2005, %v2088
    %v2090 = vrot.slane %v1286, %v2089
    %v2091 = vsel %vm2010, %v2090, %v2086
    %v2092 = vlaneseq
    %v2093 = vshrl.u32 %v2092, 7
    %v2094 = vsub.s32 %v2012, %v2093
    %v2095 = vrot.slane %v1289, %v2094
    %v2096 = vsel %vm2017, %v2095, %v2091
    %v2097 = vlaneseq
    %v2098 = vshrl.u32 %v2097, 7
    %v2099 = vsub.s32 %v2019, %v2098
    %v2100 = vrot.slane %v1292, %v2099
    %v2101 = vsel %vm2024, %v2100, %v2096
    %v2102 = vlaneseq
    %v2103 = vshrl.u32 %v2102, 7
    %v2104 = vsub.s32 %v139, %v2103
    %v2105 = vrot.slane %v1295, %v2104
    %v2106 = vlaneseq
    %v2107 = vshrl.u32 %v2106, 7
    %v2108 = vsub.s32 %v2005, %v2107
    %v2109 = vrot.slane %v1298, %v2108
    %v2110 = vsel %vm2010, %v2109, %v2105
    %v2111 = vlaneseq
    %v2112 = vshrl.u32 %v2111, 7
    %v2113 = vsub.s32 %v2012, %v2112
    %v2114 = vrot.slane %v1301, %v2113
    %v2115 = vsel %vm2017, %v2114, %v2110
    %v2116 = vlaneseq
    %v2117 = vshrl.u32 %v2116, 7
    %v2118 = vsub.s32 %v2019, %v2117
    %v2119 = vrot.slane %v1304, %v2118
    %v2120 = vsel %vm2024, %v2119, %v2115
    %v2121 = vlaneseq
    %v2122 = vshrl.u32 %v2121, 7
    %v2123 = vsub.s32 %v139, %v2122
    %v2124 = vrot.slane %v1307, %v2123
    %v2125 = vlaneseq
    %v2126 = vshrl.u32 %v2125, 7
    %v2127 = vsub.s32 %v2005, %v2126
    %v2128 = vrot.slane %v1310, %v2127
    %v2129 = vsel %vm2010, %v2128, %v2124
    %v2130 = vlaneseq
    %v2131 = vshrl.u32 %v2130, 7
    %v2132 = vsub.s32 %v2012, %v2131
    %v2133 = vrot.slane %v1313, %v2132
    %v2134 = vsel %vm2017, %v2133, %v2129
    %v2135 = vlaneseq
    %v2136 = vshrl.u32 %v2135, 7
    %v2137 = vsub.s32 %v2019, %v2136
    %v2138 = vrot.slane %v1316, %v2137
    %v2139 = vsel %vm2024, %v2138, %v2134
    %v2140 = vlaneseq
    %v2141 = vshrl.u32 %v2140, 7
    %v2142 = vsub.s32 %v139, %v2141
    %v2143 = vrot.slane %v1319, %v2142
    %v2144 = vlaneseq
    %v2145 = vshrl.u32 %v2144, 7
    %v2146 = vsub.s32 %v2005, %v2145
    %v2147 = vrot.slane %v1322, %v2146
    %v2148 = vsel %vm2010, %v2147, %v2143
    %v2149 = vlaneseq
    %v2150 = vshrl.u32 %v2149, 7
    %v2151 = vsub.s32 %v2012, %v2150
    %v2152 = vrot.slane %v1325, %v2151
    %v2153 = vsel %vm2017, %v2152, %v2148
    %v2154 = vlaneseq
    %v2155 = vshrl.u32 %v2154, 7
    %v2156 = vsub.s32 %v2019, %v2155
    %v2157 = vrot.slane %v1328, %v2156
    %v2158 = vsel %vm2024, %v2157, %v2153
    %v2159 = vlaneseq
    %v2160 = vshrl.u32 %v2159, 7
    %v2161 = vsub.s32 %v139, %v2160
    %v2162 = vrot.slane %v1331, %v2161
    %v2163 = vlaneseq
    %v2164 = vshrl.u32 %v2163, 7
    %v2165 = vsub.s32 %v2005, %v2164
    %v2166 = vrot.slane %v1334, %v2165
    %v2167 = vsel %vm2010, %v2166, %v2162
    %v2168 = vlaneseq
    %v2169 = vshrl.u32 %v2168, 7
    %v2170 = vsub.s32 %v2012, %v2169
    %v2171 = vrot.slane %v1337, %v2170
    %v2172 = vsel %vm2017, %v2171, %v2167
    %v2173 = vlaneseq
    %v2174 = vshrl.u32 %v2173, 7
    %v2175 = vsub.s32 %v2019, %v2174
    %v2176 = vrot.slane %v1340, %v2175
    %v2177 = vsel %vm2024, %v2176, %v2172
    %v2178 = vlaneseq
    %v2179 = vshrl.u32 %v2178, 7
    %v2180 = vsub.s32 %v139, %v2179
    %v2181 = vrot.slane %v1343, %v2180
    %v2182 = vlaneseq
    %v2183 = vshrl.u32 %v2182, 7
    %v2184 = vsub.s32 %v2005, %v2183
    %v2185 = vrot.slane %v1346, %v2184
    %v2186 = vsel %vm2010, %v2185, %v2181
    %v2187 = vlaneseq
    %v2188 = vshrl.u32 %v2187, 7
    %v2189 = vsub.s32 %v2012, %v2188
    %v2190 = vrot.slane %v1349, %v2189
    %v2191 = vsel %vm2017, %v2190, %v2186
    %v2192 = vlaneseq
    %v2193 = vshrl.u32 %v2192, 7
    %v2194 = vsub.s32 %v2019, %v2193
    %v2195 = vrot.slane %v1352, %v2194
    %v2196 = vsel %vm2024, %v2195, %v2191
    %v2197 = vlaneseq
    %v2198 = vshrl.u32 %v2197, 7
    %v2199 = vsub.s32 %v139, %v2198
    %v2200 = vrot.slane %v1355, %v2199
    %v2201 = vlaneseq
    %v2202 = vshrl.u32 %v2201, 7
    %v2203 = vsub.s32 %v2005, %v2202
    %v2204 = vrot.slane %v1358, %v2203
    %v2205 = vsel %vm2010, %v2204, %v2200
    %v2206 = vlaneseq
    %v2207 = vshrl.u32 %v2206, 7
    %v2208 = vsub.s32 %v2012, %v2207
    %v2209 = vrot.slane %v1361, %v2208
    %v2210 = vsel %vm2017, %v2209, %v2205
    %v2211 = vlaneseq
    %v2212 = vshrl.u32 %v2211, 7
    %v2213 = vsub.s32 %v2019, %v2212
    %v2214 = vrot.slane %v1364, %v2213
    %v2215 = vsel %vm2024, %v2214, %v2210
    %v2216 = vlaneseq
    %v2217 = vshrl.u32 %v2216, 7
    %v2218 = vsub.s32 %v139, %v2217
    %v2219 = vrot.slane %v1367, %v2218
    %v2220 = vlaneseq
    %v2221 = vshrl.u32 %v2220, 7
    %v2222 = vsub.s32 %v2005, %v2221
    %v2223 = vrot.slane %v1370, %v2222
    %v2224 = vsel %vm2010, %v2223, %v2219
    %v2225 = vlaneseq
    %v2226 = vshrl.u32 %v2225, 7
    %v2227 = vsub.s32 %v2012, %v2226
    %v2228 = vrot.slane %v1373, %v2227
    %v2229 = vsel %vm2017, %v2228, %v2224
    %v2230 = vlaneseq
    %v2231 = vshrl.u32 %v2230, 7
    %v2232 = vsub.s32 %v2019, %v2231
    %v2233 = vrot.slane %v1376, %v2232
    %v2234 = vsel %vm2024, %v2233, %v2229
    %v2235 = vlaneseq
    %v2236 = vshrl.u32 %v2235, 7
    %v2237 = vsub.s32 %v139, %v2236
    %v2238 = vrot.slane %v1379, %v2237
    %v2239 = vlaneseq
    %v2240 = vshrl.u32 %v2239, 7
    %v2241 = vsub.s32 %v2005, %v2240
    %v2242 = vrot.slane %v1382, %v2241
    %v2243 = vsel %vm2010, %v2242, %v2238
    %v2244 = vlaneseq
    %v2245 = vshrl.u32 %v2244, 7
    %v2246 = vsub.s32 %v2012, %v2245
    %v2247 = vrot.slane %v1385, %v2246
    %v2248 = vsel %vm2017, %v2247, %v2243
    %v2249 = vlaneseq
    %v2250 = vshrl.u32 %v2249, 7
    %v2251 = vsub.s32 %v2019, %v2250
    %v2252 = vrot.slane %v1388, %v2251
    %v2253 = vsel %vm2024, %v2252, %v2248
    %v2254 = vlaneseq
    %v2255 = vshrl.u32 %v2254, 7
    %v2256 = vsub.s32 %v139, %v2255
    %v2257 = vrot.slane %v1391, %v2256
    %v2258 = vlaneseq
    %v2259 = vshrl.u32 %v2258, 7
    %v2260 = vsub.s32 %v2005, %v2259
    %v2261 = vrot.slane %v1394, %v2260
    %v2262 = vsel %vm2010, %v2261, %v2257
    %v2263 = vlaneseq
    %v2264 = vshrl.u32 %v2263, 7
    %v2265 = vsub.s32 %v2012, %v2264
    %v2266 = vrot.slane %v1397, %v2265
    %v2267 = vsel %vm2017, %v2266, %v2262
    %v2268 = vlaneseq
    %v2269 = vshrl.u32 %v2268, 7
    %v2270 = vsub.s32 %v2019, %v2269
    %v2271 = vrot.slane %v1400, %v2270
    %v2272 = vsel %vm2024, %v2271, %v2267
    %v2273 = vlaneseq
    %v2274 = vshrl.u32 %v2273, 7
    %v2275 = vsub.s32 %v139, %v2274
    %v2276 = vrot.slane %v1403, %v2275
    %v2277 = vlaneseq
    %v2278 = vshrl.u32 %v2277, 7
    %v2279 = vsub.s32 %v2005, %v2278
    %v2280 = vrot.slane %v1406, %v2279
    %v2281 = vsel %vm2010, %v2280, %v2276
    %v2282 = vlaneseq
    %v2283 = vshrl.u32 %v2282, 7
    %v2284 = vsub.s32 %v2012, %v2283
    %v2285 = vrot.slane %v1409, %v2284
    %v2286 = vsel %vm2017, %v2285, %v2281
    %v2287 = vlaneseq
    %v2288 = vshrl.u32 %v2287, 7
    %v2289 = vsub.s32 %v2019, %v2288
    %v2290 = vrot.slane %v1412, %v2289
    %v2291 = vsel %vm2024, %v2290, %v2286
    %v2292 = vlaneseq
    %v2293 = vshrl.u32 %v2292, 7
    %v2294 = vsub.s32 %v139, %v2293
    %v2295 = vrot.slane %v1415, %v2294
    %v2296 = vlaneseq
    %v2297 = vshrl.u32 %v2296, 7
    %v2298 = vsub.s32 %v2005, %v2297
    %v2299 = vrot.slane %v1418, %v2298
    %v2300 = vsel %vm2010, %v2299, %v2295
    %v2301 = vlaneseq
    %v2302 = vshrl.u32 %v2301, 7
    %v2303 = vsub.s32 %v2012, %v2302
    %v2304 = vrot.slane %v1421, %v2303
    %v2305 = vsel %vm2017, %v2304, %v2300
    %v2306 = vlaneseq
    %v2307 = vshrl.u32 %v2306, 7
    %v2308 = vsub.s32 %v2019, %v2307
    %v2309 = vrot.slane %v1424, %v2308
    %v2310 = vsel %vm2024, %v2309, %v2305
    %v2311 = vlaneseq
    %v2312 = vshrl.u32 %v2311, 7
    %v2313 = vsub.s32 %v139, %v2312
    %v2314 = vrot.slane %v1427, %v2313
    %v2315 = vlaneseq
    %v2316 = vshrl.u32 %v2315, 7
    %v2317 = vsub.s32 %v2005, %v2316
    %v2318 = vrot.slane %v1430, %v2317
    %v2319 = vsel %vm2010, %v2318, %v2314
    %v2320 = vlaneseq
    %v2321 = vshrl.u32 %v2320, 7
    %v2322 = vsub.s32 %v2012, %v2321
    %v2323 = vrot.slane %v1433, %v2322
    %v2324 = vsel %vm2017, %v2323, %v2319
    %v2325 = vlaneseq
    %v2326 = vshrl.u32 %v2325, 7
    %v2327 = vsub.s32 %v2019, %v2326
    %v2328 = vrot.slane %v1436, %v2327
    %v2329 = vsel %vm2024, %v2328, %v2324
    %v2330 = vlaneseq
    %v2331 = vshrl.u32 %v2330, 7
    %v2332 = vsub.s32 %v139, %v2331
    %v2333 = vrot.slane %v1439, %v2332
    %v2334 = vlaneseq
    %v2335 = vshrl.u32 %v2334, 7
    %v2336 = vsub.s32 %v2005, %v2335
    %v2337 = vrot.slane %v1442, %v2336
    %v2338 = vsel %vm2010, %v2337, %v2333
    %v2339 = vlaneseq
    %v2340 = vshrl.u32 %v2339, 7
    %v2341 = vsub.s32 %v2012, %v2340
    %v2342 = vrot.slane %v1445, %v2341
    %v2343 = vsel %vm2017, %v2342, %v2338
    %v2344 = vlaneseq
    %v2345 = vshrl.u32 %v2344, 7
    %v2346 = vsub.s32 %v2019, %v2345
    %v2347 = vrot.slane %v1448, %v2346
    %v2348 = vsel %vm2024, %v2347, %v2343
    %v2349 = vlaneseq
    %v2350 = vshrl.u32 %v2349, 7
    %v2351 = vsub.s32 %v139, %v2350
    %v2352 = vrot.slane %v1451, %v2351
    %v2353 = vlaneseq
    %v2354 = vshrl.u32 %v2353, 7
    %v2355 = vsub.s32 %v2005, %v2354
    %v2356 = vrot.slane %v1454, %v2355
    %v2357 = vsel %vm2010, %v2356, %v2352
    %v2358 = vlaneseq
    %v2359 = vshrl.u32 %v2358, 7
    %v2360 = vsub.s32 %v2012, %v2359
    %v2361 = vrot.slane %v1457, %v2360
    %v2362 = vsel %vm2017, %v2361, %v2357
    %v2363 = vlaneseq
    %v2364 = vshrl.u32 %v2363, 7
    %v2365 = vsub.s32 %v2019, %v2364
    %v2366 = vrot.slane %v1460, %v2365
    %v2367 = vsel %vm2024, %v2366, %v2362
    %v2368 = vlaneseq
    %v2369 = vshrl.u32 %v2368, 7
    %v2370 = vsub.s32 %v139, %v2369
    %v2371 = vrot.slane %v1463, %v2370
    %v2372 = vlaneseq
    %v2373 = vshrl.u32 %v2372, 7
    %v2374 = vsub.s32 %v2005, %v2373
    %v2375 = vrot.slane %v1466, %v2374
    %v2376 = vsel %vm2010, %v2375, %v2371
    %v2377 = vlaneseq
    %v2378 = vshrl.u32 %v2377, 7
    %v2379 = vsub.s32 %v2012, %v2378
    %v2380 = vrot.slane %v1469, %v2379
    %v2381 = vsel %vm2017, %v2380, %v2376
    %v2382 = vlaneseq
    %v2383 = vshrl.u32 %v2382, 7
    %v2384 = vsub.s32 %v2019, %v2383
    %v2385 = vrot.slane %v1472, %v2384
    %v2386 = vsel %vm2024, %v2385, %v2381
    %v2387 = vlaneseq
    %v2388 = vshrl.u32 %v2387, 7
    %v2389 = vsub.s32 %v139, %v2388
    %v2390 = vrot.slane %v1475, %v2389
    %v2391 = vlaneseq
    %v2392 = vshrl.u32 %v2391, 7
    %v2393 = vsub.s32 %v2005, %v2392
    %v2394 = vrot.slane %v1478, %v2393
    %v2395 = vsel %vm2010, %v2394, %v2390
    %v2396 = vlaneseq
    %v2397 = vshrl.u32 %v2396, 7
    %v2398 = vsub.s32 %v2012, %v2397
    %v2399 = vrot.slane %v1481, %v2398
    %v2400 = vsel %vm2017, %v2399, %v2395
    %v2401 = vlaneseq
    %v2402 = vshrl.u32 %v2401, 7
    %v2403 = vsub.s32 %v2019, %v2402
    %v2404 = vrot.slane %v1484, %v2403
    %v2405 = vsel %vm2024, %v2404, %v2400
    %v2406 = vlaneseq
    %v2407 = vshrl.u32 %v2406, 7
    %v2408 = vsub.s32 %v139, %v2407
    %v2409 = vrot.slane %v1487, %v2408
    %v2410 = vlaneseq
    %v2411 = vshrl.u32 %v2410, 7
    %v2412 = vsub.s32 %v2005, %v2411
    %v2413 = vrot.slane %v1490, %v2412
    %v2414 = vsel %vm2010, %v2413, %v2409
    %v2415 = vlaneseq
    %v2416 = vshrl.u32 %v2415, 7
    %v2417 = vsub.s32 %v2012, %v2416
    %v2418 = vrot.slane %v1493, %v2417
    %v2419 = vsel %vm2017, %v2418, %v2414
    %v2420 = vlaneseq
    %v2421 = vshrl.u32 %v2420, 7
    %v2422 = vsub.s32 %v2019, %v2421
    %v2423 = vrot.slane %v1496, %v2422
    %v2424 = vsel %vm2024, %v2423, %v2419
    %v2425 = vlaneseq
    %v2426 = vshrl.u32 %v2425, 7
    %v2427 = vsub.s32 %v139, %v2426
    %v2428 = vrot.slane %v1499, %v2427
    %v2429 = vlaneseq
    %v2430 = vshrl.u32 %v2429, 7
    %v2431 = vsub.s32 %v2005, %v2430
    %v2432 = vrot.slane %v1502, %v2431
    %v2433 = vsel %vm2010, %v2432, %v2428
    %v2434 = vlaneseq
    %v2435 = vshrl.u32 %v2434, 7
    %v2436 = vsub.s32 %v2012, %v2435
    %v2437 = vrot.slane %v1505, %v2436
    %v2438 = vsel %vm2017, %v2437, %v2433
    %v2439 = vlaneseq
    %v2440 = vshrl.u32 %v2439, 7
    %v2441 = vsub.s32 %v2019, %v2440
    %v2442 = vrot.slane %v1508, %v2441
    %v2443 = vsel %vm2024, %v2442, %v2438
    %v2444 = vlaneseq
    %v2445 = vshrl.u32 %v2444, 7
    %v2446 = vsub.s32 %v139, %v2445
    %v2447 = vrot.slane %v1511, %v2446
    %v2448 = vlaneseq
    %v2449 = vshrl.u32 %v2448, 7
    %v2450 = vsub.s32 %v2005, %v2449
    %v2451 = vrot.slane %v1514, %v2450
    %v2452 = vsel %vm2010, %v2451, %v2447
    %v2453 = vlaneseq
    %v2454 = vshrl.u32 %v2453, 7
    %v2455 = vsub.s32 %v2012, %v2454
    %v2456 = vrot.slane %v1517, %v2455
    %v2457 = vsel %vm2017, %v2456, %v2452
    %v2458 = vlaneseq
    %v2459 = vshrl.u32 %v2458, 7
    %v2460 = vsub.s32 %v2019, %v2459
    %v2461 = vrot.slane %v1520, %v2460
    %v2462 = vsel %vm2024, %v2461, %v2457
    %v2463 = vlaneseq
    %v2464 = vshrl.u32 %v2463, 7
    %v2465 = vsub.s32 %v139, %v2464
    %v2466 = vrot.slane %v1523, %v2465
    %v2467 = vlaneseq
    %v2468 = vshrl.u32 %v2467, 7
    %v2469 = vsub.s32 %v2005, %v2468
    %v2470 = vrot.slane %v1526, %v2469
    %v2471 = vsel %vm2010, %v2470, %v2466
    %v2472 = vlaneseq
    %v2473 = vshrl.u32 %v2472, 7
    %v2474 = vsub.s32 %v2012, %v2473
    %v2475 = vrot.slane %v1529, %v2474
    %v2476 = vsel %vm2017, %v2475, %v2471
    %v2477 = vlaneseq
    %v2478 = vshrl.u32 %v2477, 7
    %v2479 = vsub.s32 %v2019, %v2478
    %v2480 = vrot.slane %v1532, %v2479
    %v2481 = vsel %vm2024, %v2480, %v2476
    %v2482 = vlaneseq
    %v2483 = vshrl.u32 %v2482, 7
    %v2484 = vsub.s32 %v139, %v2483
    %v2485 = vrot.slane %v1535, %v2484
    %v2486 = vlaneseq
    %v2487 = vshrl.u32 %v2486, 7
    %v2488 = vsub.s32 %v2005, %v2487
    %v2489 = vrot.slane %v1538, %v2488
    %v2490 = vsel %vm2010, %v2489, %v2485
    %v2491 = vlaneseq
    %v2492 = vshrl.u32 %v2491, 7
    %v2493 = vsub.s32 %v2012, %v2492
    %v2494 = vrot.slane %v1541, %v2493
    %v2495 = vsel %vm2017, %v2494, %v2490
    %v2496 = vlaneseq
    %v2497 = vshrl.u32 %v2496, 7
    %v2498 = vsub.s32 %v2019, %v2497
    %v2499 = vrot.slane %v1544, %v2498
    %v2500 = vsel %vm2024, %v2499, %v2495
    %v2501 = vlaneseq
    %v2502 = vshrl.u32 %v2501, 7
    %v2503 = vsub.s32 %v139, %v2502
    %v2504 = vrot.slane %v1547, %v2503
    %v2505 = vlaneseq
    %v2506 = vshrl.u32 %v2505, 7
    %v2507 = vsub.s32 %v2005, %v2506
    %v2508 = vrot.slane %v1550, %v2507
    %v2509 = vsel %vm2010, %v2508, %v2504
    %v2510 = vlaneseq
    %v2511 = vshrl.u32 %v2510, 7
    %v2512 = vsub.s32 %v2012, %v2511
    %v2513 = vrot.slane %v1553, %v2512
    %v2514 = vsel %vm2017, %v2513, %v2509
    %v2515 = vlaneseq
    %v2516 = vshrl.u32 %v2515, 7
    %v2517 = vsub.s32 %v2019, %v2516
    %v2518 = vrot.slane %v1556, %v2517
    %v2519 = vsel %vm2024, %v2518, %v2514
    %v2520 = vlaneseq
    %v2521 = vshrl.u32 %v2520, 7
    %v2522 = vsub.s32 %v139, %v2521
    %v2523 = vrot.slane %v1559, %v2522
    %v2524 = vlaneseq
    %v2525 = vshrl.u32 %v2524, 7
    %v2526 = vsub.s32 %v2005, %v2525
    %v2527 = vrot.slane %v1562, %v2526
    %v2528 = vsel %vm2010, %v2527, %v2523
    %v2529 = vlaneseq
    %v2530 = vshrl.u32 %v2529, 7
    %v2531 = vsub.s32 %v2012, %v2530
    %v2532 = vrot.slane %v1565, %v2531
    %v2533 = vsel %vm2017, %v2532, %v2528
    %v2534 = vlaneseq
    %v2535 = vshrl.u32 %v2534, 7
    %v2536 = vsub.s32 %v2019, %v2535
    %v2537 = vrot.slane %v1568, %v2536
    %v2538 = vsel %vm2024, %v2537, %v2533
    %v2539 = vlaneseq
    %v2540 = vshrl.u32 %v2539, 7
    %v2541 = vsub.s32 %v139, %v2540
    %v2542 = vrot.slane %v1571, %v2541
    %v2543 = vlaneseq
    %v2544 = vshrl.u32 %v2543, 7
    %v2545 = vsub.s32 %v2005, %v2544
    %v2546 = vrot.slane %v1574, %v2545
    %v2547 = vsel %vm2010, %v2546, %v2542
    %v2548 = vlaneseq
    %v2549 = vshrl.u32 %v2548, 7
    %v2550 = vsub.s32 %v2012, %v2549
    %v2551 = vrot.slane %v1577, %v2550
    %v2552 = vsel %vm2017, %v2551, %v2547
    %v2553 = vlaneseq
    %v2554 = vshrl.u32 %v2553, 7
    %v2555 = vsub.s32 %v2019, %v2554
    %v2556 = vrot.slane %v1580, %v2555
    %v2557 = vsel %vm2024, %v2556, %v2552
    %v2558 = vlaneseq
    %v2559 = vshrl.u32 %v2558, 7
    %v2560 = vsub.s32 %v139, %v2559
    %v2561 = vrot.slane %v1583, %v2560
    %v2562 = vlaneseq
    %v2563 = vshrl.u32 %v2562, 7
    %v2564 = vsub.s32 %v2005, %v2563
    %v2565 = vrot.slane %v1586, %v2564
    %v2566 = vsel %vm2010, %v2565, %v2561
    %v2567 = vlaneseq
    %v2568 = vshrl.u32 %v2567, 7
    %v2569 = vsub.s32 %v2012, %v2568
    %v2570 = vrot.slane %v1589, %v2569
    %v2571 = vsel %vm2017, %v2570, %v2566
    %v2572 = vlaneseq
    %v2573 = vshrl.u32 %v2572, 7
    %v2574 = vsub.s32 %v2019, %v2573
    %v2575 = vrot.slane %v1592, %v2574
    %v2576 = vsel %vm2024, %v2575, %v2571
    %v2577 = vlaneseq
    %v2578 = vshrl.u32 %v2577, 7
    %v2579 = vsub.s32 %v139, %v2578
    %v2580 = vrot.slane %v1595, %v2579
    %v2581 = vlaneseq
    %v2582 = vshrl.u32 %v2581, 7
    %v2583 = vsub.s32 %v2005, %v2582
    %v2584 = vrot.slane %v1598, %v2583
    %v2585 = vsel %vm2010, %v2584, %v2580
    %v2586 = vlaneseq
    %v2587 = vshrl.u32 %v2586, 7
    %v2588 = vsub.s32 %v2012, %v2587
    %v2589 = vrot.slane %v1601, %v2588
    %v2590 = vsel %vm2017, %v2589, %v2585
    %v2591 = vlaneseq
    %v2592 = vshrl.u32 %v2591, 7
    %v2593 = vsub.s32 %v2019, %v2592
    %v2594 = vrot.slane %v1604, %v2593
    %v2595 = vsel %vm2024, %v2594, %v2590
    %v2596 = vlaneseq
    %v2597 = vshrl.u32 %v2596, 7
    %v2598 = vsub.s32 %v139, %v2597
    %v2599 = vrot.slane %v1607, %v2598
    %v2600 = vlaneseq
    %v2601 = vshrl.u32 %v2600, 7
    %v2602 = vsub.s32 %v2005, %v2601
    %v2603 = vrot.slane %v1610, %v2602
    %v2604 = vsel %vm2010, %v2603, %v2599
    %v2605 = vlaneseq
    %v2606 = vshrl.u32 %v2605, 7
    %v2607 = vsub.s32 %v2012, %v2606
    %v2608 = vrot.slane %v1613, %v2607
    %v2609 = vsel %vm2017, %v2608, %v2604
    %v2610 = vlaneseq
    %v2611 = vshrl.u32 %v2610, 7
    %v2612 = vsub.s32 %v2019, %v2611
    %v2613 = vrot.slane %v1616, %v2612
    %v2614 = vsel %vm2024, %v2613, %v2609
    %v2615 = vlaneseq
    %v2616 = vshrl.u32 %v2615, 7
    %v2617 = vsub.s32 %v139, %v2616
    %v2618 = vrot.slane %v1619, %v2617
    %v2619 = vlaneseq
    %v2620 = vshrl.u32 %v2619, 7
    %v2621 = vsub.s32 %v2005, %v2620
    %v2622 = vrot.slane %v1622, %v2621
    %v2623 = vsel %vm2010, %v2622, %v2618
    %v2624 = vlaneseq
    %v2625 = vshrl.u32 %v2624, 7
    %v2626 = vsub.s32 %v2012, %v2625
    %v2627 = vrot.slane %v1625, %v2626
    %v2628 = vsel %vm2017, %v2627, %v2623
    %v2629 = vlaneseq
    %v2630 = vshrl.u32 %v2629, 7
    %v2631 = vsub.s32 %v2019, %v2630
    %v2632 = vrot.slane %v1628, %v2631
    %v2633 = vsel %vm2024, %v2632, %v2628
    %v2634 = vlaneseq
    %v2635 = vshrl.u32 %v2634, 7
    %v2636 = vsub.s32 %v139, %v2635
    %v2637 = vrot.slane %v1631, %v2636
    %v2638 = vlaneseq
    %v2639 = vshrl.u32 %v2638, 7
    %v2640 = vsub.s32 %v2005, %v2639
    %v2641 = vrot.slane %v1634, %v2640
    %v2642 = vsel %vm2010, %v2641, %v2637
    %v2643 = vlaneseq
    %v2644 = vshrl.u32 %v2643, 7
    %v2645 = vsub.s32 %v2012, %v2644
    %v2646 = vrot.slane %v1637, %v2645
    %v2647 = vsel %vm2017, %v2646, %v2642
    %v2648 = vlaneseq
    %v2649 = vshrl.u32 %v2648, 7
    %v2650 = vsub.s32 %v2019, %v2649
    %v2651 = vrot.slane %v1640, %v2650
    %v2652 = vsel %vm2024, %v2651, %v2647
    %v2653 = vlaneseq
    %v2654 = vshrl.u32 %v2653, 7
    %v2655 = vsub.s32 %v139, %v2654
    %v2656 = vrot.slane %v1643, %v2655
    %v2657 = vlaneseq
    %v2658 = vshrl.u32 %v2657, 7
    %v2659 = vsub.s32 %v2005, %v2658
    %v2660 = vrot.slane %v1646, %v2659
    %v2661 = vsel %vm2010, %v2660, %v2656
    %v2662 = vlaneseq
    %v2663 = vshrl.u32 %v2662, 7
    %v2664 = vsub.s32 %v2012, %v2663
    %v2665 = vrot.slane %v1649, %v2664
    %v2666 = vsel %vm2017, %v2665, %v2661
    %v2667 = vlaneseq
    %v2668 = vshrl.u32 %v2667, 7
    %v2669 = vsub.s32 %v2019, %v2668
    %v2670 = vrot.slane %v1652, %v2669
    %v2671 = vsel %vm2024, %v2670, %v2666
    %v2672 = vlaneseq
    %v2673 = vshrl.u32 %v2672, 7
    %v2674 = vsub.s32 %v139, %v2673
    %v2675 = vrot.slane %v1655, %v2674
    %v2676 = vlaneseq
    %v2677 = vshrl.u32 %v2676, 7
    %v2678 = vsub.s32 %v2005, %v2677
    %v2679 = vrot.slane %v1658, %v2678
    %v2680 = vsel %vm2010, %v2679, %v2675
    %v2681 = vlaneseq
    %v2682 = vshrl.u32 %v2681, 7
    %v2683 = vsub.s32 %v2012, %v2682
    %v2684 = vrot.slane %v1661, %v2683
    %v2685 = vsel %vm2017, %v2684, %v2680
    %v2686 = vlaneseq
    %v2687 = vshrl.u32 %v2686, 7
    %v2688 = vsub.s32 %v2019, %v2687
    %v2689 = vrot.slane %v1664, %v2688
    %v2690 = vsel %vm2024, %v2689, %v2685
    %v2691 = vlaneseq
    %v2692 = vshrl.u32 %v2691, 7
    %v2693 = vsub.s32 %v139, %v2692
    %v2694 = vrot.slane %v1667, %v2693
    %v2695 = vlaneseq
    %v2696 = vshrl.u32 %v2695, 7
    %v2697 = vsub.s32 %v2005, %v2696
    %v2698 = vrot.slane %v1670, %v2697
    %v2699 = vsel %vm2010, %v2698, %v2694
    %v2700 = vlaneseq
    %v2701 = vshrl.u32 %v2700, 7
    %v2702 = vsub.s32 %v2012, %v2701
    %v2703 = vrot.slane %v1673, %v2702
    %v2704 = vsel %vm2017, %v2703, %v2699
    %v2705 = vlaneseq
    %v2706 = vshrl.u32 %v2705, 7
    %v2707 = vsub.s32 %v2019, %v2706
    %v2708 = vrot.slane %v1676, %v2707
    %v2709 = vsel %vm2024, %v2708, %v2704
    %v2710 = vlaneseq
    %v2711 = vshrl.u32 %v2710, 7
    %v2712 = vsub.s32 %v139, %v2711
    %v2713 = vrot.slane %v1679, %v2712
    %v2714 = vlaneseq
    %v2715 = vshrl.u32 %v2714, 7
    %v2716 = vsub.s32 %v2005, %v2715
    %v2717 = vrot.slane %v1682, %v2716
    %v2718 = vsel %vm2010, %v2717, %v2713
    %v2719 = vlaneseq
    %v2720 = vshrl.u32 %v2719, 7
    %v2721 = vsub.s32 %v2012, %v2720
    %v2722 = vrot.slane %v1685, %v2721
    %v2723 = vsel %vm2017, %v2722, %v2718
    %v2724 = vlaneseq
    %v2725 = vshrl.u32 %v2724, 7
    %v2726 = vsub.s32 %v2019, %v2725
    %v2727 = vrot.slane %v1688, %v2726
    %v2728 = vsel %vm2024, %v2727, %v2723
    %v2729 = vlaneseq
    %v2730 = vshrl.u32 %v2729, 7
    %v2731 = vsub.s32 %v139, %v2730
    %v2732 = vrot.slane %v1691, %v2731
    %v2733 = vlaneseq
    %v2734 = vshrl.u32 %v2733, 7
    %v2735 = vsub.s32 %v2005, %v2734
    %v2736 = vrot.slane %v1694, %v2735
    %v2737 = vsel %vm2010, %v2736, %v2732
    %v2738 = vlaneseq
    %v2739 = vshrl.u32 %v2738, 7
    %v2740 = vsub.s32 %v2012, %v2739
    %v2741 = vrot.slane %v1697, %v2740
    %v2742 = vsel %vm2017, %v2741, %v2737
    %v2743 = vlaneseq
    %v2744 = vshrl.u32 %v2743, 7
    %v2745 = vsub.s32 %v2019, %v2744
    %v2746 = vrot.slane %v1700, %v2745
    %v2747 = vsel %vm2024, %v2746, %v2742
    %v2748 = vlaneseq
    %v2749 = vshrl.u32 %v2748, 7
    %v2750 = vsub.s32 %v139, %v2749
    %v2751 = vrot.slane %v1703, %v2750
    %v2752 = vlaneseq
    %v2753 = vshrl.u32 %v2752, 7
    %v2754 = vsub.s32 %v2005, %v2753
    %v2755 = vrot.slane %v1706, %v2754
    %v2756 = vsel %vm2010, %v2755, %v2751
    %v2757 = vlaneseq
    %v2758 = vshrl.u32 %v2757, 7
    %v2759 = vsub.s32 %v2012, %v2758
    %v2760 = vrot.slane %v1709, %v2759
    %v2761 = vsel %vm2017, %v2760, %v2756
    %v2762 = vlaneseq
    %v2763 = vshrl.u32 %v2762, 7
    %v2764 = vsub.s32 %v2019, %v2763
    %v2765 = vrot.slane %v1712, %v2764
    %v2766 = vsel %vm2024, %v2765, %v2761
    %v2767 = vlaneseq
    %v2768 = vshrl.u32 %v2767, 7
    %v2769 = vsub.s32 %v139, %v2768
    %v2770 = vrot.slane %v1715, %v2769
    %v2771 = vlaneseq
    %v2772 = vshrl.u32 %v2771, 7
    %v2773 = vsub.s32 %v2005, %v2772
    %v2774 = vrot.slane %v1718, %v2773
    %v2775 = vsel %vm2010, %v2774, %v2770
    %v2776 = vlaneseq
    %v2777 = vshrl.u32 %v2776, 7
    %v2778 = vsub.s32 %v2012, %v2777
    %v2779 = vrot.slane %v1721, %v2778
    %v2780 = vsel %vm2017, %v2779, %v2775
    %v2781 = vlaneseq
    %v2782 = vshrl.u32 %v2781, 7
    %v2783 = vsub.s32 %v2019, %v2782
    %v2784 = vrot.slane %v1724, %v2783
    %v2785 = vsel %vm2024, %v2784, %v2780
    %v2786 = vlaneseq
    %v2787 = vshrl.u32 %v2786, 7
    %v2788 = vsub.s32 %v139, %v2787
    %v2789 = vrot.slane %v1727, %v2788
    %v2790 = vlaneseq
    %v2791 = vshrl.u32 %v2790, 7
    %v2792 = vsub.s32 %v2005, %v2791
    %v2793 = vrot.slane %v1730, %v2792
    %v2794 = vsel %vm2010, %v2793, %v2789
    %v2795 = vlaneseq
    %v2796 = vshrl.u32 %v2795, 7
    %v2797 = vsub.s32 %v2012, %v2796
    %v2798 = vrot.slane %v1733, %v2797
    %v2799 = vsel %vm2017, %v2798, %v2794
    %v2800 = vlaneseq
    %v2801 = vshrl.u32 %v2800, 7
    %v2802 = vsub.s32 %v2019, %v2801
    %v2803 = vrot.slane %v1736, %v2802
    %v2804 = vsel %vm2024, %v2803, %v2799
    %v2805 = vlaneseq
    %v2806 = vshrl.u32 %v2805, 7
    %v2807 = vsub.s32 %v139, %v2806
    %v2808 = vrot.slane %v1739, %v2807
    %v2809 = vlaneseq
    %v2810 = vshrl.u32 %v2809, 7
    %v2811 = vsub.s32 %v2005, %v2810
    %v2812 = vrot.slane %v1742, %v2811
    %v2813 = vsel %vm2010, %v2812, %v2808
    %v2814 = vlaneseq
    %v2815 = vshrl.u32 %v2814, 7
    %v2816 = vsub.s32 %v2012, %v2815
    %v2817 = vrot.slane %v1745, %v2816
    %v2818 = vsel %vm2017, %v2817, %v2813
    %v2819 = vlaneseq
    %v2820 = vshrl.u32 %v2819, 7
    %v2821 = vsub.s32 %v2019, %v2820
    %v2822 = vrot.slane %v1748, %v2821
    %v2823 = vsel %vm2024, %v2822, %v2818
    %v2824 = vlaneseq
    %v2825 = vshrl.u32 %v2824, 7
    %v2826 = vsub.s32 %v139, %v2825
    %v2827 = vrot.slane %v1751, %v2826
    %v2828 = vlaneseq
    %v2829 = vshrl.u32 %v2828, 7
    %v2830 = vsub.s32 %v2005, %v2829
    %v2831 = vrot.slane %v1754, %v2830
    %v2832 = vsel %vm2010, %v2831, %v2827
    %v2833 = vlaneseq
    %v2834 = vshrl.u32 %v2833, 7
    %v2835 = vsub.s32 %v2012, %v2834
    %v2836 = vrot.slane %v1757, %v2835
    %v2837 = vsel %vm2017, %v2836, %v2832
    %v2838 = vlaneseq
    %v2839 = vshrl.u32 %v2838, 7
    %v2840 = vsub.s32 %v2019, %v2839
    %v2841 = vrot.slane %v1760, %v2840
    %v2842 = vsel %vm2024, %v2841, %v2837
    %v2843 = vlaneseq
    %v2844 = vshrl.u32 %v2843, 7
    %v2845 = vsub.s32 %v139, %v2844
    %v2846 = vrot.slane %v1763, %v2845
    %v2847 = vlaneseq
    %v2848 = vshrl.u32 %v2847, 7
    %v2849 = vsub.s32 %v2005, %v2848
    %v2850 = vrot.slane %v1766, %v2849
    %v2851 = vsel %vm2010, %v2850, %v2846
    %v2852 = vlaneseq
    %v2853 = vshrl.u32 %v2852, 7
    %v2854 = vsub.s32 %v2012, %v2853
    %v2855 = vrot.slane %v1769, %v2854
    %v2856 = vsel %vm2017, %v2855, %v2851
    %v2857 = vlaneseq
    %v2858 = vshrl.u32 %v2857, 7
    %v2859 = vsub.s32 %v2019, %v2858
    %v2860 = vrot.slane %v1772, %v2859
    %v2861 = vsel %vm2024, %v2860, %v2856
    %v2862 = vlaneseq
    %v2863 = vshrl.u32 %v2862, 7
    %v2864 = vsub.s32 %v139, %v2863
    %v2865 = vrot.slane %v1775, %v2864
    %v2866 = vlaneseq
    %v2867 = vshrl.u32 %v2866, 7
    %v2868 = vsub.s32 %v2005, %v2867
    %v2869 = vrot.slane %v1778, %v2868
    %v2870 = vsel %vm2010, %v2869, %v2865
    %v2871 = vlaneseq
    %v2872 = vshrl.u32 %v2871, 7
    %v2873 = vsub.s32 %v2012, %v2872
    %v2874 = vrot.slane %v1781, %v2873
    %v2875 = vsel %vm2017, %v2874, %v2870
    %v2876 = vlaneseq
    %v2877 = vshrl.u32 %v2876, 7
    %v2878 = vsub.s32 %v2019, %v2877
    %v2879 = vrot.slane %v1784, %v2878
    %v2880 = vsel %vm2024, %v2879, %v2875
    %v2881 = vlaneseq
    %v2882 = vshrl.u32 %v2881, 7
    %v2883 = vsub.s32 %v139, %v2882
    %v2884 = vrot.slane %v1787, %v2883
    %v2885 = vlaneseq
    %v2886 = vshrl.u32 %v2885, 7
    %v2887 = vsub.s32 %v2005, %v2886
    %v2888 = vrot.slane %v1790, %v2887
    %v2889 = vsel %vm2010, %v2888, %v2884
    %v2890 = vlaneseq
    %v2891 = vshrl.u32 %v2890, 7
    %v2892 = vsub.s32 %v2012, %v2891
    %v2893 = vrot.slane %v1793, %v2892
    %v2894 = vsel %vm2017, %v2893, %v2889
    %v2895 = vlaneseq
    %v2896 = vshrl.u32 %v2895, 7
    %v2897 = vsub.s32 %v2019, %v2896
    %v2898 = vrot.slane %v1796, %v2897
    %v2899 = vsel %vm2024, %v2898, %v2894
    %v2900 = vlaneseq
    %v2901 = vshrl.u32 %v2900, 7
    %v2902 = vsub.s32 %v139, %v2901
    %v2903 = vrot.slane %v1799, %v2902
    %v2904 = vlaneseq
    %v2905 = vshrl.u32 %v2904, 7
    %v2906 = vsub.s32 %v2005, %v2905
    %v2907 = vrot.slane %v1802, %v2906
    %v2908 = vsel %vm2010, %v2907, %v2903
    %v2909 = vlaneseq
    %v2910 = vshrl.u32 %v2909, 7
    %v2911 = vsub.s32 %v2012, %v2910
    %v2912 = vrot.slane %v1805, %v2911
    %v2913 = vsel %vm2017, %v2912, %v2908
    %v2914 = vlaneseq
    %v2915 = vshrl.u32 %v2914, 7
    %v2916 = vsub.s32 %v2019, %v2915
    %v2917 = vrot.slane %v1808, %v2916
    %v2918 = vsel %vm2024, %v2917, %v2913
    %v2919 = vlaneseq
    %v2920 = vshrl.u32 %v2919, 7
    %v2921 = vsub.s32 %v139, %v2920
    %v2922 = vrot.slane %v1811, %v2921
    %v2923 = vlaneseq
    %v2924 = vshrl.u32 %v2923, 7
    %v2925 = vsub.s32 %v2005, %v2924
    %v2926 = vrot.slane %v1814, %v2925
    %v2927 = vsel %vm2010, %v2926, %v2922
    %v2928 = vlaneseq
    %v2929 = vshrl.u32 %v2928, 7
    %v2930 = vsub.s32 %v2012, %v2929
    %v2931 = vrot.slane %v1817, %v2930
    %v2932 = vsel %vm2017, %v2931, %v2927
    %v2933 = vlaneseq
    %v2934 = vshrl.u32 %v2933, 7
    %v2935 = vsub.s32 %v2019, %v2934
    %v2936 = vrot.slane %v1820, %v2935
    %v2937 = vsel %vm2024, %v2936, %v2932
    %v2938 = vlaneseq
    %v2939 = vshrl.u32 %v2938, 7
    %v2940 = vsub.s32 %v139, %v2939
    %v2941 = vrot.slane %v1823, %v2940
    %v2942 = vlaneseq
    %v2943 = vshrl.u32 %v2942, 7
    %v2944 = vsub.s32 %v2005, %v2943
    %v2945 = vrot.slane %v1826, %v2944
    %v2946 = vsel %vm2010, %v2945, %v2941
    %v2947 = vlaneseq
    %v2948 = vshrl.u32 %v2947, 7
    %v2949 = vsub.s32 %v2012, %v2948
    %v2950 = vrot.slane %v1829, %v2949
    %v2951 = vsel %vm2017, %v2950, %v2946
    %v2952 = vlaneseq
    %v2953 = vshrl.u32 %v2952, 7
    %v2954 = vsub.s32 %v2019, %v2953
    %v2955 = vrot.slane %v1832, %v2954
    %v2956 = vsel %vm2024, %v2955, %v2951
    %v2957 = vlaneseq
    %v2958 = vshrl.u32 %v2957, 7
    %v2959 = vsub.s32 %v139, %v2958
    %v2960 = vrot.slane %v1835, %v2959
    %v2961 = vlaneseq
    %v2962 = vshrl.u32 %v2961, 7
    %v2963 = vsub.s32 %v2005, %v2962
    %v2964 = vrot.slane %v1838, %v2963
    %v2965 = vsel %vm2010, %v2964, %v2960
    %v2966 = vlaneseq
    %v2967 = vshrl.u32 %v2966, 7
    %v2968 = vsub.s32 %v2012, %v2967
    %v2969 = vrot.slane %v1841, %v2968
    %v2970 = vsel %vm2017, %v2969, %v2965
    %v2971 = vlaneseq
    %v2972 = vshrl.u32 %v2971, 7
    %v2973 = vsub.s32 %v2019, %v2972
    %v2974 = vrot.slane %v1844, %v2973
    %v2975 = vsel %vm2024, %v2974, %v2970
    %v2976 = vlaneseq
    %v2977 = vshrl.u32 %v2976, 7
    %v2978 = vsub.s32 %v139, %v2977
    %v2979 = vrot.slane %v1847, %v2978
    %v2980 = vlaneseq
    %v2981 = vshrl.u32 %v2980, 7
    %v2982 = vsub.s32 %v2005, %v2981
    %v2983 = vrot.slane %v1850, %v2982
    %v2984 = vsel %vm2010, %v2983, %v2979
    %v2985 = vlaneseq
    %v2986 = vshrl.u32 %v2985, 7
    %v2987 = vsub.s32 %v2012, %v2986
    %v2988 = vrot.slane %v1853, %v2987
    %v2989 = vsel %vm2017, %v2988, %v2984
    %v2990 = vlaneseq
    %v2991 = vshrl.u32 %v2990, 7
    %v2992 = vsub.s32 %v2019, %v2991
    %v2993 = vrot.slane %v1856, %v2992
    %v2994 = vsel %vm2024, %v2993, %v2989
    %v2995 = vlaneseq
    %v2996 = vshrl.u32 %v2995, 7
    %v2997 = vsub.s32 %v139, %v2996
    %v2998 = vrot.slane %v1859, %v2997
    %v2999 = vlaneseq
    %v3000 = vshrl.u32 %v2999, 7
    %v3001 = vsub.s32 %v2005, %v3000
    %v3002 = vrot.slane %v1862, %v3001
    %v3003 = vsel %vm2010, %v3002, %v2998
    %v3004 = vlaneseq
    %v3005 = vshrl.u32 %v3004, 7
    %v3006 = vsub.s32 %v2012, %v3005
    %v3007 = vrot.slane %v1865, %v3006
    %v3008 = vsel %vm2017, %v3007, %v3003
    %v3009 = vlaneseq
    %v3010 = vshrl.u32 %v3009, 7
    %v3011 = vsub.s32 %v2019, %v3010
    %v3012 = vrot.slane %v1868, %v3011
    %v3013 = vsel %vm2024, %v3012, %v3008
    %v3014 = vlaneseq
    %v3015 = vshrl.u32 %v3014, 7
    %v3016 = vsub.s32 %v139, %v3015
    %v3017 = vrot.slane %v1871, %v3016
    %v3018 = vlaneseq
    %v3019 = vshrl.u32 %v3018, 7
    %v3020 = vsub.s32 %v2005, %v3019
    %v3021 = vrot.slane %v1874, %v3020
    %v3022 = vsel %vm2010, %v3021, %v3017
    %v3023 = vlaneseq
    %v3024 = vshrl.u32 %v3023, 7
    %v3025 = vsub.s32 %v2012, %v3024
    %v3026 = vrot.slane %v1877, %v3025
    %v3027 = vsel %vm2017, %v3026, %v3022
    %v3028 = vlaneseq
    %v3029 = vshrl.u32 %v3028, 7
    %v3030 = vsub.s32 %v2019, %v3029
    %v3031 = vrot.slane %v1880, %v3030
    %v3032 = vsel %vm2024, %v3031, %v3027
    %v3033 = vlaneseq
    %v3034 = vshrl.u32 %v3033, 7
    %v3035 = vsub.s32 %v139, %v3034
    %v3036 = vrot.slane %v1883, %v3035
    %v3037 = vlaneseq
    %v3038 = vshrl.u32 %v3037, 7
    %v3039 = vsub.s32 %v2005, %v3038
    %v3040 = vrot.slane %v1886, %v3039
    %v3041 = vsel %vm2010, %v3040, %v3036
    %v3042 = vlaneseq
    %v3043 = vshrl.u32 %v3042, 7
    %v3044 = vsub.s32 %v2012, %v3043
    %v3045 = vrot.slane %v1889, %v3044
    %v3046 = vsel %vm2017, %v3045, %v3041
    %v3047 = vlaneseq
    %v3048 = vshrl.u32 %v3047, 7
    %v3049 = vsub.s32 %v2019, %v3048
    %v3050 = vrot.slane %v1892, %v3049
    %v3051 = vsel %vm2024, %v3050, %v3046
    %v3052 = vlaneseq
    %v3053 = vshrl.u32 %v3052, 7
    %v3054 = vsub.s32 %v139, %v3053
    %v3055 = vrot.slane %v1895, %v3054
    %v3056 = vlaneseq
    %v3057 = vshrl.u32 %v3056, 7
    %v3058 = vsub.s32 %v2005, %v3057
    %v3059 = vrot.slane %v1898, %v3058
    %v3060 = vsel %vm2010, %v3059, %v3055
    %v3061 = vlaneseq
    %v3062 = vshrl.u32 %v3061, 7
    %v3063 = vsub.s32 %v2012, %v3062
    %v3064 = vrot.slane %v1901, %v3063
    %v3065 = vsel %vm2017, %v3064, %v3060
    %v3066 = vlaneseq
    %v3067 = vshrl.u32 %v3066, 7
    %v3068 = vsub.s32 %v2019, %v3067
    %v3069 = vrot.slane %v1904, %v3068
    %v3070 = vsel %vm2024, %v3069, %v3065
    %v3071 = vlaneseq
    %v3072 = vshrl.u32 %v3071, 7
    %v3073 = vsub.s32 %v139, %v3072
    %v3074 = vrot.slane %v1907, %v3073
    %v3075 = vlaneseq
    %v3076 = vshrl.u32 %v3075, 7
    %v3077 = vsub.s32 %v2005, %v3076
    %v3078 = vrot.slane %v1910, %v3077
    %v3079 = vsel %vm2010, %v3078, %v3074
    %v3080 = vlaneseq
    %v3081 = vshrl.u32 %v3080, 7
    %v3082 = vsub.s32 %v2012, %v3081
    %v3083 = vrot.slane %v1913, %v3082
    %v3084 = vsel %vm2017, %v3083, %v3079
    %v3085 = vlaneseq
    %v3086 = vshrl.u32 %v3085, 7
    %v3087 = vsub.s32 %v2019, %v3086
    %v3088 = vrot.slane %v1916, %v3087
    %v3089 = vsel %vm2024, %v3088, %v3084
    %v3090 = vlaneseq
    %v3091 = vshrl.u32 %v3090, 7
    %v3092 = vsub.s32 %v139, %v3091
    %v3093 = vrot.slane %v1919, %v3092
    %v3094 = vlaneseq
    %v3095 = vshrl.u32 %v3094, 7
    %v3096 = vsub.s32 %v2005, %v3095
    %v3097 = vrot.slane %v1922, %v3096
    %v3098 = vsel %vm2010, %v3097, %v3093
    %v3099 = vlaneseq
    %v3100 = vshrl.u32 %v3099, 7
    %v3101 = vsub.s32 %v2012, %v3100
    %v3102 = vrot.slane %v1925, %v3101
    %v3103 = vsel %vm2017, %v3102, %v3098
    %v3104 = vlaneseq
    %v3105 = vshrl.u32 %v3104, 7
    %v3106 = vsub.s32 %v2019, %v3105
    %v3107 = vrot.slane %v1928, %v3106
    %v3108 = vsel %vm2024, %v3107, %v3103
    %v3109 = vlaneseq
    %v3110 = vshrl.u32 %v3109, 7
    %v3111 = vsub.s32 %v139, %v3110
    %v3112 = vrot.slane %v1931, %v3111
    %v3113 = vlaneseq
    %v3114 = vshrl.u32 %v3113, 7
    %v3115 = vsub.s32 %v2005, %v3114
    %v3116 = vrot.slane %v1934, %v3115
    %v3117 = vsel %vm2010, %v3116, %v3112
    %v3118 = vlaneseq
    %v3119 = vshrl.u32 %v3118, 7
    %v3120 = vsub.s32 %v2012, %v3119
    %v3121 = vrot.slane %v1937, %v3120
    %v3122 = vsel %vm2017, %v3121, %v3117
    %v3123 = vlaneseq
    %v3124 = vshrl.u32 %v3123, 7
    %v3125 = vsub.s32 %v2019, %v3124
    %v3126 = vrot.slane %v1940, %v3125
    %v3127 = vsel %vm2024, %v3126, %v3122
    %v3128 = vlaneseq
    %v3129 = vshrl.u32 %v3128, 7
    %v3130 = vsub.s32 %v139, %v3129
    %v3131 = vrot.slane %v1943, %v3130
    %v3132 = vlaneseq
    %v3133 = vshrl.u32 %v3132, 7
    %v3134 = vsub.s32 %v2005, %v3133
    %v3135 = vrot.slane %v1946, %v3134
    %v3136 = vsel %vm2010, %v3135, %v3131
    %v3137 = vlaneseq
    %v3138 = vshrl.u32 %v3137, 7
    %v3139 = vsub.s32 %v2012, %v3138
    %v3140 = vrot.slane %v1949, %v3139
    %v3141 = vsel %vm2017, %v3140, %v3136
    %v3142 = vlaneseq
    %v3143 = vshrl.u32 %v3142, 7
    %v3144 = vsub.s32 %v2019, %v3143
    %v3145 = vrot.slane %v1952, %v3144
    %v3146 = vsel %vm2024, %v3145, %v3141
    %v3147 = vlaneseq
    %v3148 = vshrl.u32 %v3147, 7
    %v3149 = vsub.s32 %v139, %v3148
    %v3150 = vrot.slane %v1955, %v3149
    %v3151 = vlaneseq
    %v3152 = vshrl.u32 %v3151, 7
    %v3153 = vsub.s32 %v2005, %v3152
    %v3154 = vrot.slane %v1958, %v3153
    %v3155 = vsel %vm2010, %v3154, %v3150
    %v3156 = vlaneseq
    %v3157 = vshrl.u32 %v3156, 7
    %v3158 = vsub.s32 %v2012, %v3157
    %v3159 = vrot.slane %v1961, %v3158
    %v3160 = vsel %vm2017, %v3159, %v3155
    %v3161 = vlaneseq
    %v3162 = vshrl.u32 %v3161, 7
    %v3163 = vsub.s32 %v2019, %v3162
    %v3164 = vrot.slane %v1964, %v3163
    %v3165 = vsel %vm2024, %v3164, %v3160
    %v3166 = vlaneseq
    %v3167 = vshrl.u32 %v3166, 7
    %v3168 = vsub.s32 %v139, %v3167
    %v3169 = vrot.slane %v1967, %v3168
    %v3170 = vlaneseq
    %v3171 = vshrl.u32 %v3170, 7
    %v3172 = vsub.s32 %v2005, %v3171
    %v3173 = vrot.slane %v1970, %v3172
    %v3174 = vsel %vm2010, %v3173, %v3169
    %v3175 = vlaneseq
    %v3176 = vshrl.u32 %v3175, 7
    %v3177 = vsub.s32 %v2012, %v3176
    %v3178 = vrot.slane %v1973, %v3177
    %v3179 = vsel %vm2017, %v3178, %v3174
    %v3180 = vlaneseq
    %v3181 = vshrl.u32 %v3180, 7
    %v3182 = vsub.s32 %v2019, %v3181
    %v3183 = vrot.slane %v1976, %v3182
    %v3184 = vsel %vm2024, %v3183, %v3179
    %v3185 = vlaneseq
    %v3186 = vshrl.u32 %v3185, 7
    %v3187 = vsub.s32 %v139, %v3186
    %v3188 = vrot.slane %v1979, %v3187
    %v3189 = vlaneseq
    %v3190 = vshrl.u32 %v3189, 7
    %v3191 = vsub.s32 %v2005, %v3190
    %v3192 = vrot.slane %v1982, %v3191
    %v3193 = vsel %vm2010, %v3192, %v3188
    %v3194 = vlaneseq
    %v3195 = vshrl.u32 %v3194, 7
    %v3196 = vsub.s32 %v2012, %v3195
    %v3197 = vrot.slane %v1985, %v3196
    %v3198 = vsel %vm2017, %v3197, %v3193
    %v3199 = vlaneseq
    %v3200 = vshrl.u32 %v3199, 7
    %v3201 = vsub.s32 %v2019, %v3200
    %v3202 = vrot.slane %v1988, %v3201
    %v3203 = vsel %vm2024, %v3202, %v3198
    %v3204 = vlaneseq
    %v3205 = vshrl.u32 %v3204, 7
    %v3206 = vsub.s32 %v139, %v3205
    %v3207 = vrot.slane %v1991, %v3206
    %v3208 = vlaneseq
    %v3209 = vshrl.u32 %v3208, 7
    %v3210 = vsub.s32 %v2005, %v3209
    %v3211 = vrot.slane %v1994, %v3210
    %v3212 = vsel %vm2010, %v3211, %v3207
    %v3213 = vlaneseq
    %v3214 = vshrl.u32 %v3213, 7
    %v3215 = vsub.s32 %v2012, %v3214
    %v3216 = vrot.slane %v1997, %v3215
    %v3217 = vsel %vm2017, %v3216, %v3212
    %v3218 = vlaneseq
    %v3219 = vshrl.u32 %v3218, 7
    %v3220 = vsub.s32 %v2019, %v3219
    %v3221 = vrot.slane %v2000, %v3220
    %v3222 = vsel %vm2024, %v3221, %v3217
    %vm3223 = vcmask 1041409
    %v3224 = vsel %vm3223, %v2044, %v2025
    %vm3225 = vcmask 1042434
    %v3226 = vsel %vm3225, %v2063, %v3224
    %vm3227 = vcmask 1043459
    %v3228 = vsel %vm3227, %v2082, %v3226
    %vm3229 = vcmask 1044484
    %v3230 = vsel %vm3229, %v2101, %v3228
    %vm3231 = vcmask 1045509
    %v3232 = vsel %vm3231, %v2120, %v3230
    %vm3233 = vcmask 1046534
    %v3234 = vsel %vm3233, %v2139, %v3232
    %vm3235 = vcmask 1047559
    %v3236 = vsel %vm3235, %v2158, %v3234
    %v3237 = vsel %vm3223, %v2196, %v2177
    %v3238 = vsel %vm3225, %v2215, %v3237
    %v3239 = vsel %vm3227, %v2234, %v3238
    %v3240 = vsel %vm3229, %v2253, %v3239
    %v3241 = vsel %vm3231, %v2272, %v3240
    %v3242 = vsel %vm3233, %v2291, %v3241
    %v3243 = vsel %vm3235, %v2310, %v3242
    %v3244 = vsel %vm3223, %v2348, %v2329
    %v3245 = vsel %vm3225, %v2367, %v3244
    %v3246 = vsel %vm3227, %v2386, %v3245
    %v3247 = vsel %vm3229, %v2405, %v3246
    %v3248 = vsel %vm3231, %v2424, %v3247
    %v3249 = vsel %vm3233, %v2443, %v3248
    %v3250 = vsel %vm3235, %v2462, %v3249
    %v3251 = vsel %vm3223, %v2500, %v2481
    %v3252 = vsel %vm3225, %v2519, %v3251
    %v3253 = vsel %vm3227, %v2538, %v3252
    %v3254 = vsel %vm3229, %v2557, %v3253
    %v3255 = vsel %vm3231, %v2576, %v3254
    %v3256 = vsel %vm3233, %v2595, %v3255
    %v3257 = vsel %vm3235, %v2614, %v3256
    %v3258 = vsel %vm3223, %v2652, %v2633
    %v3259 = vsel %vm3225, %v2671, %v3258
    %v3260 = vsel %vm3227, %v2690, %v3259
    %v3261 = vsel %vm3229, %v2709, %v3260
    %v3262 = vsel %vm3231, %v2728, %v3261
    %v3263 = vsel %vm3233, %v2747, %v3262
    %v3264 = vsel %vm3235, %v2766, %v3263
    %v3265 = vsel %vm3223, %v2804, %v2785
    %v3266 = vsel %vm3225, %v2823, %v3265
    %v3267 = vsel %vm3227, %v2842, %v3266
    %v3268 = vsel %vm3229, %v2861, %v3267
    %v3269 = vsel %vm3231, %v2880, %v3268
    %v3270 = vsel %vm3233, %v2899, %v3269
    %v3271 = vsel %vm3235, %v2918, %v3270
    %v3272 = vsel %vm3223, %v2956, %v2937
    %v3273 = vsel %vm3225, %v2975, %v3272
    %v3274 = vsel %vm3227, %v2994, %v3273
    %v3275 = vsel %vm3229, %v3013, %v3274
    %v3276 = vsel %vm3231, %v3032, %v3275
    %v3277 = vsel %vm3233, %v3051, %v3276
    %v3278 = vsel %vm3235, %v3070, %v3277
    %v3279 = vsel %vm3223, %v3108, %v3089
    %v3280 = vsel %vm3225, %v3127, %v3279
    %v3281 = vsel %vm3227, %v3146, %v3280
    %v3282 = vsel %vm3229, %v3165, %v3281
    %v3283 = vsel %vm3231, %v3184, %v3282
    %v3284 = vsel %vm3233, %v3203, %v3283
    %v3285 = vsel %vm3235, %v3222, %v3284
    %v3294 = vsel %vm194, %v3236, 0.0
    %3295 = vadd.xlane.f32.xlu0 %v3294
    %v3296 = vpop.xlane.xlu0 %3295
    %v3297 = vsel %vm194, %v3243, 0.0
    %3298 = vadd.xlane.f32.xlu0 %v3297
    %v3299 = vpop.xlane.xlu0 %3298
    %v3300 = vsel %vm194, %v3250, 0.0
    %3301 = vadd.xlane.f32.xlu0 %v3300
    %v3302 = vpop.xlane.xlu0 %3301
    %v3303 = vsel %vm194, %v3257, 0.0
    %3304 = vadd.xlane.f32.xlu0 %v3303
    %v3305 = vpop.xlane.xlu0 %3304
    %v3306 = vsel %vm194, %v3264, 0.0
    %3307 = vadd.xlane.f32.xlu0 %v3306
    %v3308 = vpop.xlane.xlu0 %3307
    %v3309 = vsel %vm194, %v3271, 0.0
    %3310 = vadd.xlane.f32.xlu0 %v3309
    %v3311 = vpop.xlane.xlu0 %3310
    %v3312 = vsel %vm194, %v3278, 0.0
    %3313 = vadd.xlane.f32.xlu0 %v3312
    %v3314 = vpop.xlane.xlu0 %3313
    %v3315 = vsel %vm194, %v3285, 0.0
    %3316 = vadd.xlane.f32.xlu0 %v3315
    %v3317 = vpop.xlane.xlu0 %3316
    %v3318 = vld [vmem:[#allocation5] sm:$0xff]
    %v3319 = vld [vmem:[#allocation5 + $0x8] sm:$0xff]
    %v3320 = vld [vmem:[#allocation5 + $0x10] sm:$0xff]
    %v3321 = vld [vmem:[#allocation5 + $0x18] sm:$0xff]
    %v3322 = vld [vmem:[#allocation7] sm:$0xff]
    %v3323 = vld [vmem:[#allocation7 + $0x8] sm:$0xff]
    %v3324 = vld [vmem:[#allocation7 + $0x10] sm:$0xff]
    %v3325 = vld [vmem:[#allocation7 + $0x18] sm:$0xff]
    %v3334 = vlaneseq
    %v3335 = vshrl.u32 %v3334, 7
    %v3336 = vsub.s32 %v139, %v3335
    %v3337 = vrot.slane %v3296, %v3336
    %v3338 = vlaneseq
    %v3339 = vshrl.u32 %v3338, 7
    %v3340 = vsub.s32 %v2005, %v3339
    %v3341 = vrot.slane %v3299, %v3340
    %v3342 = vsel %vm2010, %v3341, %v3337
    %v3343 = vlaneseq
    %v3344 = vshrl.u32 %v3343, 7
    %v3345 = vsub.s32 %v2012, %v3344
    %v3346 = vrot.slane %v3302, %v3345
    %v3347 = vsel %vm2017, %v3346, %v3342
    %v3348 = vlaneseq
    %v3349 = vshrl.u32 %v3348, 7
    %v3350 = vsub.s32 %v2019, %v3349
    %v3351 = vrot.slane %v3305, %v3350
    %v3352 = vsel %vm2024, %v3351, %v3347
    %v3353 = vlaneseq
    %v3354 = vshrl.u32 %v3353, 7
    %v3355 = vsub.s32 %v139, %v3354
    %v3356 = vrot.slane %v3308, %v3355
    %v3357 = vlaneseq
    %v3358 = vshrl.u32 %v3357, 7
    %v3359 = vsub.s32 %v2005, %v3358
    %v3360 = vrot.slane %v3311, %v3359
    %v3361 = vsel %vm2010, %v3360, %v3356
    %v3362 = vlaneseq
    %v3363 = vshrl.u32 %v3362, 7
    %v3364 = vsub.s32 %v2012, %v3363
    %v3365 = vrot.slane %v3314, %v3364
    %v3366 = vsel %vm2017, %v3365, %v3361
    %v3367 = vlaneseq
    %v3368 = vshrl.u32 %v3367, 7
    %v3369 = vsub.s32 %v2019, %v3368
    %v3370 = vrot.slane %v3317, %v3369
    %v3371 = vsel %vm2024, %v3370, %v3366
    %v3372 = vsel %vm3223, %v3371, %v3352
    %v3373 = vsel %vm194, %v3372, 0
    %3375 = vmatprep.subr.mxu0 0.0
    %3376 = vmatpush1.msra.mxu0 %v3322
    %3377 = vmatprep.subr.mxu0 0.0
    %3378 = vmatpush1.msra.mxu0 %v3323
    %3379 = vmatprep.subr.mxu0 0.0
    %3380 = vmatpush1.msra.mxu0 %v3324
    %3381 = vmatprep.subr.mxu0 0.0
    %3382 = vmatpush1.msra.mxu0 %v3325
    %3383 = vmatprep.subr.mxu0 0.0
    %3384 = vmatpush1.msra.mxu0 0.0
    %3385 = vmatprep.subr.mxu0 0.0
    %3386 = vmatpush1.msra.mxu0 0.0
    %3387 = vmatprep.subr.mxu0 0.0
    %3388 = vmatpush1.msra.mxu0 0.0
    %3389 = vmatprep.subr.mxu0 0.0
    %3390 = vmatpush1.msra.mxu0 0.0
    %3391 = vmatprep.subr.mxu0 0.0
    %3392 = vmatpush1.msra.mxu0 0.0
    %3393 = vmatprep.subr.mxu0 0.0
    %3394 = vmatpush1.msra.mxu0 0.0
    %3395 = vmatprep.subr.mxu0 0.0
    %3396 = vmatpush1.msra.mxu0 0.0
    %3397 = vmatprep.subr.mxu0 0.0
    %3398 = vmatpush1.msra.mxu0 0.0
    %3399 = vmatprep.subr.mxu0 0.0
    %3400 = vmatpush1.msra.mxu0 0.0
    %3401 = vmatprep.subr.mxu0 0.0
    %3402 = vmatpush1.msra.mxu0 0.0
    %3403 = vmatprep.subr.mxu0 0.0
    %3404 = vmatpush1.msra.mxu0 0.0
    %3405 = vmatprep.subr.mxu0 0.0
    %3406 = vmatpush1.msra.mxu0 0.0
    %3407 = vmatprep.subr.mxu0 0.0
    %3408 = vmatpush1.msra.mxu0 0.0
    %3409 = vmatprep.subr.mxu0 0.0
    %3410 = vmatpush1.msra.mxu0 0.0
    %3411 = vmatprep.subr.mxu0 0.0
    %3412 = vmatpush1.msra.mxu0 0.0
    %3413 = vmatprep.subr.mxu0 0.0
    %3414 = vmatpush1.msra.mxu0 0.0
    %3415 = vmatprep.subr.mxu0 0.0
    %3416 = vmatpush1.msra.mxu0 0.0
    %3417 = vmatprep.subr.mxu0 0.0
    %3418 = vmatpush1.msra.mxu0 0.0
    %3419 = vmatprep.subr.mxu0 0.0
    %3420 = vmatpush1.msra.mxu0 0.0
    %3421 = vmatprep.subr.mxu0 0.0
    %3422 = vmatpush1.msra.mxu0 0.0
    %3423 = vmatprep.subr.mxu0 0.0
    %3424 = vmatpush1.msra.mxu0 0.0
    %3425 = vmatprep.subr.mxu0 0.0
    %3426 = vmatpush1.msra.mxu0 0.0
    %3427 = vmatprep.subr.mxu0 0.0
    %3428 = vmatpush1.msra.mxu0 0.0
    %3429 = vmatprep.subr.mxu0 0.0
    %3430 = vmatpush1.msra.mxu0 0.0
    %3431 = vmatprep.subr.mxu0 0.0
    %3432 = vmatpush1.msra.mxu0 0.0
    %3433 = vmatprep.subr.mxu0 0.0
    %3434 = vmatpush1.msra.mxu0 0.0
    %3435 = vmatprep.subr.mxu0 0.0
    %3436 = vmatpush1.msra.mxu0 0.0
    %3437 = vmatprep.subr.mxu0 0.0
    %3438 = vmatpush1.msra.mxu0 0.0
    %3439 = vmatprep.mubr.f32.mxu0 0.0
    %3440 = vmatmul.mubr.f32.gmra.mrb[0].mxu0 %v3373
    %v3441 = vpop.f32.mrb[0].mxu0
    %v3442 = vadd.f32 0.0, %v3441
    %v3443 = vpop.f32.mrb[0].mxu0
    %3444 = vdwg.mxu0
    %v3445 = vsel %vm194, %v71, 0
    %3447 = vmatprep.subr.mxu0 0.0
    %3448 = vmatpush1.msra.mxu0 %v3318
    %3449 = vmatprep.subr.mxu0 0.0
    %3450 = vmatpush1.msra.mxu0 %v3319
    %3451 = vmatprep.subr.mxu0 0.0
    %3452 = vmatpush1.msra.mxu0 %v3320
    %3453 = vmatprep.subr.mxu0 0.0
    %3454 = vmatpush1.msra.mxu0 %v3321
    %3455 = vmatprep.subr.mxu0 0.0
    %3456 = vmatpush1.msra.mxu0 0.0
    %3457 = vmatprep.subr.mxu0 0.0
    %3458 = vmatpush1.msra.mxu0 0.0
    %3459 = vmatprep.subr.mxu0 0.0
    %3460 = vmatpush1.msra.mxu0 0.0
    %3461 = vmatprep.subr.mxu0 0.0
    %3462 = vmatpush1.msra.mxu0 0.0
    %3463 = vmatprep.subr.mxu0 0.0
    %3464 = vmatpush1.msra.mxu0 0.0
    %3465 = vmatprep.subr.mxu0 0.0
    %3466 = vmatpush1.msra.mxu0 0.0
    %3467 = vmatprep.subr.mxu0 0.0
    %3468 = vmatpush1.msra.mxu0 0.0
    %3469 = vmatprep.subr.mxu0 0.0
    %3470 = vmatpush1.msra.mxu0 0.0
    %3471 = vmatprep.subr.mxu0 0.0
    %3472 = vmatpush1.msra.mxu0 0.0
    %3473 = vmatprep.subr.mxu0 0.0
    %3474 = vmatpush1.msra.mxu0 0.0
    %3475 = vmatprep.subr.mxu0 0.0
    %3476 = vmatpush1.msra.mxu0 0.0
    %3477 = vmatprep.subr.mxu0 0.0
    %3478 = vmatpush1.msra.mxu0 0.0
    %3479 = vmatprep.subr.mxu0 0.0
    %3480 = vmatpush1.msra.mxu0 0.0
    %3481 = vmatprep.subr.mxu0 0.0
    %3482 = vmatpush1.msra.mxu0 0.0
    %3483 = vmatprep.subr.mxu0 0.0
    %3484 = vmatpush1.msra.mxu0 0.0
    %3485 = vmatprep.subr.mxu0 0.0
    %3486 = vmatpush1.msra.mxu0 0.0
    %3487 = vmatprep.subr.mxu0 0.0
    %3488 = vmatpush1.msra.mxu0 0.0
    %3489 = vmatprep.subr.mxu0 0.0
    %3490 = vmatpush1.msra.mxu0 0.0
    %3491 = vmatprep.subr.mxu0 0.0
    %3492 = vmatpush1.msra.mxu0 0.0
    %3493 = vmatprep.subr.mxu0 0.0
    %3494 = vmatpush1.msra.mxu0 0.0
    %3495 = vmatprep.subr.mxu0 0.0
    %3496 = vmatpush1.msra.mxu0 0.0
    %3497 = vmatprep.subr.mxu0 0.0
    %3498 = vmatpush1.msra.mxu0 0.0
    %3499 = vmatprep.subr.mxu0 0.0
    %3500 = vmatpush1.msra.mxu0 0.0
    %3501 = vmatprep.subr.mxu0 0.0
    %3502 = vmatpush1.msra.mxu0 0.0
    %3503 = vmatprep.subr.mxu0 0.0
    %3504 = vmatpush1.msra.mxu0 0.0
    %3505 = vmatprep.subr.mxu0 0.0
    %3506 = vmatpush1.msra.mxu0 0.0
    %3507 = vmatprep.subr.mxu0 0.0
    %3508 = vmatpush1.msra.mxu0 0.0
    %3509 = vmatprep.subr.mxu0 0.0
    %3510 = vmatpush1.msra.mxu0 0.0
    %3511 = vmatprep.mubr.f32.mxu0 0.0
    %3512 = vmatmul.mubr.f32.gmra.mrb[0].mxu0 %v3445
    %v3513 = vpop.f32.mrb[0].mxu0
    %v3514 = vadd.f32 %v3442, %v3513
    %v3515 = vpop.f32.mrb[0].mxu0
    %3516 = vdwg.mxu0
    %v3517 = vmax.f32 %v3514, 0.0
    %v3518 = vld [vmem:[#allocation8] sm:$0xff]
    %v3519 = vld [vmem:[#allocation8 + $0x8] sm:$0xff]
    %v3520 = vld [vmem:[#allocation8 + $0x10] sm:$0xff]
    %v3521 = vld [vmem:[#allocation8 + $0x18] sm:$0xff]
    %v3522 = vld [vmem:[#allocation8 + $0x20] sm:$0xff]
    %v3523 = vld [vmem:[#allocation8 + $0x28] sm:$0xff]
    %v3524 = vld [vmem:[#allocation8 + $0x30] sm:$0xff]
    %v3525 = vld [vmem:[#allocation8 + $0x38] sm:$0xff]
    %vm3526 = vcmask 523264
    %v3528 = vsel %vm3526, %v3517, 0
    %3530 = vmatprep.subr.mxu0 0.0
    %3531 = vmatpush1.msra.mxu0 %v3518
    %3532 = vmatprep.subr.mxu0 0.0
    %3533 = vmatpush1.msra.mxu0 %v3519
    %3534 = vmatprep.subr.mxu0 0.0
    %3535 = vmatpush1.msra.mxu0 %v3520
    %3536 = vmatprep.subr.mxu0 0.0
    %3537 = vmatpush1.msra.mxu0 %v3521
    %3538 = vmatprep.subr.mxu0 0.0
    %3539 = vmatpush1.msra.mxu0 %v3522
    %3540 = vmatprep.subr.mxu0 0.0
    %3541 = vmatpush1.msra.mxu0 %v3523
    %3542 = vmatprep.subr.mxu0 0.0
    %3543 = vmatpush1.msra.mxu0 %v3524
    %3544 = vmatprep.subr.mxu0 0.0
    %3545 = vmatpush1.msra.mxu0 %v3525
    %3546 = vmatprep.subr.mxu0 0.0
    %3547 = vmatpush1.msra.mxu0 0.0
    %3548 = vmatprep.subr.mxu0 0.0
    %3549 = vmatpush1.msra.mxu0 0.0
    %3550 = vmatprep.subr.mxu0 0.0
    %3551 = vmatpush1.msra.mxu0 0.0
    %3552 = vmatprep.subr.mxu0 0.0
    %3553 = vmatpush1.msra.mxu0 0.0
    %3554 = vmatprep.subr.mxu0 0.0
    %3555 = vmatpush1.msra.mxu0 0.0
    %3556 = vmatprep.subr.mxu0 0.0
    %3557 = vmatpush1.msra.mxu0 0.0
    %3558 = vmatprep.subr.mxu0 0.0
    %3559 = vmatpush1.msra.mxu0 0.0
    %3560 = vmatprep.subr.mxu0 0.0
    %3561 = vmatpush1.msra.mxu0 0.0
    %3562 = vmatprep.subr.mxu0 0.0
    %3563 = vmatpush1.msra.mxu0 0.0
    %3564 = vmatprep.subr.mxu0 0.0
    %3565 = vmatpush1.msra.mxu0 0.0
    %3566 = vmatprep.subr.mxu0 0.0
    %3567 = vmatpush1.msra.mxu0 0.0
    %3568 = vmatprep.subr.mxu0 0.0
    %3569 = vmatpush1.msra.mxu0 0.0
    %3570 = vmatprep.subr.mxu0 0.0
    %3571 = vmatpush1.msra.mxu0 0.0
    %3572 = vmatprep.subr.mxu0 0.0
    %3573 = vmatpush1.msra.mxu0 0.0
    %3574 = vmatprep.subr.mxu0 0.0
    %3575 = vmatpush1.msra.mxu0 0.0
    %3576 = vmatprep.subr.mxu0 0.0
    %3577 = vmatpush1.msra.mxu0 0.0
    %3578 = vmatprep.subr.mxu0 0.0
    %3579 = vmatpush1.msra.mxu0 0.0
    %3580 = vmatprep.subr.mxu0 0.0
    %3581 = vmatpush1.msra.mxu0 0.0
    %3582 = vmatprep.subr.mxu0 0.0
    %3583 = vmatpush1.msra.mxu0 0.0
    %3584 = vmatprep.subr.mxu0 0.0
    %3585 = vmatpush1.msra.mxu0 0.0
    %3586 = vmatprep.subr.mxu0 0.0
    %3587 = vmatpush1.msra.mxu0 0.0
    %3588 = vmatprep.subr.mxu0 0.0
    %3589 = vmatpush1.msra.mxu0 0.0
    %3590 = vmatprep.subr.mxu0 0.0
    %3591 = vmatpush1.msra.mxu0 0.0
    %3592 = vmatprep.subr.mxu0 0.0
    %3593 = vmatpush1.msra.mxu0 0.0
    %3594 = vmatprep.mubr.f32.mxu0 0.0
    %3595 = vmatmul.mubr.f32.gmra.mrb[0].mxu0 %v3528
    %v3596 = vpop.f32.mrb[0].mxu0
    %v3597 = vadd.f32 0.0, %v3596
    %v3598 = vpop.f32.mrb[0].mxu0
    %3599 = vdwg.mxu0
    %v3600 = vxor.u32 %v3597, 2147483648
    %v3601 = vmul.f32 %v3600, 1.442695
    %v3602 = vpow.pop %v3601
    %v3603 = vadd.f32 %v3602, 1.0
    %v3604 = vrcp.pop %v3603
    %v3605 = vmul.f32 1.0, %v3604
    %v3606 = vmul.f32 %v71, %v3605
    %vm3607 = vcmask 254976
    %3608 = vst.msk [vmem:[#allocation10] sm:$0x3] %vm3607, %v3606
    // Predicated region
    $region34: #{_lambda_.1} parent=1 // pred_check
      _
    $region35: #{_lambda_.1} parent=1 // pred_check_branch
      %3610 = sbr.rel (0) target = $region37
    $region36: #{_lambda_.1} parent=1 // pred_region
      %s3612 = ssub.s32 32, 32
      %3613 = vsyncadd [#allocation4], %s3612
      %s3615 = sshll.u32 [#allocation10], 4
      %s3616 = int_to_ptr.vmem [resolvable:$true] %s3615
      %3618 = dma.vmem_to_hbm [thread:$0]  %s3616, 32, %s4, [#allocation4]
    $region37: #{_lambda_.1} parent=1 // pred_fallthru
      _
    // Predicated region
    $region38: #{_lambda_.1} parent=1 // pred_check
      _
    $region39: #{_lambda_.1} parent=1 // pred_check_branch
      %3620 = sbr.rel (0) target = $region41
    $region40: #{_lambda_.1} parent=1 // pred_region
      %3621 = dma.done [#allocation4], 32
    $region41: #{_lambda_.1} parent=1 // pred_fallthru
      _
    %3622 = vsyncpa [#allocation3], 1
    %3623 = vsyncpa [#allocation6], 1
    %3624 = vsyncpa [#allocation9], 1
    %3625 = vsyncpa [#allocation4], 1

</llo_original>
